<compile_context>
chip_gen: v6e
topology: v6e:2x2x1
jax: 0.10.0
libtpu: 0.0.40
codegen_flags: <defaults>
</compile_context>

<pallas_src>
import jax
import jax.numpy as jnp
from jax import lax
from jax.experimental import pallas as pl
from jax.experimental.pallas import tpu as pltpu

NUM_RESIDUAL_BLOCKS = 5
BN_EPS = 1e-5
LANE = 128  # NOTE: on v6e/v7x, HP multiples of 256 fill the MXU tile better
            # for hidden_dim > 128; kept at 128 to avoid padding waste here.


def _round_up(n, m):
    return ((n + m - 1) // m) * m


def _pad_to(a, shape):
    pads = [(0, t - s) for s, t in zip(a.shape, shape)]
    if not any(p for _, p in pads):
        return a
    return jnp.pad(a, pads)


def _vmem_capacity_bytes():
    try:
        return int(pltpu.get_tpu_info().vmem_capacity_bytes)
    except Exception:
        return 64 << 20  # conservative (v7x) fallback


def _bn_fold(h, gamma, beta):
    """Training-mode BatchNorm1d folded into one scale/shift pass over h.

    Shifted one-pass moments: per-feature row-0 shift before the sum /
    sum-of-squares keeps the variance well conditioned even when the batch
    mean dominates the spread; variance is clamped at 0 against rounding.
    gamma / beta are (1, F).  Pre-BN linear biases are omitted upstream
    (exactly cancelled by the mean subtraction).  All math is f32.
    """
    inv_n = 1.0 / h.shape[0]
    h0 = h[0:1, :]
    d = h - h0
    s = jnp.sum(d, axis=0, keepdims=True)
    ss = jnp.sum(d * d, axis=0, keepdims=True)
    mean_d = s * inv_n
    var = jnp.maximum(ss * inv_n - mean_d * mean_d, 0.0)
    mean = mean_d + h0
    scale = gamma * lax.rsqrt(var + BN_EPS)
    shift = beta - mean * scale
    return h * scale + shift


# ----------------------------------------------------------------------------
# Resident (single-step) kernel: everything lives in VMEM, blocks are an
# unrolled in-kernel loop.  Preferred path for typical CTGAN sizes.
# ----------------------------------------------------------------------------
def _resident_kernel(x_ref, w1_ref, g1_ref, be1_ref,
                     rw1_ref, rg1_ref, rbe1_ref,
                     rw2_ref, rg2_ref, rbe2_ref,
                     w2_ref, b2_ref, o_ref):
    nb = rw1_ref.shape[0]
    cdt = w1_ref.dtype  # matmul operand dtype (compute_dtype)

    # Stem: fc1 (bias dead) -> bn1 -> ReLU.  f32 accumulation.
    h = jnp.dot(x_ref[...], w1_ref[...], preferred_element_type=jnp.float32)
    h = jnp.maximum(_bn_fold(h, g1_ref[...], be1_ref[...]), 0.0)

    # Residual blocks, fully unrolled for LLO scheduler visibility.
    # h is carried in f32 (faithful residual identity); operands are cast to
    # compute_dtype only at the dots (no-op when compute_dtype == f32).
    def block(i, h):
        identity = h
        t = jnp.dot(h.astype(cdt), rw1_ref[i],
                    preferred_element_type=jnp.float32)
        t = jnp.maximum(_bn_fold(t, rg1_ref[i], rbe1_ref[i]), 0.0)
        t = jnp.dot(t.astype(cdt), rw2_ref[i],
                    preferred_element_type=jnp.float32)
        t = _bn_fold(t, rg2_ref[i], rbe2_ref[i])
        return jnp.maximum(t + identity, 0.0)

    h = lax.fori_loop(0, nb, block, h, unroll=True)

    # Head: fc2 (+bias) -> tanh, lane-dense padded output store.
    out = jnp.dot(h.astype(cdt), w2_ref[...],
                  preferred_element_type=jnp.float32) + b2_ref[...]
    o_ref[...] = jnp.tanh(out)


# ----------------------------------------------------------------------------
# Streaming fallback: residual weights streamed over a grid axis of size nb
# ("arbitrary"), activations persist in a VMEM scratch across grid steps.
# Used only when the resident variant would not fit in the VMEM budget.
# ----------------------------------------------------------------------------
def _streaming_kernel(x_ref, w1_ref, g1_ref, be1_ref,
                      rw1_ref, rg1_ref, rbe1_ref,
                      rw2_ref, rg2_ref, rbe2_ref,
                      w2_ref, b2_ref, o_ref, h_ref):
    i = pl.program_id(0)
    last = pl.num_programs(0) - 1
    cdt = w1_ref.dtype

    @pl.when(i == 0)
    def _stem():
        h = jnp.dot(x_ref[...], w1_ref[...],
                    preferred_element_type=jnp.float32)
        h_ref[...] = jnp.maximum(_bn_fold(h, g1_ref[...], be1_ref[...]), 0.0)

    identity = h_ref[...]
    t = jnp.dot(identity.astype(cdt), rw1_ref[0],
                preferred_element_type=jnp.float32)
    t = jnp.maximum(_bn_fold(t, rg1_ref[0], rbe1_ref[0]), 0.0)
    t = jnp.dot(t.astype(cdt), rw2_ref[0],
                preferred_element_type=jnp.float32)
    t = _bn_fold(t, rg2_ref[0], rbe2_ref[0])
    h_ref[...] = jnp.maximum(t + identity, 0.0)

    @pl.when(i == last)
    def _head():
        out = jnp.dot(h_ref[...].astype(cdt), w2_ref[...],
                      preferred_element_type=jnp.float32) + b2_ref[...]
        o_ref[...] = jnp.tanh(out)


def ctgan_generator(x, params, *, compute_dtype=jnp.bfloat16,
                    force_stream=False):
    """Fused CTGAN generator forward.

    compute_dtype affects matmul operands only (f32 accumulation, f32
    BN/ReLU/tanh).  bfloat16 (default) hits the fast MXU path on v6e/v7x and
    halves weight DMA/VMEM bytes; pass jnp.float32 for exact-semantics checks.
    """
    (w1, b1, g1, be1,
     rw1, rb1, rg1, rbe1,
     rw2, rb2, rg2, rbe2,
     w2, b2) = params
    del b1, rb1, rb2  # cancelled exactly by training-mode BatchNorm mean sub

    B, din = x.shape
    hid = w1.shape[1]
    nb = rw1.shape[0]
    HP = _round_up(hid, LANE)   # hidden features -> lane dense
    DP = _round_up(din, LANE)   # output features -> lane-dense unmasked vst
    f32 = jnp.float32
    cdt = jnp.dtype(compute_dtype)

    # Stem K dim stays unpadded (block == full array dims); zero-padded
    # gamma/beta keep padded hidden/output columns identically zero through
    # every BN / ReLU / residual add.
    xp    = x.astype(cdt)
    w1p   = _pad_to(w1, (din, HP)).astype(cdt)
    g1p   = _pad_to(g1.reshape(1, hid), (1, HP)).astype(f32)
    be1p  = _pad_to(be1.reshape(1, hid), (1, HP)).astype(f32)
    rw1p  = _pad_to(rw1, (nb, HP, HP)).astype(cdt)
    rw2p  = _pad_to(rw2, (nb, HP, HP)).astype(cdt)
    rg1p  = _pad_to(rg1.reshape(nb, 1, hid), (nb, 1, HP)).astype(f32)
    rbe1p = _pad_to(rbe1.reshape(nb, 1, hid), (nb, 1, HP)).astype(f32)
    rg2p  = _pad_to(rg2.reshape(nb, 1, hid), (nb, 1, HP)).astype(f32)
    rbe2p = _pad_to(rbe2.reshape(nb, 1, hid), (nb, 1, HP)).astype(f32)
    w2p   = _pad_to(w2, (HP, DP)).astype(cdt)
    b2p   = _pad_to(b2.reshape(1, din), (1, DP)).astype(f32)

    inputs = (xp, w1p, g1p, be1p, rw1p, rg1p, rbe1p,
              rw2p, rg2p, rbe2p, w2p, b2p)

    # Advisory cost estimate for XLA scheduling around the call.
    flops = 2 * B * (din * HP + nb * 2 * HP * HP + HP * DP)
    bytes_accessed = sum(int(a.size) * a.dtype.itemsize for a in inputs) \
        + B * DP * 4
    transcendentals = B * DP + (2 * nb + 2) * HP   # tanh + BN rsqrt
    cost = pl.CostEstimate(flops=int(flops),
                           transcendentals=int(transcendentals),
                           bytes_accessed=int(bytes_accessed))

    # Generation-aware VMEM budget (128 MiB on v5e/v6e, 64 MiB on v7x).
    vmem_budget = max(int(0.70 * _vmem_capacity_bytes()), 16 << 20)

    # Resident residency estimate: default 2x buffering on every operand plus
    # a few f32 (B, HP) intermediates and headroom for compiler scratch.
    resident_bytes = 2 * bytes_accessed + 6 * B * HP * 4 + (2 << 20)
    use_streaming = force_stream or (resident_bytes > vmem_budget)

    fix2 = lambda i: (0, 0)
    fix3 = lambda i: (0, 0, 0)
    blk3 = lambda i: (i, 0, 0)
    compiler_params = pltpu.CompilerParams(
        dimension_semantics=("arbitrary",),
        vmem_limit_bytes=vmem_budget,
    )

    if not use_streaming:
        # Single grid step: no per-step pipeline overhead, whole chain visible.
        out = pl.pallas_call(
            _resident_kernel,
            out_shape=jax.ShapeDtypeStruct((B, DP), jnp.float32),
            grid_spec=pltpu.PrefetchScalarGridSpec(
                num_scalar_prefetch=0,
                grid=(1,),
                in_specs=[
                    pl.BlockSpec((B, din), fix2),        # x
                    pl.BlockSpec((din, HP), fix2),       # w1
                    pl.BlockSpec((1, HP), fix2),         # g1
                    pl.BlockSpec((1, HP), fix2),         # be1
                    pl.BlockSpec((nb, HP, HP), fix3),    # rw1 (resident)
                    pl.BlockSpec((nb, 1, HP), fix3),     # rg1
                    pl.BlockSpec((nb, 1, HP), fix3),     # rbe1
                    pl.BlockSpec((nb, HP, HP), fix3),    # rw2 (resident)
                    pl.BlockSpec((nb, 1, HP), fix3),     # rg2
                    pl.BlockSpec((nb, 1, HP), fix3),     # rbe2
                    pl.BlockSpec((HP, DP), fix2),        # w2
                    pl.BlockSpec((1, DP), fix2),         # b2
                ],
                out_specs=pl.BlockSpec((B, DP), fix2),
            ),
            compiler_params=compiler_params,
            cost_estimate=cost,
        )(*inputs)
    else:
        # Streaming fallback for large hidden_dim: HxH weights double-buffered
        # behind the previous block's matmuls; activations persist in scratch.
        out = pl.pallas_call(
            _streaming_kernel,
            out_shape=jax.ShapeDtypeStruct((B, DP), jnp.float32),
            grid_spec=pltpu.PrefetchScalarGridSpec(
                num_scalar_prefetch=0,
                grid=(nb,),
                in_specs=[
                    pl.BlockSpec((B, din), fix2),        # x
                    pl.BlockSpec((din, HP), fix2),       # w1
                    pl.BlockSpec((1, HP), fix2),         # g1
                    pl.BlockSpec((1, HP), fix2),         # be1
                    pl.BlockSpec((1, HP, HP), blk3),     # rw1 (streamed)
                    pl.BlockSpec((1, 1, HP), blk3),      # rg1
                    pl.BlockSpec((1, 1, HP), blk3),      # rbe1
                    pl.BlockSpec((1, HP, HP), blk3),     # rw2 (streamed)
                    pl.BlockSpec((1, 1, HP), blk3),      # rg2
                    pl.BlockSpec((1, 1, HP), blk3),      # rbe2
                    pl.BlockSpec((HP, DP), fix2),        # w2
                    pl.BlockSpec((1, DP), fix2),         # b2
                ],
                out_specs=pl.BlockSpec((B, DP), fix2),
                scratch_shapes=[pltpu.VMEM((B, HP), jnp.float32)],
            ),
            compiler_params=compiler_params,
            cost_estimate=cost,
        )(*inputs)

    return out[:, :din]


def init_params(key, input_dim, hidden_dim, num_blocks=NUM_RESIDUAL_BLOCKS):
    """Deterministic synthetic params mirroring the PyTorch module shapes."""
    ks = iter(jax.random.split(key, 4 * num_blocks + 8))

    def lin(kk, fan_in, fan_out):
        bound = 1.0 / float(fan_in) ** 0.5
        w = jax.random.uniform(kk, (fan_in, fan_out), jnp.float32, -bound, bound)
        b = jax.random.uniform(jax.random.fold_in(kk, 1), (fan_out,),
                               jnp.float32, -bound, bound)
        return w, b

    w1, b1 = lin(next(ks), input_dim, hidden_dim)
    g1 = 1.0 + 0.01 * jnp.arange(hidden_dim, dtype=jnp.float32)
    be1 = 0.01 * jnp.arange(hidden_dim, dtype=jnp.float32)

    rw1, rb1, rg1, rbe1 = [], [], [], []
    rw2, rb2, rg2, rbe2 = [], [], [], []
    for i in range(num_blocks):
        w, b = lin(next(ks), hidden_dim, hidden_dim)
        rw1.append(w); rb1.append(b)
        rg1.append(jnp.full((hidden_dim,), 1.0 + 0.02 * i, jnp.float32))
        rbe1.append(jnp.full((hidden_dim,), 0.01 * i, jnp.float32))
        w, b = lin(next(ks), hidden_dim, hidden_dim)
        rw2.append(w); rb2.append(b)
        rg2.append(jnp.full((hidden_dim,), 1.0 - 0.01 * i, jnp.float32))
        rbe2.append(jnp.full((hidden_dim,), -0.01 * i, jnp.float32))

    w2, b2 = lin(next(ks), hidden_dim, input_dim)

    st = jnp.stack
    return (w1, b1, g1, be1,
            st(rw1), st(rb1), st(rg1), st(rbe1),
            st(rw2), st(rb2), st(rg2), st(rbe2),
            w2, b2)


def ctgan_generator_ref(x, params):
    """Pure-JAX reference, faithful to the PyTorch forward (training-mode BN,
    all biases included)."""
    (w1, b1, g1, be1, rw1, rb1, rg1, rbe1, rw2, rb2, rg2, rbe2, w2, b2) = params

    def bn(h, g, b):
        m = jnp.mean(h, axis=0, keepdims=True)
        v = jnp.mean((h - m) ** 2, axis=0, keepdims=True)
        return (h - m) / jnp.sqrt(v + BN_EPS) * g + b

    h = jnp.maximum(bn(x @ w1 + b1, g1, be1), 0.0)
    for i in range(rw1.shape[0]):
        identity = h
        t = jnp.maximum(bn(h @ rw1[i] + rb1[i], rg1[i], rbe1[i]), 0.0)
        t = bn(t @ rw2[i] + rb2[i], rg2[i], rbe2[i])
        h = jnp.maximum(t + identity, 0.0)
    return jnp.tanh(h @ w2 + b2)


if __name__ == "__main__":
    key = jax.random.PRNGKey(0)
    # Small shapes consistent with the module; batch is sublane-aligned and
    # large enough to feed the MXU M dimension (no batch padding is done, so
    # BN statistics always use the true batch size).
    batch, input_dim, hidden_dim = 64, 16, 32

    kx, kp = jax.random.split(key)
    x = jax.random.normal(kx, (batch, input_dim), dtype=jnp.float32)
    params = init_params(kp, input_dim, hidden_dim)

    ref = ctgan_generator_ref(x, params)

    # 1) f32 operands, resident single-step path: exact-semantics check.
    out_f32 = jax.block_until_ready(
        ctgan_generator(x, params, compute_dtype=jnp.float32))
    assert out_f32.shape == (batch, input_dim)
    assert jnp.allclose(out_f32, ref, atol=1e-4, rtol=1e-4), (
        "resident f32 mismatch: max|diff|="
        f"{float(jnp.max(jnp.abs(out_f32 - ref)))}")

    # 2) Streaming fallback path (forced), f32: must agree too.
    out_stream = jax.block_until_ready(
        ctgan_generator(x, params, compute_dtype=jnp.float32,
                        force_stream=True))
    assert jnp.allclose(out_stream, ref, atol=1e-4, rtol=1e-4), (
        "streaming f32 mismatch: max|diff|="
        f"{float(jnp.max(jnp.abs(out_stream - ref)))}")

    # 3) Default bf16-operand fast path: sanity bounds only (bf16 matmul
    #    rounding compounds over 11 matmul+BN stages; exactness is established
    #    by the f32 paths above).
    out_bf16 = jax.block_until_ready(ctgan_generator(x, params))
    assert out_bf16.shape == (batch, input_dim)
    diff = jnp.abs(out_bf16 - ref)
    assert bool(jnp.all(jnp.isfinite(out_bf16)))
    assert float(jnp.max(diff)) < 0.2 and float(jnp.mean(diff)) < 0.05, (
        f"bf16 path diverged: max={float(jnp.max(diff))} "
        f"mean={float(jnp.mean(diff))}")

    print("KERNEL_OK")
</pallas_src>

<mosaic_0001>
module attributes {stable_mosaic.version = 11 : i64} {
  func.func @_resident_kernel(%arg0: i32, %arg1: memref<64x16xf32, #tpu.memory_space<vmem>>, %arg2: memref<16x128xf32, #tpu.memory_space<vmem>>, %arg3: memref<1x128xf32, #tpu.memory_space<vmem>>, %arg4: memref<1x128xf32, #tpu.memory_space<vmem>>, %arg5: memref<5x128x128xf32, #tpu.memory_space<vmem>>, %arg6: memref<5x1x128xf32, #tpu.memory_space<vmem>>, %arg7: memref<5x1x128xf32, #tpu.memory_space<vmem>>, %arg8: memref<5x128x128xf32, #tpu.memory_space<vmem>>, %arg9: memref<5x1x128xf32, #tpu.memory_space<vmem>>, %arg10: memref<5x1x128xf32, #tpu.memory_space<vmem>>, %arg11: memref<128x128xf32, #tpu.memory_space<vmem>>, %arg12: memref<1x128xf32, #tpu.memory_space<vmem>>, %arg13: memref<64x128xf32, #tpu.memory_space<vmem>>) attributes {dimension_semantics = [#tpu.dimension_semantics<arbitrary>], iteration_bounds = array<i64: 1>, scalar_prefetch = 0 : i64, scratch_operands = 0 : i64, tpu.core_type = #tpu.core_type<tc>, window_params = [{pipeline_mode = #tpu.pipeline_mode<synchronous>, transform_indices = @transform_0, window_bounds = array<i64: 64, 16>}, {pipeline_mode = #tpu.pipeline_mode<synchronous>, transform_indices = @transform_1, window_bounds = array<i64: 16, 128>}, {pipeline_mode = #tpu.pipeline_mode<synchronous>, transform_indices = @transform_2, window_bounds = array<i64: 1, 128>}, {pipeline_mode = #tpu.pipeline_mode<synchronous>, transform_indices = @transform_3, window_bounds = array<i64: 1, 128>}, {pipeline_mode = #tpu.pipeline_mode<synchronous>, transform_indices = @transform_4, window_bounds = array<i64: 5, 128, 128>}, {pipeline_mode = #tpu.pipeline_mode<synchronous>, transform_indices = @transform_5, window_bounds = array<i64: 5, 1, 128>}, {pipeline_mode = #tpu.pipeline_mode<synchronous>, transform_indices = @transform_6, window_bounds = array<i64: 5, 1, 128>}, {pipeline_mode = #tpu.pipeline_mode<synchronous>, transform_indices = @transform_7, window_bounds = array<i64: 5, 128, 128>}, {pipeline_mode = #tpu.pipeline_mode<synchronous>, transform_indices = @transform_8, window_bounds = array<i64: 5, 1, 128>}, {pipeline_mode = #tpu.pipeline_mode<synchronous>, transform_indices = @transform_9, window_bounds = array<i64: 5, 1, 128>}, {pipeline_mode = #tpu.pipeline_mode<synchronous>, transform_indices = @transform_10, window_bounds = array<i64: 128, 128>}, {pipeline_mode = #tpu.pipeline_mode<synchronous>, transform_indices = @transform_11, window_bounds = array<i64: 1, 128>}, {pipeline_mode = #tpu.pipeline_mode<synchronous>, transform_indices = @transform_12, window_bounds = array<i64: 64, 128>}]} {
    %c0 = arith.constant 0 : index
    %c0_0 = arith.constant 0 : index
    %0 = vector.load %arg1[%c0, %c0_0] : memref<64x16xf32, #tpu.memory_space<vmem>>, vector<64x16xf32>
    %c0_1 = arith.constant 0 : index
    %c0_2 = arith.constant 0 : index
    %1 = vector.load %arg2[%c0_1, %c0_2] : memref<16x128xf32, #tpu.memory_space<vmem>>, vector<16x128xf32>
    %cst = arith.constant dense<0.000000e+00> : vector<64x128xf32>
    %2 = tpu.matmul %0, %1, %cst {dimension_numbers = #tpu.dot_dimension_numbers<[1], [0], [0], [1], [0, 0, 1, 1], [], []>} : vector<64x16xf32>, vector<16x128xf32>, vector<64x128xf32> -> vector<64x128xf32>
    %c0_3 = arith.constant 0 : index
    %c0_4 = arith.constant 0 : index
    %3 = vector.load %arg3[%c0_3, %c0_4] : memref<1x128xf32, #tpu.memory_space<vmem>>, vector<1x128xf32>
    %c0_5 = arith.constant 0 : index
    %c0_6 = arith.constant 0 : index
    %4 = vector.load %arg4[%c0_5, %c0_6] : memref<1x128xf32, #tpu.memory_space<vmem>>, vector<1x128xf32>
    %5 = vector.extract_strided_slice %2 {offsets = [0, 0], sizes = [1, 128], strides = [1, 1]} : vector<64x128xf32> to vector<1x128xf32>
    %6 = vector.broadcast %5 : vector<1x128xf32> to vector<64x128xf32>
    %7 = arith.subf %2, %6 : vector<64x128xf32>
    %cst_7 = arith.constant dense<0.000000e+00> : vector<128xf32>
    %8 = vector.multi_reduction <add>, %7, %cst_7 [0] : vector<64x128xf32> to vector<128xf32>
    %9 = vector.shape_cast %8 : vector<128xf32> to vector<1x128xf32>
    %10 = arith.mulf %7, %7 : vector<64x128xf32>
    %cst_8 = arith.constant dense<0.000000e+00> : vector<128xf32>
    %11 = vector.multi_reduction <add>, %10, %cst_8 [0] : vector<64x128xf32> to vector<128xf32>
    %12 = vector.shape_cast %11 : vector<128xf32> to vector<1x128xf32>
    %cst_9 = arith.constant 1.562500e-02 : f32
    %13 = vector.broadcast %cst_9 : f32 to vector<1x128xf32>
    %14 = arith.mulf %9, %13 : vector<1x128xf32>
    %cst_10 = arith.constant 1.562500e-02 : f32
    %15 = vector.broadcast %cst_10 : f32 to vector<1x128xf32>
    %16 = arith.mulf %12, %15 : vector<1x128xf32>
    %17 = arith.mulf %14, %14 : vector<1x128xf32>
    %18 = arith.subf %16, %17 : vector<1x128xf32>
    %cst_11 = arith.constant 0.000000e+00 : f32
    %19 = vector.broadcast %cst_11 : f32 to vector<1x128xf32>
    %20 = arith.maximumf %18, %19 : vector<1x128xf32>
    %21 = arith.addf %14, %5 : vector<1x128xf32>
    %cst_12 = arith.constant 9.99999974E-6 : f32
    %22 = vector.broadcast %cst_12 : f32 to vector<1x128xf32>
    %23 = arith.addf %20, %22 : vector<1x128xf32>
    %24 = math.rsqrt %23 : vector<1x128xf32>
    %25 = arith.mulf %3, %24 : vector<1x128xf32>
    %26 = arith.mulf %21, %25 : vector<1x128xf32>
    %27 = arith.subf %4, %26 : vector<1x128xf32>
    %28 = vector.broadcast %25 : vector<1x128xf32> to vector<64x128xf32>
    %29 = arith.mulf %2, %28 : vector<64x128xf32>
    %30 = vector.broadcast %27 : vector<1x128xf32> to vector<64x128xf32>
    %31 = arith.addf %29, %30 : vector<64x128xf32>
    %cst_13 = arith.constant 0.000000e+00 : f32
    %32 = vector.broadcast %cst_13 : f32 to vector<64x128xf32>
    %33 = arith.maximumf %31, %32 : vector<64x128xf32>
    %c0_i32 = arith.constant 0 : i32
    %34 = arith.index_cast %c0_i32 : i32 to index
    %c0_14 = arith.constant 0 : index
    %c0_15 = arith.constant 0 : index
    %35 = vector.load %arg5[%34, %c0_14, %c0_15] : memref<5x128x128xf32, #tpu.memory_space<vmem>>, vector<1x128x128xf32>
    %36 = vector.shape_cast %35 : vector<1x128x128xf32> to vector<128x128xf32>
    %cst_16 = arith.constant dense<0.000000e+00> : vector<64x128xf32>
    %37 = tpu.matmul %33, %36, %cst_16 {dimension_numbers = #tpu.dot_dimension_numbers<[1], [0], [0], [1], [0, 0, 1, 1], [], []>} : vector<64x128xf32>, vector<128x128xf32>, vector<64x128xf32> -> vector<64x128xf32>
    %38 = arith.index_cast %c0_i32 : i32 to index
    %c0_17 = arith.constant 0 : index
    %c0_18 = arith.constant 0 : index
    %39 = vector.load %arg6[%38, %c0_17, %c0_18] : memref<5x1x128xf32, #tpu.memory_space<vmem>>, vector<1x1x128xf32>
    %40 = vector.shape_cast %39 : vector<1x1x128xf32> to vector<1x128xf32>
    %41 = arith.index_cast %c0_i32 : i32 to index
    %c0_19 = arith.constant 0 : index
    %c0_20 = arith.constant 0 : index
    %42 = vector.load %arg7[%41, %c0_19, %c0_20] : memref<5x1x128xf32, #tpu.memory_space<vmem>>, vector<1x1x128xf32>
    %43 = vector.shape_cast %42 : vector<1x1x128xf32> to vector<1x128xf32>
    %44 = vector.extract_strided_slice %37 {offsets = [0, 0], sizes = [1, 128], strides = [1, 1]} : vector<64x128xf32> to vector<1x128xf32>
    %45 = vector.broadcast %44 : vector<1x128xf32> to vector<64x128xf32>
    %46 = arith.subf %37, %45 : vector<64x128xf32>
    %cst_21 = arith.constant dense<0.000000e+00> : vector<128xf32>
    %47 = vector.multi_reduction <add>, %46, %cst_21 [0] : vector<64x128xf32> to vector<128xf32>
    %48 = vector.shape_cast %47 : vector<128xf32> to vector<1x128xf32>
    %49 = arith.mulf %46, %46 : vector<64x128xf32>
    %cst_22 = arith.constant dense<0.000000e+00> : vector<128xf32>
    %50 = vector.multi_reduction <add>, %49, %cst_22 [0] : vector<64x128xf32> to vector<128xf32>
    %51 = vector.shape_cast %50 : vector<128xf32> to vector<1x128xf32>
    %cst_23 = arith.constant 1.562500e-02 : f32
    %52 = vector.broadcast %cst_23 : f32 to vector<1x128xf32>
    %53 = arith.mulf %48, %52 : vector<1x128xf32>
    %cst_24 = arith.constant 1.562500e-02 : f32
    %54 = vector.broadcast %cst_24 : f32 to vector<1x128xf32>
    %55 = arith.mulf %51, %54 : vector<1x128xf32>
    %56 = arith.mulf %53, %53 : vector<1x128xf32>
    %57 = arith.subf %55, %56 : vector<1x128xf32>
    %cst_25 = arith.constant 0.000000e+00 : f32
    %58 = vector.broadcast %cst_25 : f32 to vector<1x128xf32>
    %59 = arith.maximumf %57, %58 : vector<1x128xf32>
    %60 = arith.addf %53, %44 : vector<1x128xf32>
    %cst_26 = arith.constant 9.99999974E-6 : f32
    %61 = vector.broadcast %cst_26 : f32 to vector<1x128xf32>
    %62 = arith.addf %59, %61 : vector<1x128xf32>
    %63 = math.rsqrt %62 : vector<1x128xf32>
    %64 = arith.mulf %40, %63 : vector<1x128xf32>
    %65 = arith.mulf %60, %64 : vector<1x128xf32>
    %66 = arith.subf %43, %65 : vector<1x128xf32>
    %67 = vector.broadcast %64 : vector<1x128xf32> to vector<64x128xf32>
    %68 = arith.mulf %37, %67 : vector<64x128xf32>
    %69 = vector.broadcast %66 : vector<1x128xf32> to vector<64x128xf32>
    %70 = arith.addf %68, %69 : vector<64x128xf32>
    %cst_27 = arith.constant 0.000000e+00 : f32
    %71 = vector.broadcast %cst_27 : f32 to vector<64x128xf32>
    %72 = arith.maximumf %70, %71 : vector<64x128xf32>
    %73 = arith.index_cast %c0_i32 : i32 to index
    %c0_28 = arith.constant 0 : index
    %c0_29 = arith.constant 0 : index
    %74 = vector.load %arg8[%73, %c0_28, %c0_29] : memref<5x128x128xf32, #tpu.memory_space<vmem>>, vector<1x128x128xf32>
    %75 = vector.shape_cast %74 : vector<1x128x128xf32> to vector<128x128xf32>
    %cst_30 = arith.constant dense<0.000000e+00> : vector<64x128xf32>
    %76 = tpu.matmul %72, %75, %cst_30 {dimension_numbers = #tpu.dot_dimension_numbers<[1], [0], [0], [1], [0, 0, 1, 1], [], []>} : vector<64x128xf32>, vector<128x128xf32>, vector<64x128xf32> -> vector<64x128xf32>
    %77 = arith.index_cast %c0_i32 : i32 to index
    %c0_31 = arith.constant 0 : index
    %c0_32 = arith.constant 0 : index
    %78 = vector.load %arg9[%77, %c0_31, %c0_32] : memref<5x1x128xf32, #tpu.memory_space<vmem>>, vector<1x1x128xf32>
    %79 = vector.shape_cast %78 : vector<1x1x128xf32> to vector<1x128xf32>
    %80 = arith.index_cast %c0_i32 : i32 to index
    %c0_33 = arith.constant 0 : index
    %c0_34 = arith.constant 0 : index
    %81 = vector.load %arg10[%80, %c0_33, %c0_34] : memref<5x1x128xf32, #tpu.memory_space<vmem>>, vector<1x1x128xf32>
    %82 = vector.shape_cast %81 : vector<1x1x128xf32> to vector<1x128xf32>
    %83 = vector.extract_strided_slice %76 {offsets = [0, 0], sizes = [1, 128], strides = [1, 1]} : vector<64x128xf32> to vector<1x128xf32>
    %84 = vector.broadcast %83 : vector<1x128xf32> to vector<64x128xf32>
    %85 = arith.subf %76, %84 : vector<64x128xf32>
    %cst_35 = arith.constant dense<0.000000e+00> : vector<128xf32>
    %86 = vector.multi_reduction <add>, %85, %cst_35 [0] : vector<64x128xf32> to vector<128xf32>
    %87 = vector.shape_cast %86 : vector<128xf32> to vector<1x128xf32>
    %88 = arith.mulf %85, %85 : vector<64x128xf32>
    %cst_36 = arith.constant dense<0.000000e+00> : vector<128xf32>
    %89 = vector.multi_reduction <add>, %88, %cst_36 [0] : vector<64x128xf32> to vector<128xf32>
    %90 = vector.shape_cast %89 : vector<128xf32> to vector<1x128xf32>
    %cst_37 = arith.constant 1.562500e-02 : f32
    %91 = vector.broadcast %cst_37 : f32 to vector<1x128xf32>
    %92 = arith.mulf %87, %91 : vector<1x128xf32>
    %cst_38 = arith.constant 1.562500e-02 : f32
    %93 = vector.broadcast %cst_38 : f32 to vector<1x128xf32>
    %94 = arith.mulf %90, %93 : vector<1x128xf32>
    %95 = arith.mulf %92, %92 : vector<1x128xf32>
    %96 = arith.subf %94, %95 : vector<1x128xf32>
    %cst_39 = arith.constant 0.000000e+00 : f32
    %97 = vector.broadcast %cst_39 : f32 to vector<1x128xf32>
    %98 = arith.maximumf %96, %97 : vector<1x128xf32>
    %99 = arith.addf %92, %83 : vector<1x128xf32>
    %cst_40 = arith.constant 9.99999974E-6 : f32
    %100 = vector.broadcast %cst_40 : f32 to vector<1x128xf32>
    %101 = arith.addf %98, %100 : vector<1x128xf32>
    %102 = math.rsqrt %101 : vector<1x128xf32>
    %103 = arith.mulf %79, %102 : vector<1x128xf32>
    %104 = arith.mulf %99, %103 : vector<1x128xf32>
    %105 = arith.subf %82, %104 : vector<1x128xf32>
    %106 = vector.broadcast %103 : vector<1x128xf32> to vector<64x128xf32>
    %107 = arith.mulf %76, %106 : vector<64x128xf32>
    %108 = vector.broadcast %105 : vector<1x128xf32> to vector<64x128xf32>
    %109 = arith.addf %107, %108 : vector<64x128xf32>
    %110 = arith.addf %109, %33 : vector<64x128xf32>
    %cst_41 = arith.constant 0.000000e+00 : f32
    %111 = vector.broadcast %cst_41 : f32 to vector<64x128xf32>
    %112 = arith.maximumf %110, %111 : vector<64x128xf32>
    %c1_i32 = arith.constant 1 : i32
    %113 = arith.index_cast %c1_i32 : i32 to index
    %c0_42 = arith.constant 0 : index
    %c0_43 = arith.constant 0 : index
    %114 = vector.load %arg5[%113, %c0_42, %c0_43] : memref<5x128x128xf32, #tpu.memory_space<vmem>>, vector<1x128x128xf32>
    %115 = vector.shape_cast %114 : vector<1x128x128xf32> to vector<128x128xf32>
    %cst_44 = arith.constant dense<0.000000e+00> : vector<64x128xf32>
    %116 = tpu.matmul %112, %115, %cst_44 {dimension_numbers = #tpu.dot_dimension_numbers<[1], [0], [0], [1], [0, 0, 1, 1], [], []>} : vector<64x128xf32>, vector<128x128xf32>, vector<64x128xf32> -> vector<64x128xf32>
    %117 = arith.index_cast %c1_i32 : i32 to index
    %c0_45 = arith.constant 0 : index
    %c0_46 = arith.constant 0 : index
    %118 = vector.load %arg6[%117, %c0_45, %c0_46] : memref<5x1x128xf32, #tpu.memory_space<vmem>>, vector<1x1x128xf32>
    %119 = vector.shape_cast %118 : vector<1x1x128xf32> to vector<1x128xf32>
    %120 = arith.index_cast %c1_i32 : i32 to index
    %c0_47 = arith.constant 0 : index
    %c0_48 = arith.constant 0 : index
    %121 = vector.load %arg7[%120, %c0_47, %c0_48] : memref<5x1x128xf32, #tpu.memory_space<vmem>>, vector<1x1x128xf32>
    %122 = vector.shape_cast %121 : vector<1x1x128xf32> to vector<1x128xf32>
    %123 = vector.extract_strided_slice %116 {offsets = [0, 0], sizes = [1, 128], strides = [1, 1]} : vector<64x128xf32> to vector<1x128xf32>
    %124 = vector.broadcast %123 : vector<1x128xf32> to vector<64x128xf32>
    %125 = arith.subf %116, %124 : vector<64x128xf32>
    %cst_49 = arith.constant dense<0.000000e+00> : vector<128xf32>
    %126 = vector.multi_reduction <add>, %125, %cst_49 [0] : vector<64x128xf32> to vector<128xf32>
    %127 = vector.shape_cast %126 : vector<128xf32> to vector<1x128xf32>
    %128 = arith.mulf %125, %125 : vector<64x128xf32>
    %cst_50 = arith.constant dense<0.000000e+00> : vector<128xf32>
    %129 = vector.multi_reduction <add>, %128, %cst_50 [0] : vector<64x128xf32> to vector<128xf32>
    %130 = vector.shape_cast %129 : vector<128xf32> to vector<1x128xf32>
    %cst_51 = arith.constant 1.562500e-02 : f32
    %131 = vector.broadcast %cst_51 : f32 to vector<1x128xf32>
    %132 = arith.mulf %127, %131 : vector<1x128xf32>
    %cst_52 = arith.constant 1.562500e-02 : f32
    %133 = vector.broadcast %cst_52 : f32 to vector<1x128xf32>
    %134 = arith.mulf %130, %133 : vector<1x128xf32>
    %135 = arith.mulf %132, %132 : vector<1x128xf32>
    %136 = arith.subf %134, %135 : vector<1x128xf32>
    %cst_53 = arith.constant 0.000000e+00 : f32
    %137 = vector.broadcast %cst_53 : f32 to vector<1x128xf32>
    %138 = arith.maximumf %136, %137 : vector<1x128xf32>
    %139 = arith.addf %132, %123 : vector<1x128xf32>
    %cst_54 = arith.constant 9.99999974E-6 : f32
    %140 = vector.broadcast %cst_54 : f32 to vector<1x128xf32>
    %141 = arith.addf %138, %140 : vector<1x128xf32>
    %142 = math.rsqrt %141 : vector<1x128xf32>
    %143 = arith.mulf %119, %142 : vector<1x128xf32>
    %144 = arith.mulf %139, %143 : vector<1x128xf32>
    %145 = arith.subf %122, %144 : vector<1x128xf32>
    %146 = vector.broadcast %143 : vector<1x128xf32> to vector<64x128xf32>
    %147 = arith.mulf %116, %146 : vector<64x128xf32>
    %148 = vector.broadcast %145 : vector<1x128xf32> to vector<64x128xf32>
    %149 = arith.addf %147, %148 : vector<64x128xf32>
    %cst_55 = arith.constant 0.000000e+00 : f32
    %150 = vector.broadcast %cst_55 : f32 to vector<64x128xf32>
    %151 = arith.maximumf %149, %150 : vector<64x128xf32>
    %152 = arith.index_cast %c1_i32 : i32 to index
    %c0_56 = arith.constant 0 : index
    %c0_57 = arith.constant 0 : index
    %153 = vector.load %arg8[%152, %c0_56, %c0_57] : memref<5x128x128xf32, #tpu.memory_space<vmem>>, vector<1x128x128xf32>
    %154 = vector.shape_cast %153 : vector<1x128x128xf32> to vector<128x128xf32>
    %cst_58 = arith.constant dense<0.000000e+00> : vector<64x128xf32>
    %155 = tpu.matmul %151, %154, %cst_58 {dimension_numbers = #tpu.dot_dimension_numbers<[1], [0], [0], [1], [0, 0, 1, 1], [], []>} : vector<64x128xf32>, vector<128x128xf32>, vector<64x128xf32> -> vector<64x128xf32>
    %156 = arith.index_cast %c1_i32 : i32 to index
    %c0_59 = arith.constant 0 : index
    %c0_60 = arith.constant 0 : index
    %157 = vector.load %arg9[%156, %c0_59, %c0_60] : memref<5x1x128xf32, #tpu.memory_space<vmem>>, vector<1x1x128xf32>
    %158 = vector.shape_cast %157 : vector<1x1x128xf32> to vector<1x128xf32>
    %159 = arith.index_cast %c1_i32 : i32 to index
    %c0_61 = arith.constant 0 : index
    %c0_62 = arith.constant 0 : index
    %160 = vector.load %arg10[%159, %c0_61, %c0_62] : memref<5x1x128xf32, #tpu.memory_space<vmem>>, vector<1x1x128xf32>
    %161 = vector.shape_cast %160 : vector<1x1x128xf32> to vector<1x128xf32>
    %162 = vector.extract_strided_slice %155 {offsets = [0, 0], sizes = [1, 128], strides = [1, 1]} : vector<64x128xf32> to vector<1x128xf32>
    %163 = vector.broadcast %162 : vector<1x128xf32> to vector<64x128xf32>
    %164 = arith.subf %155, %163 : vector<64x128xf32>
    %cst_63 = arith.constant dense<0.000000e+00> : vector<128xf32>
    %165 = vector.multi_reduction <add>, %164, %cst_63 [0] : vector<64x128xf32> to vector<128xf32>
    %166 = vector.shape_cast %165 : vector<128xf32> to vector<1x128xf32>
    %167 = arith.mulf %164, %164 : vector<64x128xf32>
    %cst_64 = arith.constant dense<0.000000e+00> : vector<128xf32>
    %168 = vector.multi_reduction <add>, %167, %cst_64 [0] : vector<64x128xf32> to vector<128xf32>
    %169 = vector.shape_cast %168 : vector<128xf32> to vector<1x128xf32>
    %cst_65 = arith.constant 1.562500e-02 : f32
    %170 = vector.broadcast %cst_65 : f32 to vector<1x128xf32>
    %171 = arith.mulf %166, %170 : vector<1x128xf32>
    %cst_66 = arith.constant 1.562500e-02 : f32
    %172 = vector.broadcast %cst_66 : f32 to vector<1x128xf32>
    %173 = arith.mulf %169, %172 : vector<1x128xf32>
    %174 = arith.mulf %171, %171 : vector<1x128xf32>
    %175 = arith.subf %173, %174 : vector<1x128xf32>
    %cst_67 = arith.constant 0.000000e+00 : f32
    %176 = vector.broadcast %cst_67 : f32 to vector<1x128xf32>
    %177 = arith.maximumf %175, %176 : vector<1x128xf32>
    %178 = arith.addf %171, %162 : vector<1x128xf32>
    %cst_68 = arith.constant 9.99999974E-6 : f32
    %179 = vector.broadcast %cst_68 : f32 to vector<1x128xf32>
    %180 = arith.addf %177, %179 : vector<1x128xf32>
    %181 = math.rsqrt %180 : vector<1x128xf32>
    %182 = arith.mulf %158, %181 : vector<1x128xf32>
    %183 = arith.mulf %178, %182 : vector<1x128xf32>
    %184 = arith.subf %161, %183 : vector<1x128xf32>
    %185 = vector.broadcast %182 : vector<1x128xf32> to vector<64x128xf32>
    %186 = arith.mulf %155, %185 : vector<64x128xf32>
    %187 = vector.broadcast %184 : vector<1x128xf32> to vector<64x128xf32>
    %188 = arith.addf %186, %187 : vector<64x128xf32>
    %189 = arith.addf %188, %112 : vector<64x128xf32>
    %cst_69 = arith.constant 0.000000e+00 : f32
    %190 = vector.broadcast %cst_69 : f32 to vector<64x128xf32>
    %191 = arith.maximumf %189, %190 : vector<64x128xf32>
    %c2_i32 = arith.constant 2 : i32
    %192 = arith.index_cast %c2_i32 : i32 to index
    %c0_70 = arith.constant 0 : index
    %c0_71 = arith.constant 0 : index
    %193 = vector.load %arg5[%192, %c0_70, %c0_71] : memref<5x128x128xf32, #tpu.memory_space<vmem>>, vector<1x128x128xf32>
    %194 = vector.shape_cast %193 : vector<1x128x128xf32> to vector<128x128xf32>
    %cst_72 = arith.constant dense<0.000000e+00> : vector<64x128xf32>
    %195 = tpu.matmul %191, %194, %cst_72 {dimension_numbers = #tpu.dot_dimension_numbers<[1], [0], [0], [1], [0, 0, 1, 1], [], []>} : vector<64x128xf32>, vector<128x128xf32>, vector<64x128xf32> -> vector<64x128xf32>
    %196 = arith.index_cast %c2_i32 : i32 to index
    %c0_73 = arith.constant 0 : index
    %c0_74 = arith.constant 0 : index
    %197 = vector.load %arg6[%196, %c0_73, %c0_74] : memref<5x1x128xf32, #tpu.memory_space<vmem>>, vector<1x1x128xf32>
    %198 = vector.shape_cast %197 : vector<1x1x128xf32> to vector<1x128xf32>
    %199 = arith.index_cast %c2_i32 : i32 to index
    %c0_75 = arith.constant 0 : index
    %c0_76 = arith.constant 0 : index
    %200 = vector.load %arg7[%199, %c0_75, %c0_76] : memref<5x1x128xf32, #tpu.memory_space<vmem>>, vector<1x1x128xf32>
    %201 = vector.shape_cast %200 : vector<1x1x128xf32> to vector<1x128xf32>
    %202 = vector.extract_strided_slice %195 {offsets = [0, 0], sizes = [1, 128], strides = [1, 1]} : vector<64x128xf32> to vector<1x128xf32>
    %203 = vector.broadcast %202 : vector<1x128xf32> to vector<64x128xf32>
    %204 = arith.subf %195, %203 : vector<64x128xf32>
    %cst_77 = arith.constant dense<0.000000e+00> : vector<128xf32>
    %205 = vector.multi_reduction <add>, %204, %cst_77 [0] : vector<64x128xf32> to vector<128xf32>
    %206 = vector.shape_cast %205 : vector<128xf32> to vector<1x128xf32>
    %207 = arith.mulf %204, %204 : vector<64x128xf32>
    %cst_78 = arith.constant dense<0.000000e+00> : vector<128xf32>
    %208 = vector.multi_reduction <add>, %207, %cst_78 [0] : vector<64x128xf32> to vector<128xf32>
    %209 = vector.shape_cast %208 : vector<128xf32> to vector<1x128xf32>
    %cst_79 = arith.constant 1.562500e-02 : f32
    %210 = vector.broadcast %cst_79 : f32 to vector<1x128xf32>
    %211 = arith.mulf %206, %210 : vector<1x128xf32>
    %cst_80 = arith.constant 1.562500e-02 : f32
    %212 = vector.broadcast %cst_80 : f32 to vector<1x128xf32>
    %213 = arith.mulf %209, %212 : vector<1x128xf32>
    %214 = arith.mulf %211, %211 : vector<1x128xf32>
    %215 = arith.subf %213, %214 : vector<1x128xf32>
    %cst_81 = arith.constant 0.000000e+00 : f32
    %216 = vector.broadcast %cst_81 : f32 to vector<1x128xf32>
    %217 = arith.maximumf %215, %216 : vector<1x128xf32>
    %218 = arith.addf %211, %202 : vector<1x128xf32>
    %cst_82 = arith.constant 9.99999974E-6 : f32
    %219 = vector.broadcast %cst_82 : f32 to vector<1x128xf32>
    %220 = arith.addf %217, %219 : vector<1x128xf32>
    %221 = math.rsqrt %220 : vector<1x128xf32>
    %222 = arith.mulf %198, %221 : vector<1x128xf32>
    %223 = arith.mulf %218, %222 : vector<1x128xf32>
    %224 = arith.subf %201, %223 : vector<1x128xf32>
    %225 = vector.broadcast %222 : vector<1x128xf32> to vector<64x128xf32>
    %226 = arith.mulf %195, %225 : vector<64x128xf32>
    %227 = vector.broadcast %224 : vector<1x128xf32> to vector<64x128xf32>
    %228 = arith.addf %226, %227 : vector<64x128xf32>
    %cst_83 = arith.constant 0.000000e+00 : f32
    %229 = vector.broadcast %cst_83 : f32 to vector<64x128xf32>
    %230 = arith.maximumf %228, %229 : vector<64x128xf32>
    %231 = arith.index_cast %c2_i32 : i32 to index
    %c0_84 = arith.constant 0 : index
    %c0_85 = arith.constant 0 : index
    %232 = vector.load %arg8[%231, %c0_84, %c0_85] : memref<5x128x128xf32, #tpu.memory_space<vmem>>, vector<1x128x128xf32>
    %233 = vector.shape_cast %232 : vector<1x128x128xf32> to vector<128x128xf32>
    %cst_86 = arith.constant dense<0.000000e+00> : vector<64x128xf32>
    %234 = tpu.matmul %230, %233, %cst_86 {dimension_numbers = #tpu.dot_dimension_numbers<[1], [0], [0], [1], [0, 0, 1, 1], [], []>} : vector<64x128xf32>, vector<128x128xf32>, vector<64x128xf32> -> vector<64x128xf32>
    %235 = arith.index_cast %c2_i32 : i32 to index
    %c0_87 = arith.constant 0 : index
    %c0_88 = arith.constant 0 : index
    %236 = vector.load %arg9[%235, %c0_87, %c0_88] : memref<5x1x128xf32, #tpu.memory_space<vmem>>, vector<1x1x128xf32>
    %237 = vector.shape_cast %236 : vector<1x1x128xf32> to vector<1x128xf32>
    %238 = arith.index_cast %c2_i32 : i32 to index
    %c0_89 = arith.constant 0 : index
    %c0_90 = arith.constant 0 : index
    %239 = vector.load %arg10[%238, %c0_89, %c0_90] : memref<5x1x128xf32, #tpu.memory_space<vmem>>, vector<1x1x128xf32>
    %240 = vector.shape_cast %239 : vector<1x1x128xf32> to vector<1x128xf32>
    %241 = vector.extract_strided_slice %234 {offsets = [0, 0], sizes = [1, 128], strides = [1, 1]} : vector<64x128xf32> to vector<1x128xf32>
    %242 = vector.broadcast %241 : vector<1x128xf32> to vector<64x128xf32>
    %243 = arith.subf %234, %242 : vector<64x128xf32>
    %cst_91 = arith.constant dense<0.000000e+00> : vector<128xf32>
    %244 = vector.multi_reduction <add>, %243, %cst_91 [0] : vector<64x128xf32> to vector<128xf32>
    %245 = vector.shape_cast %244 : vector<128xf32> to vector<1x128xf32>
    %246 = arith.mulf %243, %243 : vector<64x128xf32>
    %cst_92 = arith.constant dense<0.000000e+00> : vector<128xf32>
    %247 = vector.multi_reduction <add>, %246, %cst_92 [0] : vector<64x128xf32> to vector<128xf32>
    %248 = vector.shape_cast %247 : vector<128xf32> to vector<1x128xf32>
    %cst_93 = arith.constant 1.562500e-02 : f32
    %249 = vector.broadcast %cst_93 : f32 to vector<1x128xf32>
    %250 = arith.mulf %245, %249 : vector<1x128xf32>
    %cst_94 = arith.constant 1.562500e-02 : f32
    %251 = vector.broadcast %cst_94 : f32 to vector<1x128xf32>
    %252 = arith.mulf %248, %251 : vector<1x128xf32>
    %253 = arith.mulf %250, %250 : vector<1x128xf32>
    %254 = arith.subf %252, %253 : vector<1x128xf32>
    %cst_95 = arith.constant 0.000000e+00 : f32
    %255 = vector.broadcast %cst_95 : f32 to vector<1x128xf32>
    %256 = arith.maximumf %254, %255 : vector<1x128xf32>
    %257 = arith.addf %250, %241 : vector<1x128xf32>
    %cst_96 = arith.constant 9.99999974E-6 : f32
    %258 = vector.broadcast %cst_96 : f32 to vector<1x128xf32>
    %259 = arith.addf %256, %258 : vector<1x128xf32>
    %260 = math.rsqrt %259 : vector<1x128xf32>
    %261 = arith.mulf %237, %260 : vector<1x128xf32>
    %262 = arith.mulf %257, %261 : vector<1x128xf32>
    %263 = arith.subf %240, %262 : vector<1x128xf32>
    %264 = vector.broadcast %261 : vector<1x128xf32> to vector<64x128xf32>
    %265 = arith.mulf %234, %264 : vector<64x128xf32>
    %266 = vector.broadcast %263 : vector<1x128xf32> to vector<64x128xf32>
    %267 = arith.addf %265, %266 : vector<64x128xf32>
    %268 = arith.addf %267, %191 : vector<64x128xf32>
    %cst_97 = arith.constant 0.000000e+00 : f32
    %269 = vector.broadcast %cst_97 : f32 to vector<64x128xf32>
    %270 = arith.maximumf %268, %269 : vector<64x128xf32>
    %c3_i32 = arith.constant 3 : i32
    %271 = arith.index_cast %c3_i32 : i32 to index
    %c0_98 = arith.constant 0 : index
    %c0_99 = arith.constant 0 : index
    %272 = vector.load %arg5[%271, %c0_98, %c0_99] : memref<5x128x128xf32, #tpu.memory_space<vmem>>, vector<1x128x128xf32>
    %273 = vector.shape_cast %272 : vector<1x128x128xf32> to vector<128x128xf32>
    %cst_100 = arith.constant dense<0.000000e+00> : vector<64x128xf32>
    %274 = tpu.matmul %270, %273, %cst_100 {dimension_numbers = #tpu.dot_dimension_numbers<[1], [0], [0], [1], [0, 0, 1, 1], [], []>} : vector<64x128xf32>, vector<128x128xf32>, vector<64x128xf32> -> vector<64x128xf32>
    %275 = arith.index_cast %c3_i32 : i32 to index
    %c0_101 = arith.constant 0 : index
    %c0_102 = arith.constant 0 : index
    %276 = vector.load %arg6[%275, %c0_101, %c0_102] : memref<5x1x128xf32, #tpu.memory_space<vmem>>, vector<1x1x128xf32>
    %277 = vector.shape_cast %276 : vector<1x1x128xf32> to vector<1x128xf32>
    %278 = arith.index_cast %c3_i32 : i32 to index
    %c0_103 = arith.constant 0 : index
    %c0_104 = arith.constant 0 : index
    %279 = vector.load %arg7[%278, %c0_103, %c0_104] : memref<5x1x128xf32, #tpu.memory_space<vmem>>, vector<1x1x128xf32>
    %280 = vector.shape_cast %279 : vector<1x1x128xf32> to vector<1x128xf32>
    %281 = vector.extract_strided_slice %274 {offsets = [0, 0], sizes = [1, 128], strides = [1, 1]} : vector<64x128xf32> to vector<1x128xf32>
    %282 = vector.broadcast %281 : vector<1x128xf32> to vector<64x128xf32>
    %283 = arith.subf %274, %282 : vector<64x128xf32>
    %cst_105 = arith.constant dense<0.000000e+00> : vector<128xf32>
    %284 = vector.multi_reduction <add>, %283, %cst_105 [0] : vector<64x128xf32> to vector<128xf32>
    %285 = vector.shape_cast %284 : vector<128xf32> to vector<1x128xf32>
    %286 = arith.mulf %283, %283 : vector<64x128xf32>
    %cst_106 = arith.constant dense<0.000000e+00> : vector<128xf32>
    %287 = vector.multi_reduction <add>, %286, %cst_106 [0] : vector<64x128xf32> to vector<128xf32>
    %288 = vector.shape_cast %287 : vector<128xf32> to vector<1x128xf32>
    %cst_107 = arith.constant 1.562500e-02 : f32
    %289 = vector.broadcast %cst_107 : f32 to vector<1x128xf32>
    %290 = arith.mulf %285, %289 : vector<1x128xf32>
    %cst_108 = arith.constant 1.562500e-02 : f32
    %291 = vector.broadcast %cst_108 : f32 to vector<1x128xf32>
    %292 = arith.mulf %288, %291 : vector<1x128xf32>
    %293 = arith.mulf %290, %290 : vector<1x128xf32>
    %294 = arith.subf %292, %293 : vector<1x128xf32>
    %cst_109 = arith.constant 0.000000e+00 : f32
    %295 = vector.broadcast %cst_109 : f32 to vector<1x128xf32>
    %296 = arith.maximumf %294, %295 : vector<1x128xf32>
    %297 = arith.addf %290, %281 : vector<1x128xf32>
    %cst_110 = arith.constant 9.99999974E-6 : f32
    %298 = vector.broadcast %cst_110 : f32 to vector<1x128xf32>
    %299 = arith.addf %296, %298 : vector<1x128xf32>
    %300 = math.rsqrt %299 : vector<1x128xf32>
    %301 = arith.mulf %277, %300 : vector<1x128xf32>
    %302 = arith.mulf %297, %301 : vector<1x128xf32>
    %303 = arith.subf %280, %302 : vector<1x128xf32>
    %304 = vector.broadcast %301 : vector<1x128xf32> to vector<64x128xf32>
    %305 = arith.mulf %274, %304 : vector<64x128xf32>
    %306 = vector.broadcast %303 : vector<1x128xf32> to vector<64x128xf32>
    %307 = arith.addf %305, %306 : vector<64x128xf32>
    %cst_111 = arith.constant 0.000000e+00 : f32
    %308 = vector.broadcast %cst_111 : f32 to vector<64x128xf32>
    %309 = arith.maximumf %307, %308 : vector<64x128xf32>
    %310 = arith.index_cast %c3_i32 : i32 to index
    %c0_112 = arith.constant 0 : index
    %c0_113 = arith.constant 0 : index
    %311 = vector.load %arg8[%310, %c0_112, %c0_113] : memref<5x128x128xf32, #tpu.memory_space<vmem>>, vector<1x128x128xf32>
    %312 = vector.shape_cast %311 : vector<1x128x128xf32> to vector<128x128xf32>
    %cst_114 = arith.constant dense<0.000000e+00> : vector<64x128xf32>
    %313 = tpu.matmul %309, %312, %cst_114 {dimension_numbers = #tpu.dot_dimension_numbers<[1], [0], [0], [1], [0, 0, 1, 1], [], []>} : vector<64x128xf32>, vector<128x128xf32>, vector<64x128xf32> -> vector<64x128xf32>
    %314 = arith.index_cast %c3_i32 : i32 to index
    %c0_115 = arith.constant 0 : index
    %c0_116 = arith.constant 0 : index
    %315 = vector.load %arg9[%314, %c0_115, %c0_116] : memref<5x1x128xf32, #tpu.memory_space<vmem>>, vector<1x1x128xf32>
    %316 = vector.shape_cast %315 : vector<1x1x128xf32> to vector<1x128xf32>
    %317 = arith.index_cast %c3_i32 : i32 to index
    %c0_117 = arith.constant 0 : index
    %c0_118 = arith.constant 0 : index
    %318 = vector.load %arg10[%317, %c0_117, %c0_118] : memref<5x1x128xf32, #tpu.memory_space<vmem>>, vector<1x1x128xf32>
    %319 = vector.shape_cast %318 : vector<1x1x128xf32> to vector<1x128xf32>
    %320 = vector.extract_strided_slice %313 {offsets = [0, 0], sizes = [1, 128], strides = [1, 1]} : vector<64x128xf32> to vector<1x128xf32>
    %321 = vector.broadcast %320 : vector<1x128xf32> to vector<64x128xf32>
    %322 = arith.subf %313, %321 : vector<64x128xf32>
    %cst_119 = arith.constant dense<0.000000e+00> : vector<128xf32>
    %323 = vector.multi_reduction <add>, %322, %cst_119 [0] : vector<64x128xf32> to vector<128xf32>
    %324 = vector.shape_cast %323 : vector<128xf32> to vector<1x128xf32>
    %325 = arith.mulf %322, %322 : vector<64x128xf32>
    %cst_120 = arith.constant dense<0.000000e+00> : vector<128xf32>
    %326 = vector.multi_reduction <add>, %325, %cst_120 [0] : vector<64x128xf32> to vector<128xf32>
    %327 = vector.shape_cast %326 : vector<128xf32> to vector<1x128xf32>
    %cst_121 = arith.constant 1.562500e-02 : f32
    %328 = vector.broadcast %cst_121 : f32 to vector<1x128xf32>
    %329 = arith.mulf %324, %328 : vector<1x128xf32>
    %cst_122 = arith.constant 1.562500e-02 : f32
    %330 = vector.broadcast %cst_122 : f32 to vector<1x128xf32>
    %331 = arith.mulf %327, %330 : vector<1x128xf32>
    %332 = arith.mulf %329, %329 : vector<1x128xf32>
    %333 = arith.subf %331, %332 : vector<1x128xf32>
    %cst_123 = arith.constant 0.000000e+00 : f32
    %334 = vector.broadcast %cst_123 : f32 to vector<1x128xf32>
    %335 = arith.maximumf %333, %334 : vector<1x128xf32>
    %336 = arith.addf %329, %320 : vector<1x128xf32>
    %cst_124 = arith.constant 9.99999974E-6 : f32
    %337 = vector.broadcast %cst_124 : f32 to vector<1x128xf32>
    %338 = arith.addf %335, %337 : vector<1x128xf32>
    %339 = math.rsqrt %338 : vector<1x128xf32>
    %340 = arith.mulf %316, %339 : vector<1x128xf32>
    %341 = arith.mulf %336, %340 : vector<1x128xf32>
    %342 = arith.subf %319, %341 : vector<1x128xf32>
    %343 = vector.broadcast %340 : vector<1x128xf32> to vector<64x128xf32>
    %344 = arith.mulf %313, %343 : vector<64x128xf32>
    %345 = vector.broadcast %342 : vector<1x128xf32> to vector<64x128xf32>
    %346 = arith.addf %344, %345 : vector<64x128xf32>
    %347 = arith.addf %346, %270 : vector<64x128xf32>
    %cst_125 = arith.constant 0.000000e+00 : f32
    %348 = vector.broadcast %cst_125 : f32 to vector<64x128xf32>
    %349 = arith.maximumf %347, %348 : vector<64x128xf32>
    %c4_i32 = arith.constant 4 : i32
    %350 = arith.index_cast %c4_i32 : i32 to index
    %c0_126 = arith.constant 0 : index
    %c0_127 = arith.constant 0 : index
    %351 = vector.load %arg5[%350, %c0_126, %c0_127] : memref<5x128x128xf32, #tpu.memory_space<vmem>>, vector<1x128x128xf32>
    %352 = vector.shape_cast %351 : vector<1x128x128xf32> to vector<128x128xf32>
    %cst_128 = arith.constant dense<0.000000e+00> : vector<64x128xf32>
    %353 = tpu.matmul %349, %352, %cst_128 {dimension_numbers = #tpu.dot_dimension_numbers<[1], [0], [0], [1], [0, 0, 1, 1], [], []>} : vector<64x128xf32>, vector<128x128xf32>, vector<64x128xf32> -> vector<64x128xf32>
    %354 = arith.index_cast %c4_i32 : i32 to index
    %c0_129 = arith.constant 0 : index
    %c0_130 = arith.constant 0 : index
    %355 = vector.load %arg6[%354, %c0_129, %c0_130] : memref<5x1x128xf32, #tpu.memory_space<vmem>>, vector<1x1x128xf32>
    %356 = vector.shape_cast %355 : vector<1x1x128xf32> to vector<1x128xf32>
    %357 = arith.index_cast %c4_i32 : i32 to index
    %c0_131 = arith.constant 0 : index
    %c0_132 = arith.constant 0 : index
    %358 = vector.load %arg7[%357, %c0_131, %c0_132] : memref<5x1x128xf32, #tpu.memory_space<vmem>>, vector<1x1x128xf32>
    %359 = vector.shape_cast %358 : vector<1x1x128xf32> to vector<1x128xf32>
    %360 = vector.extract_strided_slice %353 {offsets = [0, 0], sizes = [1, 128], strides = [1, 1]} : vector<64x128xf32> to vector<1x128xf32>
    %361 = vector.broadcast %360 : vector<1x128xf32> to vector<64x128xf32>
    %362 = arith.subf %353, %361 : vector<64x128xf32>
    %cst_133 = arith.constant dense<0.000000e+00> : vector<128xf32>
    %363 = vector.multi_reduction <add>, %362, %cst_133 [0] : vector<64x128xf32> to vector<128xf32>
    %364 = vector.shape_cast %363 : vector<128xf32> to vector<1x128xf32>
    %365 = arith.mulf %362, %362 : vector<64x128xf32>
    %cst_134 = arith.constant dense<0.000000e+00> : vector<128xf32>
    %366 = vector.multi_reduction <add>, %365, %cst_134 [0] : vector<64x128xf32> to vector<128xf32>
    %367 = vector.shape_cast %366 : vector<128xf32> to vector<1x128xf32>
    %cst_135 = arith.constant 1.562500e-02 : f32
    %368 = vector.broadcast %cst_135 : f32 to vector<1x128xf32>
    %369 = arith.mulf %364, %368 : vector<1x128xf32>
    %cst_136 = arith.constant 1.562500e-02 : f32
    %370 = vector.broadcast %cst_136 : f32 to vector<1x128xf32>
    %371 = arith.mulf %367, %370 : vector<1x128xf32>
    %372 = arith.mulf %369, %369 : vector<1x128xf32>
    %373 = arith.subf %371, %372 : vector<1x128xf32>
    %cst_137 = arith.constant 0.000000e+00 : f32
    %374 = vector.broadcast %cst_137 : f32 to vector<1x128xf32>
    %375 = arith.maximumf %373, %374 : vector<1x128xf32>
    %376 = arith.addf %369, %360 : vector<1x128xf32>
    %cst_138 = arith.constant 9.99999974E-6 : f32
    %377 = vector.broadcast %cst_138 : f32 to vector<1x128xf32>
    %378 = arith.addf %375, %377 : vector<1x128xf32>
    %379 = math.rsqrt %378 : vector<1x128xf32>
    %380 = arith.mulf %356, %379 : vector<1x128xf32>
    %381 = arith.mulf %376, %380 : vector<1x128xf32>
    %382 = arith.subf %359, %381 : vector<1x128xf32>
    %383 = vector.broadcast %380 : vector<1x128xf32> to vector<64x128xf32>
    %384 = arith.mulf %353, %383 : vector<64x128xf32>
    %385 = vector.broadcast %382 : vector<1x128xf32> to vector<64x128xf32>
    %386 = arith.addf %384, %385 : vector<64x128xf32>
    %cst_139 = arith.constant 0.000000e+00 : f32
    %387 = vector.broadcast %cst_139 : f32 to vector<64x128xf32>
    %388 = arith.maximumf %386, %387 : vector<64x128xf32>
    %389 = arith.index_cast %c4_i32 : i32 to index
    %c0_140 = arith.constant 0 : index
    %c0_141 = arith.constant 0 : index
    %390 = vector.load %arg8[%389, %c0_140, %c0_141] : memref<5x128x128xf32, #tpu.memory_space<vmem>>, vector<1x128x128xf32>
    %391 = vector.shape_cast %390 : vector<1x128x128xf32> to vector<128x128xf32>
    %cst_142 = arith.constant dense<0.000000e+00> : vector<64x128xf32>
    %392 = tpu.matmul %388, %391, %cst_142 {dimension_numbers = #tpu.dot_dimension_numbers<[1], [0], [0], [1], [0, 0, 1, 1], [], []>} : vector<64x128xf32>, vector<128x128xf32>, vector<64x128xf32> -> vector<64x128xf32>
    %393 = arith.index_cast %c4_i32 : i32 to index
    %c0_143 = arith.constant 0 : index
    %c0_144 = arith.constant 0 : index
    %394 = vector.load %arg9[%393, %c0_143, %c0_144] : memref<5x1x128xf32, #tpu.memory_space<vmem>>, vector<1x1x128xf32>
    %395 = vector.shape_cast %394 : vector<1x1x128xf32> to vector<1x128xf32>
    %396 = arith.index_cast %c4_i32 : i32 to index
    %c0_145 = arith.constant 0 : index
    %c0_146 = arith.constant 0 : index
    %397 = vector.load %arg10[%396, %c0_145, %c0_146] : memref<5x1x128xf32, #tpu.memory_space<vmem>>, vector<1x1x128xf32>
    %398 = vector.shape_cast %397 : vector<1x1x128xf32> to vector<1x128xf32>
    %399 = vector.extract_strided_slice %392 {offsets = [0, 0], sizes = [1, 128], strides = [1, 1]} : vector<64x128xf32> to vector<1x128xf32>
    %400 = vector.broadcast %399 : vector<1x128xf32> to vector<64x128xf32>
    %401 = arith.subf %392, %400 : vector<64x128xf32>
    %cst_147 = arith.constant dense<0.000000e+00> : vector<128xf32>
    %402 = vector.multi_reduction <add>, %401, %cst_147 [0] : vector<64x128xf32> to vector<128xf32>
    %403 = vector.shape_cast %402 : vector<128xf32> to vector<1x128xf32>
    %404 = arith.mulf %401, %401 : vector<64x128xf32>
    %cst_148 = arith.constant dense<0.000000e+00> : vector<128xf32>
    %405 = vector.multi_reduction <add>, %404, %cst_148 [0] : vector<64x128xf32> to vector<128xf32>
    %406 = vector.shape_cast %405 : vector<128xf32> to vector<1x128xf32>
    %cst_149 = arith.constant 1.562500e-02 : f32
    %407 = vector.broadcast %cst_149 : f32 to vector<1x128xf32>
    %408 = arith.mulf %403, %407 : vector<1x128xf32>
    %cst_150 = arith.constant 1.562500e-02 : f32
    %409 = vector.broadcast %cst_150 : f32 to vector<1x128xf32>
    %410 = arith.mulf %406, %409 : vector<1x128xf32>
    %411 = arith.mulf %408, %408 : vector<1x128xf32>
    %412 = arith.subf %410, %411 : vector<1x128xf32>
    %cst_151 = arith.constant 0.000000e+00 : f32
    %413 = vector.broadcast %cst_151 : f32 to vector<1x128xf32>
    %414 = arith.maximumf %412, %413 : vector<1x128xf32>
    %415 = arith.addf %408, %399 : vector<1x128xf32>
    %cst_152 = arith.constant 9.99999974E-6 : f32
    %416 = vector.broadcast %cst_152 : f32 to vector<1x128xf32>
    %417 = arith.addf %414, %416 : vector<1x128xf32>
    %418 = math.rsqrt %417 : vector<1x128xf32>
    %419 = arith.mulf %395, %418 : vector<1x128xf32>
    %420 = arith.mulf %415, %419 : vector<1x128xf32>
    %421 = arith.subf %398, %420 : vector<1x128xf32>
    %422 = vector.broadcast %419 : vector<1x128xf32> to vector<64x128xf32>
    %423 = arith.mulf %392, %422 : vector<64x128xf32>
    %424 = vector.broadcast %421 : vector<1x128xf32> to vector<64x128xf32>
    %425 = arith.addf %423, %424 : vector<64x128xf32>
    %426 = arith.addf %425, %349 : vector<64x128xf32>
    %cst_153 = arith.constant 0.000000e+00 : f32
    %427 = vector.broadcast %cst_153 : f32 to vector<64x128xf32>
    %428 = arith.maximumf %426, %427 : vector<64x128xf32>
    %c5_i32 = arith.constant 5 : i32
    %c0_154 = arith.constant 0 : index
    %c0_155 = arith.constant 0 : index
    %429 = vector.load %arg11[%c0_154, %c0_155] : memref<128x128xf32, #tpu.memory_space<vmem>>, vector<128x128xf32>
    %cst_156 = arith.constant dense<0.000000e+00> : vector<64x128xf32>
    %430 = tpu.matmul %428, %429, %cst_156 {dimension_numbers = #tpu.dot_dimension_numbers<[1], [0], [0], [1], [0, 0, 1, 1], [], []>} : vector<64x128xf32>, vector<128x128xf32>, vector<64x128xf32> -> vector<64x128xf32>
    %c0_157 = arith.constant 0 : index
    %c0_158 = arith.constant 0 : index
    %431 = vector.load %arg12[%c0_157, %c0_158] : memref<1x128xf32, #tpu.memory_space<vmem>>, vector<1x128xf32>
    %432 = vector.broadcast %431 : vector<1x128xf32> to vector<64x128xf32>
    %433 = arith.addf %430, %432 : vector<64x128xf32>
    %434 = math.tanh %433 : vector<64x128xf32>
    %c0_159 = arith.constant 0 : index
    %c0_160 = arith.constant 0 : index
    %435 = vector.load %arg13[%c0_159, %c0_160] : memref<64x128xf32, #tpu.memory_space<vmem>>, vector<64x128xf32>
    tpu.vector_store %arg13[%c0_159, %c0_160], %434 {strides = array<i32>} : memref<64x128xf32, #tpu.memory_space<vmem>>, vector<64x128xf32>,
    return
  }
  func.func @transform_0(%arg0: i32) -> (i32, i32) {
    %c0_i32 = arith.constant 0 : i32
    %c0_i32_0 = arith.constant 0 : i32
    %c0_i32_1 = arith.constant 0 : i32
    return %c0_i32, %c0_i32_0 : i32, i32
  }
  func.func @transform_1(%arg0: i32) -> (i32, i32) {
    %c0_i32 = arith.constant 0 : i32
    %c0_i32_0 = arith.constant 0 : i32
    %c0_i32_1 = arith.constant 0 : i32
    return %c0_i32, %c0_i32_0 : i32, i32
  }
  func.func @transform_2(%arg0: i32) -> (i32, i32) {
    %c0_i32 = arith.constant 0 : i32
    %c0_i32_0 = arith.constant 0 : i32
    %c0_i32_1 = arith.constant 0 : i32
    return %c0_i32, %c0_i32_0 : i32, i32
  }
  func.func @transform_3(%arg0: i32) -> (i32, i32) {
    %c0_i32 = arith.constant 0 : i32
    %c0_i32_0 = arith.constant 0 : i32
    %c0_i32_1 = arith.constant 0 : i32
    return %c0_i32, %c0_i32_0 : i32, i32
  }
  func.func @transform_4(%arg0: i32) -> (i32, i32, i32) {
    %c0_i32 = arith.constant 0 : i32
    %c0_i32_0 = arith.constant 0 : i32
    %c0_i32_1 = arith.constant 0 : i32
    %c0_i32_2 = arith.constant 0 : i32
    return %c0_i32, %c0_i32_0, %c0_i32_1 : i32, i32, i32
  }
  func.func @transform_5(%arg0: i32) -> (i32, i32, i32) {
    %c0_i32 = arith.constant 0 : i32
    %c0_i32_0 = arith.constant 0 : i32
    %c0_i32_1 = arith.constant 0 : i32
    %c0_i32_2 = arith.constant 0 : i32
    return %c0_i32, %c0_i32_0, %c0_i32_1 : i32, i32, i32
  }
  func.func @transform_6(%arg0: i32) -> (i32, i32, i32) {
    %c0_i32 = arith.constant 0 : i32
    %c0_i32_0 = arith.constant 0 : i32
    %c0_i32_1 = arith.constant 0 : i32
    %c0_i32_2 = arith.constant 0 : i32
    return %c0_i32, %c0_i32_0, %c0_i32_1 : i32, i32, i32
  }
  func.func @transform_7(%arg0: i32) -> (i32, i32, i32) {
    %c0_i32 = arith.constant 0 : i32
    %c0_i32_0 = arith.constant 0 : i32
    %c0_i32_1 = arith.constant 0 : i32
    %c0_i32_2 = arith.constant 0 : i32
    return %c0_i32, %c0_i32_0, %c0_i32_1 : i32, i32, i32
  }
  func.func @transform_8(%arg0: i32) -> (i32, i32, i32) {
    %c0_i32 = arith.constant 0 : i32
    %c0_i32_0 = arith.constant 0 : i32
    %c0_i32_1 = arith.constant 0 : i32
    %c0_i32_2 = arith.constant 0 : i32
    return %c0_i32, %c0_i32_0, %c0_i32_1 : i32, i32, i32
  }
  func.func @transform_9(%arg0: i32) -> (i32, i32, i32) {
    %c0_i32 = arith.constant 0 : i32
    %c0_i32_0 = arith.constant 0 : i32
    %c0_i32_1 = arith.constant 0 : i32
    %c0_i32_2 = arith.constant 0 : i32
    return %c0_i32, %c0_i32_0, %c0_i32_1 : i32, i32, i32
  }
  func.func @transform_10(%arg0: i32) -> (i32, i32) {
    %c0_i32 = arith.constant 0 : i32
    %c0_i32_0 = arith.constant 0 : i32
    %c0_i32_1 = arith.constant 0 : i32
    return %c0_i32, %c0_i32_0 : i32, i32
  }
  func.func @transform_11(%arg0: i32) -> (i32, i32) {
    %c0_i32 = arith.constant 0 : i32
    %c0_i32_0 = arith.constant 0 : i32
    %c0_i32_1 = arith.constant 0 : i32
    return %c0_i32, %c0_i32_0 : i32, i32
  }
  func.func @transform_12(%arg0: i32) -> (i32, i32) {
    %c0_i32 = arith.constant 0 : i32
    %c0_i32_0 = arith.constant 0 : i32
    %c0_i32_1 = arith.constant 0 : i32
    return %c0_i32, %c0_i32_0 : i32, i32
  }
}

</mosaic_0001>

<llo_original>
// kernel: tpu_custom_call.1
$region0: #{tpu_custom_call.1}
  #allocation0 [shape = 'u32[]', space=smem, size = 0x4, offset = 0x4, fixed_abs, tag = 'smem constant byte address 0x4 - core index']
  #allocation1 [shape = 'u32[144,128]{1,0:T(1,128)}', space=vmem, size = 0x12000, scoped, tag = 'internal scratch']
  %s0 = inlined_call_operand.vmem [shape: f32[64,16], index: 0, kind: input, shape index: {}]
  %s1 = inlined_call_operand.vmem [shape: f32[16,128], index: 1, kind: input, shape index: {}]
  %s2 = inlined_call_operand.vmem [shape: f32[1,128], index: 2, kind: input, shape index: {}]
  %s3 = inlined_call_operand.vmem [shape: f32[1,128], index: 3, kind: input, shape index: {}]
  %s4 = inlined_call_operand.hbm [shape: f32[5,128,128], index: 4, kind: input, shape index: {}]
  %s5 = inlined_call_operand.vmem [shape: f32[5,1,128], index: 5, kind: input, shape index: {}]
  %s6 = inlined_call_operand.vmem [shape: f32[5,1,128], index: 6, kind: input, shape index: {}]
  %s7 = inlined_call_operand.hbm [shape: f32[5,128,128], index: 7, kind: input, shape index: {}]
  %s8 = inlined_call_operand.vmem [shape: f32[5,1,128], index: 8, kind: input, shape index: {}]
  %s9 = inlined_call_operand.vmem [shape: f32[5,1,128], index: 9, kind: input, shape index: {}]
  %s10 = inlined_call_operand.hbm [shape: f32[128,128], index: 10, kind: input, shape index: {}]
  %s11 = inlined_call_operand.vmem [shape: f32[1,128], index: 11, kind: input, shape index: {}]
  %s12 = inlined_call_operand.hbm [shape: f32[64,128], index: 12, kind: output, shape index: {}]
  %s13 = sld [smem:[#allocation0]]
  $region70: #{tpu_custom_call.1} parent=0
    _
  %s15 = ssub.s32 1, %s13
  %s16 = scalar_select 0, %s15, %s13
  $region1: #{tpu_custom_call.1} parent=0
    #allocation2 [shape = 'u8[327680]{0}', space=vmem, size = 0x50000, scoped, tag = 'input window, operand 4, single buffered']
    #allocation3 [shape = 's32[1]{0}', space=sflag, size = 0x4, scoped, tag = 'scoped memory for tpu_custom_call.1']
    #allocation4 [shape = 's32[1]{0}', space=sflag, size = 0x4, scoped, tag = 'scoped memory for tpu_custom_call.1']
    #allocation5 [shape = 'u8[327680]{0}', space=vmem, size = 0x50000, scoped, tag = 'input window, operand 7, single buffered']
    #allocation6 [shape = 's32[1]{0}', space=sflag, size = 0x4, scoped, tag = 'scoped memory for tpu_custom_call.1']
    #allocation7 [shape = 'u8[65536]{0}', space=vmem, size = 0x10000, scoped, tag = 'input window, operand 10, single buffered']
    #allocation8 [shape = 'u8[32768]{0}', space=vmem, size = 0x8000, scoped, tag = 'output window, operand 0, single buffered']
    %17 = vsyncpa [#allocation3], 0
    %18 = vsyncpa [#allocation6], 0
    %19 = vsyncpa [#allocation4], 0
    // Predicated region
    $region2: #{tpu_custom_call.1} parent=1 // pred_check
      _
    $region3: #{tpu_custom_call.1} parent=1 // pred_check_branch
      %21 = sbr.rel (0) target = $region5
    $region4: #{tpu_custom_call.1} parent=1 // pred_region
      _
    $region5: #{tpu_custom_call.1} parent=1 // pred_fallthru
      _
    // Predicated region
    $region6: #{tpu_custom_call.1} parent=1 // pred_check
      _
    $region7: #{tpu_custom_call.1} parent=1 // pred_check_branch
      %23 = sbr.rel (0) target = $region9
    $region8: #{tpu_custom_call.1} parent=1 // pred_region
      _
    $region9: #{tpu_custom_call.1} parent=1 // pred_fallthru
      _
    // Predicated region
    $region10: #{tpu_custom_call.1} parent=1 // pred_check
      _
    $region11: #{tpu_custom_call.1} parent=1 // pred_check_branch
      %25 = sbr.rel (0) target = $region13
    $region12: #{tpu_custom_call.1} parent=1 // pred_region
      _
    $region13: #{tpu_custom_call.1} parent=1 // pred_fallthru
      _
    // Predicated region
    $region14: #{tpu_custom_call.1} parent=1 // pred_check
      _
    $region15: #{tpu_custom_call.1} parent=1 // pred_check_branch
      %27 = sbr.rel (0) target = $region17
    $region16: #{tpu_custom_call.1} parent=1 // pred_region
      _
    $region17: #{tpu_custom_call.1} parent=1 // pred_fallthru
      _
    // Predicated region
    $region18: #{tpu_custom_call.1} parent=1 // pred_check
      _
    $region19: #{tpu_custom_call.1} parent=1 // pred_check_branch
      %29 = sbr.rel (0) target = $region21
    $region20: #{tpu_custom_call.1} parent=1 // pred_region
      %s31 = ssub.s32 10240, 10240
      %32 = vsyncadd [#allocation3], %s31
      %s33 = sshll.u32 [#allocation2], 4
      %s34 = int_to_ptr.vmem [resolvable:$true] %s33
      %39 = dma.hbm_to_vmem [thread:$0]  %s4, 10240, %s34, [#allocation3], 128, 128, 8
    $region21: #{tpu_custom_call.1} parent=1 // pred_fallthru
      _
    // Predicated region
    $region22: #{tpu_custom_call.1} parent=1 // pred_check
      _
    $region23: #{tpu_custom_call.1} parent=1 // pred_check_branch
      %41 = sbr.rel (0) target = $region25
    $region24: #{tpu_custom_call.1} parent=1 // pred_region
      _
    $region25: #{tpu_custom_call.1} parent=1 // pred_fallthru
      _
    // Predicated region
    $region26: #{tpu_custom_call.1} parent=1 // pred_check
      _
    $region27: #{tpu_custom_call.1} parent=1 // pred_check_branch
      %43 = sbr.rel (0) target = $region29
    $region28: #{tpu_custom_call.1} parent=1 // pred_region
      _
    $region29: #{tpu_custom_call.1} parent=1 // pred_fallthru
      _
    // Predicated region
    $region30: #{tpu_custom_call.1} parent=1 // pred_check
      _
    $region31: #{tpu_custom_call.1} parent=1 // pred_check_branch
      %45 = sbr.rel (0) target = $region33
    $region32: #{tpu_custom_call.1} parent=1 // pred_region
      %s47 = ssub.s32 10240, 10240
      %48 = vsyncadd [#allocation6], %s47
      %s49 = sshll.u32 [#allocation5], 4
      %s50 = int_to_ptr.vmem [resolvable:$true] %s49
      %55 = dma.hbm_to_vmem [thread:$0]  %s7, 10240, %s50, [#allocation6], 128, 128, 8
    $region33: #{tpu_custom_call.1} parent=1 // pred_fallthru
      _
    // Predicated region
    $region34: #{tpu_custom_call.1} parent=1 // pred_check
      _
    $region35: #{tpu_custom_call.1} parent=1 // pred_check_branch
      %57 = sbr.rel (0) target = $region37
    $region36: #{tpu_custom_call.1} parent=1 // pred_region
      _
    $region37: #{tpu_custom_call.1} parent=1 // pred_fallthru
      _
    // Predicated region
    $region38: #{tpu_custom_call.1} parent=1 // pred_check
      _
    $region39: #{tpu_custom_call.1} parent=1 // pred_check_branch
      %59 = sbr.rel (0) target = $region41
    $region40: #{tpu_custom_call.1} parent=1 // pred_region
      _
    $region41: #{tpu_custom_call.1} parent=1 // pred_fallthru
      _
    // Predicated region
    $region42: #{tpu_custom_call.1} parent=1 // pred_check
      _
    $region43: #{tpu_custom_call.1} parent=1 // pred_check_branch
      %61 = sbr.rel (0) target = $region45
    $region44: #{tpu_custom_call.1} parent=1 // pred_region
      %s63 = ssub.s32 2048, 2048
      %64 = vsyncadd [#allocation6], %s63
      %s65 = sshll.u32 [#allocation7], 4
      %s66 = int_to_ptr.vmem [resolvable:$true] %s65
      %71 = dma.hbm_to_vmem [thread:$0]  %s10, 2048, %s66, [#allocation6], 128, 128, 8
    $region45: #{tpu_custom_call.1} parent=1 // pred_fallthru
      _
    // Predicated region
    $region46: #{tpu_custom_call.1} parent=1 // pred_check
      _
    $region47: #{tpu_custom_call.1} parent=1 // pred_check_branch
      %73 = sbr.rel (0) target = $region49
    $region48: #{tpu_custom_call.1} parent=1 // pred_region
      _
    $region49: #{tpu_custom_call.1} parent=1 // pred_fallthru
      _
    // Predicated region
    $region50: #{tpu_custom_call.1} parent=1 // pred_check
      _
    $region51: #{tpu_custom_call.1} parent=1 // pred_check_branch
      %75 = sbr.rel (0) target = $region53
    $region52: #{tpu_custom_call.1} parent=1 // pred_region
      %76 = dma.done [#allocation3], 10240
    $region53: #{tpu_custom_call.1} parent=1 // pred_fallthru
      _
    // Predicated region
    $region54: #{tpu_custom_call.1} parent=1 // pred_check
      _
    $region55: #{tpu_custom_call.1} parent=1 // pred_check_branch
      %78 = sbr.rel (0) target = $region57
    $region56: #{tpu_custom_call.1} parent=1 // pred_region
      %79 = dma.done [#allocation6], 10240
    $region57: #{tpu_custom_call.1} parent=1 // pred_fallthru
      _
    // Predicated region
    $region58: #{tpu_custom_call.1} parent=1 // pred_check
      _
    $region59: #{tpu_custom_call.1} parent=1 // pred_check_branch
      %81 = sbr.rel (0) target = $region61
    $region60: #{tpu_custom_call.1} parent=1 // pred_region
      %82 = dma.done [#allocation6], 2048
    $region61: #{tpu_custom_call.1} parent=1 // pred_fallthru
      _
    %v83 = vld [vmem:[%s0] sm:$0xff]
    %v84 = vld [vmem:[%s0 + $0x8] sm:$0xff]
    %v85 = vld [vmem:[%s0 + $0x10] sm:$0xff]
    %v86 = vld [vmem:[%s0 + $0x18] sm:$0xff]
    %v87 = vld [vmem:[%s0 + $0x20] sm:$0xff]
    %v88 = vld [vmem:[%s0 + $0x28] sm:$0xff]
    %v89 = vld [vmem:[%s0 + $0x30] sm:$0xff]
    %v90 = vld [vmem:[%s0 + $0x38] sm:$0xff]
    %v91 = vld [vmem:[%s1] sm:$0xff]
    %v92 = vld [vmem:[%s1 + $0x8] sm:$0xff]
    %vm93 = vcmask 130048
    %v95 = vsel %vm93, %v83, 0
    %v98 = vsel %vm93, %v84, 0
    %v101 = vsel %vm93, %v85, 0
    %v104 = vsel %vm93, %v86, 0
    %v107 = vsel %vm93, %v87, 0
    %v110 = vsel %vm93, %v88, 0
    %v113 = vsel %vm93, %v89, 0
    %v116 = vsel %vm93, %v90, 0
    %118 = vmatprep.subr.mxu0 0.0
    %119 = vmatpush1.msra.mxu0 0.0
    %120 = vmatprep.subr.mxu0 0.0
    %121 = vmatpush1.msra.mxu0 0.0
    %122 = vmatprep.subr.mxu0 0.0
    %123 = vmatpush1.msra.mxu0 0.0
    %124 = vmatprep.subr.mxu0 0.0
    %125 = vmatpush1.msra.mxu0 0.0
    %126 = vmatprep.subr.mxu0 0.0
    %127 = vmatpush1.msra.mxu0 0.0
    %128 = vmatprep.subr.mxu0 0.0
    %129 = vmatpush1.msra.mxu0 0.0
    %130 = vmatprep.subr.mxu0 0.0
    %131 = vmatpush1.msra.mxu0 0.0
    %132 = vmatprep.subr.mxu0 0.0
    %133 = vmatpush1.msra.mxu0 0.0
    %134 = vmatprep.subr.mxu0 0.0
    %135 = vmatpush1.msra.mxu0 0.0
    %136 = vmatprep.subr.mxu0 0.0
    %137 = vmatpush1.msra.mxu0 0.0
    %138 = vmatprep.subr.mxu0 0.0
    %139 = vmatpush1.msra.mxu0 0.0
    %140 = vmatprep.subr.mxu0 0.0
    %141 = vmatpush1.msra.mxu0 0.0
    %142 = vmatprep.subr.mxu0 0.0
    %143 = vmatpush1.msra.mxu0 0.0
    %144 = vmatprep.subr.mxu0 0.0
    %145 = vmatpush1.msra.mxu0 0.0
    %146 = vmatprep.subr.mxu0 0.0
    %147 = vmatpush1.msra.mxu0 %v92
    %148 = vmatprep.subr.mxu0 0.0
    %149 = vmatpush1.msra.mxu0 %v91
    %150 = vmatprep.subr.mxu0 0.0
    %151 = vmatpush2.msra.mxu0 0.0
    %152 = vmatprep.subr.mxu0 0.0
    %153 = vmatpush2.msra.mxu0 0.0
    %154 = vmatprep.subr.mxu0 0.0
    %155 = vmatpush2.msra.mxu0 0.0
    %156 = vmatprep.subr.mxu0 0.0
    %157 = vmatpush2.msra.mxu0 0.0
    %158 = vmatprep.subr.mxu0 0.0
    %159 = vmatpush2.msra.mxu0 0.0
    %160 = vmatprep.subr.mxu0 0.0
    %161 = vmatpush2.msra.mxu0 0.0
    %162 = vmatprep.subr.mxu0 0.0
    %163 = vmatpush2.msra.mxu0 0.0
    %164 = vmatprep.subr.mxu0 0.0
    %165 = vmatpush2.msra.mxu0 0.0
    %166 = vmatprep.subr.mxu0 0.0
    %167 = vmatpush2.msra.mxu0 0.0
    %168 = vmatprep.subr.mxu0 0.0
    %169 = vmatpush2.msra.mxu0 0.0
    %170 = vmatprep.subr.mxu0 0.0
    %171 = vmatpush2.msra.mxu0 0.0
    %172 = vmatprep.subr.mxu0 0.0
    %173 = vmatpush2.msra.mxu0 0.0
    %174 = vmatprep.subr.mxu0 0.0
    %175 = vmatpush2.msra.mxu0 0.0
    %176 = vmatprep.subr.mxu0 0.0
    %177 = vmatpush2.msra.mxu0 0.0
    %178 = vmatprep.subr.mxu0 0.0
    %179 = vmatpush2.msra.mxu0 0.0
    %180 = vmatprep.subr.mxu0 0.0
    %181 = vmatpush2.msra.mxu0 0.0
    %182 = vmatprep.mubr.f32.mxu0 0.0
    %183 = vmatmul.mubr.f32.gmra.mxu0 %v95
    %v184 = vpop.f32.mrf.mxu0
    %v185 = vadd.f32 0.0, %v184
    %v186 = vpop.f32.mrf.mxu0
    %187 = vmatprep.mubr.f32.mxu0 0.0
    %188 = vmatmul.mubr.f32.gmra.mxu0 %v98
    %v189 = vpop.f32.mrf.mxu0
    %v190 = vadd.f32 0.0, %v189
    %v191 = vpop.f32.mrf.mxu0
    %192 = vmatprep.mubr.f32.mxu0 0.0
    %193 = vmatmul.mubr.f32.gmra.mxu0 %v101
    %v194 = vpop.f32.mrf.mxu0
    %v195 = vadd.f32 0.0, %v194
    %v196 = vpop.f32.mrf.mxu0
    %197 = vmatprep.mubr.f32.mxu0 0.0
    %198 = vmatmul.mubr.f32.gmra.mxu0 %v104
    %v199 = vpop.f32.mrf.mxu0
    %v200 = vadd.f32 0.0, %v199
    %v201 = vpop.f32.mrf.mxu0
    %202 = vmatprep.mubr.f32.mxu0 0.0
    %203 = vmatmul.mubr.f32.gmra.mxu0 %v107
    %v204 = vpop.f32.mrf.mxu0
    %v205 = vadd.f32 0.0, %v204
    %v206 = vpop.f32.mrf.mxu0
    %207 = vmatprep.mubr.f32.mxu0 0.0
    %208 = vmatmul.mubr.f32.gmra.mxu0 %v110
    %v209 = vpop.f32.mrf.mxu0
    %v210 = vadd.f32 0.0, %v209
    %v211 = vpop.f32.mrf.mxu0
    %212 = vmatprep.mubr.f32.mxu0 0.0
    %213 = vmatmul.mubr.f32.gmra.mxu0 %v113
    %v214 = vpop.f32.mrf.mxu0
    %v215 = vadd.f32 0.0, %v214
    %v216 = vpop.f32.mrf.mxu0
    %217 = vmatprep.mubr.f32.mxu0 0.0
    %218 = vmatmul.mubr.f32.gmra.mxu0 %v116
    %v219 = vpop.f32.mrf.mxu0
    %v220 = vadd.f32 0.0, %v219
    %v221 = vpop.f32.mrf.mxu0
    %222 = vdwg.mxu0
    %v223 = vld [vmem:[%s2] sm:$0x1]
    %v224 = vld [vmem:[%s3] sm:$0x1]
    %v225 = vlaneseq
    %v226 = vshrl.u32 %v225, 7
    %v227 = vsub.s32 0, %v226
    %v228 = vrot.slane %v185, %v227
    %v229 = vsub.f32 %v185, %v228
    %v230 = vsub.f32 %v190, %v228
    %v231 = vsub.f32 %v195, %v228
    %v232 = vsub.f32 %v200, %v228
    %v233 = vsub.f32 %v205, %v228
    %v234 = vsub.f32 %v210, %v228
    %v235 = vsub.f32 %v215, %v228
    %v236 = vsub.f32 %v220, %v228
    %v237 = vadd.f32 %v229, %v230
    %v238 = vadd.f32 %v237, %v231
    %v239 = vadd.f32 %v238, %v232
    %v240 = vadd.f32 %v239, %v233
    %v241 = vadd.f32 %v240, %v234
    %v242 = vadd.f32 %v241, %v235
    %v243 = vadd.f32 %v242, %v236
    %v244 = vrot.slane %v243, 4
    %v245 = vadd.f32 %v243, %v244
    %v246 = vrot.slane %v245, 2
    %v247 = vadd.f32 %v245, %v246
    %v248 = vrot.slane %v247, 1
    %v249 = vadd.f32 %v247, %v248
    %v250 = vmul.f32 %v229, %v229
    %v251 = vmul.f32 %v230, %v230
    %v252 = vmul.f32 %v231, %v231
    %v253 = vmul.f32 %v232, %v232
    %v254 = vmul.f32 %v233, %v233
    %v255 = vmul.f32 %v234, %v234
    %v256 = vmul.f32 %v235, %v235
    %v257 = vmul.f32 %v236, %v236
    %v258 = vadd.f32 %v250, %v251
    %v259 = vadd.f32 %v258, %v252
    %v260 = vadd.f32 %v259, %v253
    %v261 = vadd.f32 %v260, %v254
    %v262 = vadd.f32 %v261, %v255
    %v263 = vadd.f32 %v262, %v256
    %v264 = vadd.f32 %v263, %v257
    %v265 = vrot.slane %v264, 4
    %v266 = vadd.f32 %v264, %v265
    %v267 = vrot.slane %v266, 2
    %v268 = vadd.f32 %v266, %v267
    %v269 = vrot.slane %v268, 1
    %v270 = vadd.f32 %v268, %v269
    %v271 = vmul.f32 %v249, 0.015625
    %v272 = vmul.f32 %v270, 0.015625
    %v273 = vmul.f32 %v271, %v271
    %v274 = vsub.f32 %v272, %v273
    %v275 = vmax.f32 %v274, 0.0
    %v276 = vadd.f32 %v271, %v185
    %v277 = vadd.f32 %v275, 1e-05
    %v278 = vrsqrt.pop %v277
    %v279 = vmul.f32 %v223, %v278
    %v280 = vmul.f32 %v276, %v279
    %v281 = vsub.f32 %v224, %v280
    %v283 = vlaneseq
    %v284 = vshrl.u32 %v283, 7
    %v285 = vsub.s32 0, %v284
    %v286 = vrot.slane %v279, %v285
    %v288 = vmul.f32 %v185, %v286
    %v289 = vmul.f32 %v190, %v286
    %v290 = vmul.f32 %v195, %v286
    %v291 = vmul.f32 %v200, %v286
    %v292 = vmul.f32 %v205, %v286
    %v293 = vmul.f32 %v210, %v286
    %v294 = vmul.f32 %v215, %v286
    %v295 = vmul.f32 %v220, %v286
    %v297 = vlaneseq
    %v298 = vshrl.u32 %v297, 7
    %v299 = vsub.s32 0, %v298
    %v300 = vrot.slane %v281, %v299
    %v302 = vadd.f32 %v288, %v300
    %v303 = vadd.f32 %v289, %v300
    %v304 = vadd.f32 %v290, %v300
    %v305 = vadd.f32 %v291, %v300
    %v306 = vadd.f32 %v292, %v300
    %v307 = vadd.f32 %v293, %v300
    %v308 = vadd.f32 %v294, %v300
    %v309 = vadd.f32 %v295, %v300
    %v310 = vmax.f32 %v302, 0.0
    %v311 = vmax.f32 %v303, 0.0
    %v312 = vmax.f32 %v304, 0.0
    %v313 = vmax.f32 %v305, 0.0
    %v314 = vmax.f32 %v306, 0.0
    %v315 = vmax.f32 %v307, 0.0
    %v316 = vmax.f32 %v308, 0.0
    %v317 = vmax.f32 %v309, 0.0
    %v318 = vld [vmem:[#allocation2] sm:$0xff]
    %v319 = vld [vmem:[#allocation2 + $0x8] sm:$0xff]
    %v320 = vld [vmem:[#allocation2 + $0x10] sm:$0xff]
    %v321 = vld [vmem:[#allocation2 + $0x18] sm:$0xff]
    %v322 = vld [vmem:[#allocation2 + $0x20] sm:$0xff]
    %v323 = vld [vmem:[#allocation2 + $0x28] sm:$0xff]
    %v324 = vld [vmem:[#allocation2 + $0x30] sm:$0xff]
    %v325 = vld [vmem:[#allocation2 + $0x38] sm:$0xff]
    %v326 = vld [vmem:[#allocation2 + $0x40] sm:$0xff]
    %v327 = vld [vmem:[#allocation2 + $0x48] sm:$0xff]
    %v328 = vld [vmem:[#allocation2 + $0x50] sm:$0xff]
    %v329 = vld [vmem:[#allocation2 + $0x58] sm:$0xff]
    %v330 = vld [vmem:[#allocation2 + $0x60] sm:$0xff]
    %v331 = vld [vmem:[#allocation2 + $0x68] sm:$0xff]
    %v332 = vld [vmem:[#allocation2 + $0x70] sm:$0xff]
    %v333 = vld [vmem:[#allocation2 + $0x78] sm:$0xff]
    %334 = vmatprep.subr.mxu0 0.0
    %335 = vmatpush1.msra.mxu0 %v333
    %336 = vmatprep.subr.mxu0 0.0
    %337 = vmatpush1.msra.mxu0 %v332
    %338 = vmatprep.subr.mxu0 0.0
    %339 = vmatpush1.msra.mxu0 %v331
    %340 = vmatprep.subr.mxu0 0.0
    %341 = vmatpush1.msra.mxu0 %v330
    %342 = vmatprep.subr.mxu0 0.0
    %343 = vmatpush1.msra.mxu0 %v329
    %344 = vmatprep.subr.mxu0 0.0
    %345 = vmatpush1.msra.mxu0 %v328
    %346 = vmatprep.subr.mxu0 0.0
    %347 = vmatpush1.msra.mxu0 %v327
    %348 = vmatprep.subr.mxu0 0.0
    %349 = vmatpush1.msra.mxu0 %v326
    %350 = vmatprep.subr.mxu0 0.0
    %351 = vmatpush1.msra.mxu0 %v325
    %352 = vmatprep.subr.mxu0 0.0
    %353 = vmatpush1.msra.mxu0 %v324
    %354 = vmatprep.subr.mxu0 0.0
    %355 = vmatpush1.msra.mxu0 %v323
    %356 = vmatprep.subr.mxu0 0.0
    %357 = vmatpush1.msra.mxu0 %v322
    %358 = vmatprep.subr.mxu0 0.0
    %359 = vmatpush1.msra.mxu0 %v321
    %360 = vmatprep.subr.mxu0 0.0
    %361 = vmatpush1.msra.mxu0 %v320
    %362 = vmatprep.subr.mxu0 0.0
    %363 = vmatpush1.msra.mxu0 %v319
    %364 = vmatprep.subr.mxu0 0.0
    %365 = vmatpush1.msra.mxu0 %v318
    %366 = vmatprep.subr.mxu0 0.0
    %367 = vmatpush2.msra.mxu0 0.0
    %368 = vmatprep.subr.mxu0 0.0
    %369 = vmatpush2.msra.mxu0 0.0
    %370 = vmatprep.subr.mxu0 0.0
    %371 = vmatpush2.msra.mxu0 0.0
    %372 = vmatprep.subr.mxu0 0.0
    %373 = vmatpush2.msra.mxu0 0.0
    %374 = vmatprep.subr.mxu0 0.0
    %375 = vmatpush2.msra.mxu0 0.0
    %376 = vmatprep.subr.mxu0 0.0
    %377 = vmatpush2.msra.mxu0 0.0
    %378 = vmatprep.subr.mxu0 0.0
    %379 = vmatpush2.msra.mxu0 0.0
    %380 = vmatprep.subr.mxu0 0.0
    %381 = vmatpush2.msra.mxu0 0.0
    %382 = vmatprep.subr.mxu0 0.0
    %383 = vmatpush2.msra.mxu0 0.0
    %384 = vmatprep.subr.mxu0 0.0
    %385 = vmatpush2.msra.mxu0 0.0
    %386 = vmatprep.subr.mxu0 0.0
    %387 = vmatpush2.msra.mxu0 0.0
    %388 = vmatprep.subr.mxu0 0.0
    %389 = vmatpush2.msra.mxu0 0.0
    %390 = vmatprep.subr.mxu0 0.0
    %391 = vmatpush2.msra.mxu0 0.0
    %392 = vmatprep.subr.mxu0 0.0
    %393 = vmatpush2.msra.mxu0 0.0
    %394 = vmatprep.subr.mxu0 0.0
    %395 = vmatpush2.msra.mxu0 0.0
    %396 = vmatprep.subr.mxu0 0.0
    %397 = vmatpush2.msra.mxu0 0.0
    %398 = vmatprep.mubr.f32.mxu0 0.0
    %399 = vmatmul.mubr.f32.gmra.mxu0 %v310
    %v400 = vpop.f32.mrf.mxu0
    %v401 = vadd.f32 0.0, %v400
    %v402 = vpop.f32.mrf.mxu0
    %403 = vmatprep.mubr.f32.mxu0 0.0
    %404 = vmatmul.mubr.f32.gmra.mxu0 %v311
    %v405 = vpop.f32.mrf.mxu0
    %v406 = vadd.f32 0.0, %v405
    %v407 = vpop.f32.mrf.mxu0
    %408 = vmatprep.mubr.f32.mxu0 0.0
    %409 = vmatmul.mubr.f32.gmra.mxu0 %v312
    %v410 = vpop.f32.mrf.mxu0
    %v411 = vadd.f32 0.0, %v410
    %v412 = vpop.f32.mrf.mxu0
    %413 = vmatprep.mubr.f32.mxu0 0.0
    %414 = vmatmul.mubr.f32.gmra.mxu0 %v313
    %v415 = vpop.f32.mrf.mxu0
    %v416 = vadd.f32 0.0, %v415
    %v417 = vpop.f32.mrf.mxu0
    %418 = vmatprep.mubr.f32.mxu0 0.0
    %419 = vmatmul.mubr.f32.gmra.mxu0 %v314
    %v420 = vpop.f32.mrf.mxu0
    %v421 = vadd.f32 0.0, %v420
    %v422 = vpop.f32.mrf.mxu0
    %423 = vmatprep.mubr.f32.mxu0 0.0
    %424 = vmatmul.mubr.f32.gmra.mxu0 %v315
    %v425 = vpop.f32.mrf.mxu0
    %v426 = vadd.f32 0.0, %v425
    %v427 = vpop.f32.mrf.mxu0
    %428 = vmatprep.mubr.f32.mxu0 0.0
    %429 = vmatmul.mubr.f32.gmra.mxu0 %v316
    %v430 = vpop.f32.mrf.mxu0
    %v431 = vadd.f32 0.0, %v430
    %v432 = vpop.f32.mrf.mxu0
    %433 = vmatprep.mubr.f32.mxu0 0.0
    %434 = vmatmul.mubr.f32.gmra.mxu0 %v317
    %v435 = vpop.f32.mrf.mxu0
    %v436 = vadd.f32 0.0, %v435
    %v437 = vpop.f32.mrf.mxu0
    %438 = vdwg.mxu0
    %v439 = vld [vmem:[%s5] sm:$0x1]
    %v440 = vld [vmem:[%s6] sm:$0x1]
    %v441 = vlaneseq
    %v442 = vshrl.u32 %v441, 7
    %v443 = vsub.s32 0, %v442
    %v444 = vrot.slane %v401, %v443
    %v445 = vsub.f32 %v401, %v444
    %v446 = vsub.f32 %v406, %v444
    %v447 = vsub.f32 %v411, %v444
    %v448 = vsub.f32 %v416, %v444
    %v449 = vsub.f32 %v421, %v444
    %v450 = vsub.f32 %v426, %v444
    %v451 = vsub.f32 %v431, %v444
    %v452 = vsub.f32 %v436, %v444
    %v453 = vadd.f32 %v445, %v446
    %v454 = vadd.f32 %v453, %v447
    %v455 = vadd.f32 %v454, %v448
    %v456 = vadd.f32 %v455, %v449
    %v457 = vadd.f32 %v456, %v450
    %v458 = vadd.f32 %v457, %v451
    %v459 = vadd.f32 %v458, %v452
    %v460 = vrot.slane %v459, 4
    %v461 = vadd.f32 %v459, %v460
    %v462 = vrot.slane %v461, 2
    %v463 = vadd.f32 %v461, %v462
    %v464 = vrot.slane %v463, 1
    %v465 = vadd.f32 %v463, %v464
    %v466 = vmul.f32 %v445, %v445
    %v467 = vmul.f32 %v446, %v446
    %v468 = vmul.f32 %v447, %v447
    %v469 = vmul.f32 %v448, %v448
    %v470 = vmul.f32 %v449, %v449
    %v471 = vmul.f32 %v450, %v450
    %v472 = vmul.f32 %v451, %v451
    %v473 = vmul.f32 %v452, %v452
    %v474 = vadd.f32 %v466, %v467
    %v475 = vadd.f32 %v474, %v468
    %v476 = vadd.f32 %v475, %v469
    %v477 = vadd.f32 %v476, %v470
    %v478 = vadd.f32 %v477, %v471
    %v479 = vadd.f32 %v478, %v472
    %v480 = vadd.f32 %v479, %v473
    %v481 = vrot.slane %v480, 4
    %v482 = vadd.f32 %v480, %v481
    %v483 = vrot.slane %v482, 2
    %v484 = vadd.f32 %v482, %v483
    %v485 = vrot.slane %v484, 1
    %v486 = vadd.f32 %v484, %v485
    %v487 = vmul.f32 %v465, 0.015625
    %v488 = vmul.f32 %v486, 0.015625
    %v489 = vmul.f32 %v487, %v487
    %v490 = vsub.f32 %v488, %v489
    %v491 = vmax.f32 %v490, 0.0
    %v492 = vadd.f32 %v487, %v401
    %v493 = vadd.f32 %v491, 1e-05
    %v494 = vrsqrt.pop %v493
    %v495 = vmul.f32 %v439, %v494
    %v496 = vmul.f32 %v492, %v495
    %v497 = vsub.f32 %v440, %v496
    %v499 = vlaneseq
    %v500 = vshrl.u32 %v499, 7
    %v501 = vsub.s32 0, %v500
    %v502 = vrot.slane %v495, %v501
    %v504 = vmul.f32 %v401, %v502
    %v505 = vmul.f32 %v406, %v502
    %v506 = vmul.f32 %v411, %v502
    %v507 = vmul.f32 %v416, %v502
    %v508 = vmul.f32 %v421, %v502
    %v509 = vmul.f32 %v426, %v502
    %v510 = vmul.f32 %v431, %v502
    %v511 = vmul.f32 %v436, %v502
    %v513 = vlaneseq
    %v514 = vshrl.u32 %v513, 7
    %v515 = vsub.s32 0, %v514
    %v516 = vrot.slane %v497, %v515
    %v518 = vadd.f32 %v504, %v516
    %v519 = vadd.f32 %v505, %v516
    %v520 = vadd.f32 %v506, %v516
    %v521 = vadd.f32 %v507, %v516
    %v522 = vadd.f32 %v508, %v516
    %v523 = vadd.f32 %v509, %v516
    %v524 = vadd.f32 %v510, %v516
    %v525 = vadd.f32 %v511, %v516
    %v526 = vmax.f32 %v518, 0.0
    %v527 = vmax.f32 %v519, 0.0
    %v528 = vmax.f32 %v520, 0.0
    %v529 = vmax.f32 %v521, 0.0
    %v530 = vmax.f32 %v522, 0.0
    %v531 = vmax.f32 %v523, 0.0
    %v532 = vmax.f32 %v524, 0.0
    %v533 = vmax.f32 %v525, 0.0
    %v534 = vld [vmem:[#allocation5] sm:$0xff]
    %v535 = vld [vmem:[#allocation5 + $0x8] sm:$0xff]
    %v536 = vld [vmem:[#allocation5 + $0x10] sm:$0xff]
    %v537 = vld [vmem:[#allocation5 + $0x18] sm:$0xff]
    %v538 = vld [vmem:[#allocation5 + $0x20] sm:$0xff]
    %v539 = vld [vmem:[#allocation5 + $0x28] sm:$0xff]
    %v540 = vld [vmem:[#allocation5 + $0x30] sm:$0xff]
    %v541 = vld [vmem:[#allocation5 + $0x38] sm:$0xff]
    %v542 = vld [vmem:[#allocation5 + $0x40] sm:$0xff]
    %v543 = vld [vmem:[#allocation5 + $0x48] sm:$0xff]
    %v544 = vld [vmem:[#allocation5 + $0x50] sm:$0xff]
    %v545 = vld [vmem:[#allocation5 + $0x58] sm:$0xff]
    %v546 = vld [vmem:[#allocation5 + $0x60] sm:$0xff]
    %v547 = vld [vmem:[#allocation5 + $0x68] sm:$0xff]
    %v548 = vld [vmem:[#allocation5 + $0x70] sm:$0xff]
    %v549 = vld [vmem:[#allocation5 + $0x78] sm:$0xff]
    %550 = vmatprep.subr.mxu0 0.0
    %551 = vmatpush1.msra.mxu0 %v549
    %552 = vmatprep.subr.mxu0 0.0
    %553 = vmatpush1.msra.mxu0 %v548
    %554 = vmatprep.subr.mxu0 0.0
    %555 = vmatpush1.msra.mxu0 %v547
    %556 = vmatprep.subr.mxu0 0.0
    %557 = vmatpush1.msra.mxu0 %v546
    %558 = vmatprep.subr.mxu0 0.0
    %559 = vmatpush1.msra.mxu0 %v545
    %560 = vmatprep.subr.mxu0 0.0
    %561 = vmatpush1.msra.mxu0 %v544
    %562 = vmatprep.subr.mxu0 0.0
    %563 = vmatpush1.msra.mxu0 %v543
    %564 = vmatprep.subr.mxu0 0.0
    %565 = vmatpush1.msra.mxu0 %v542
    %566 = vmatprep.subr.mxu0 0.0
    %567 = vmatpush1.msra.mxu0 %v541
    %568 = vmatprep.subr.mxu0 0.0
    %569 = vmatpush1.msra.mxu0 %v540
    %570 = vmatprep.subr.mxu0 0.0
    %571 = vmatpush1.msra.mxu0 %v539
    %572 = vmatprep.subr.mxu0 0.0
    %573 = vmatpush1.msra.mxu0 %v538
    %574 = vmatprep.subr.mxu0 0.0
    %575 = vmatpush1.msra.mxu0 %v537
    %576 = vmatprep.subr.mxu0 0.0
    %577 = vmatpush1.msra.mxu0 %v536
    %578 = vmatprep.subr.mxu0 0.0
    %579 = vmatpush1.msra.mxu0 %v535
    %580 = vmatprep.subr.mxu0 0.0
    %581 = vmatpush1.msra.mxu0 %v534
    %582 = vmatprep.subr.mxu0 0.0
    %583 = vmatpush2.msra.mxu0 0.0
    %584 = vmatprep.subr.mxu0 0.0
    %585 = vmatpush2.msra.mxu0 0.0
    %586 = vmatprep.subr.mxu0 0.0
    %587 = vmatpush2.msra.mxu0 0.0
    %588 = vmatprep.subr.mxu0 0.0
    %589 = vmatpush2.msra.mxu0 0.0
    %590 = vmatprep.subr.mxu0 0.0
    %591 = vmatpush2.msra.mxu0 0.0
    %592 = vmatprep.subr.mxu0 0.0
    %593 = vmatpush2.msra.mxu0 0.0
    %594 = vmatprep.subr.mxu0 0.0
    %595 = vmatpush2.msra.mxu0 0.0
    %596 = vmatprep.subr.mxu0 0.0
    %597 = vmatpush2.msra.mxu0 0.0
    %598 = vmatprep.subr.mxu0 0.0
    %599 = vmatpush2.msra.mxu0 0.0
    %600 = vmatprep.subr.mxu0 0.0
    %601 = vmatpush2.msra.mxu0 0.0
    %602 = vmatprep.subr.mxu0 0.0
    %603 = vmatpush2.msra.mxu0 0.0
    %604 = vmatprep.subr.mxu0 0.0
    %605 = vmatpush2.msra.mxu0 0.0
    %606 = vmatprep.subr.mxu0 0.0
    %607 = vmatpush2.msra.mxu0 0.0
    %608 = vmatprep.subr.mxu0 0.0
    %609 = vmatpush2.msra.mxu0 0.0
    %610 = vmatprep.subr.mxu0 0.0
    %611 = vmatpush2.msra.mxu0 0.0
    %612 = vmatprep.subr.mxu0 0.0
    %613 = vmatpush2.msra.mxu0 0.0
    %614 = vmatprep.mubr.f32.mxu0 0.0
    %615 = vmatmul.mubr.f32.gmra.mxu0 %v526
    %v616 = vpop.f32.mrf.mxu0
    %v617 = vadd.f32 0.0, %v616
    %v618 = vpop.f32.mrf.mxu0
    %619 = vmatprep.mubr.f32.mxu0 0.0
    %620 = vmatmul.mubr.f32.gmra.mxu0 %v527
    %v621 = vpop.f32.mrf.mxu0
    %v622 = vadd.f32 0.0, %v621
    %v623 = vpop.f32.mrf.mxu0
    %624 = vmatprep.mubr.f32.mxu0 0.0
    %625 = vmatmul.mubr.f32.gmra.mxu0 %v528
    %v626 = vpop.f32.mrf.mxu0
    %v627 = vadd.f32 0.0, %v626
    %v628 = vpop.f32.mrf.mxu0
    %629 = vmatprep.mubr.f32.mxu0 0.0
    %630 = vmatmul.mubr.f32.gmra.mxu0 %v529
    %v631 = vpop.f32.mrf.mxu0
    %v632 = vadd.f32 0.0, %v631
    %v633 = vpop.f32.mrf.mxu0
    %634 = vmatprep.mubr.f32.mxu0 0.0
    %635 = vmatmul.mubr.f32.gmra.mxu0 %v530
    %v636 = vpop.f32.mrf.mxu0
    %v637 = vadd.f32 0.0, %v636
    %v638 = vpop.f32.mrf.mxu0
    %639 = vmatprep.mubr.f32.mxu0 0.0
    %640 = vmatmul.mubr.f32.gmra.mxu0 %v531
    %v641 = vpop.f32.mrf.mxu0
    %v642 = vadd.f32 0.0, %v641
    %v643 = vpop.f32.mrf.mxu0
    %644 = vmatprep.mubr.f32.mxu0 0.0
    %645 = vmatmul.mubr.f32.gmra.mxu0 %v532
    %v646 = vpop.f32.mrf.mxu0
    %v647 = vadd.f32 0.0, %v646
    %v648 = vpop.f32.mrf.mxu0
    %649 = vmatprep.mubr.f32.mxu0 0.0
    %650 = vmatmul.mubr.f32.gmra.mxu0 %v533
    %v651 = vpop.f32.mrf.mxu0
    %v652 = vadd.f32 0.0, %v651
    %v653 = vpop.f32.mrf.mxu0
    %654 = vdwg.mxu0
    %v655 = vld [vmem:[%s8] sm:$0x1]
    %v656 = vld [vmem:[%s9] sm:$0x1]
    %v657 = vlaneseq
    %v658 = vshrl.u32 %v657, 7
    %v659 = vsub.s32 0, %v658
    %v660 = vrot.slane %v617, %v659
    %v661 = vsub.f32 %v617, %v660
    %v662 = vsub.f32 %v622, %v660
    %v663 = vsub.f32 %v627, %v660
    %v664 = vsub.f32 %v632, %v660
    %v665 = vsub.f32 %v637, %v660
    %v666 = vsub.f32 %v642, %v660
    %v667 = vsub.f32 %v647, %v660
    %v668 = vsub.f32 %v652, %v660
    %v669 = vadd.f32 %v661, %v662
    %v670 = vadd.f32 %v669, %v663
    %v671 = vadd.f32 %v670, %v664
    %v672 = vadd.f32 %v671, %v665
    %v673 = vadd.f32 %v672, %v666
    %v674 = vadd.f32 %v673, %v667
    %v675 = vadd.f32 %v674, %v668
    %v676 = vrot.slane %v675, 4
    %v677 = vadd.f32 %v675, %v676
    %v678 = vrot.slane %v677, 2
    %v679 = vadd.f32 %v677, %v678
    %v680 = vrot.slane %v679, 1
    %v681 = vadd.f32 %v679, %v680
    %v682 = vmul.f32 %v661, %v661
    %v683 = vmul.f32 %v662, %v662
    %v684 = vmul.f32 %v663, %v663
    %v685 = vmul.f32 %v664, %v664
    %v686 = vmul.f32 %v665, %v665
    %v687 = vmul.f32 %v666, %v666
    %v688 = vmul.f32 %v667, %v667
    %v689 = vmul.f32 %v668, %v668
    %v690 = vadd.f32 %v682, %v683
    %v691 = vadd.f32 %v690, %v684
    %v692 = vadd.f32 %v691, %v685
    %v693 = vadd.f32 %v692, %v686
    %v694 = vadd.f32 %v693, %v687
    %v695 = vadd.f32 %v694, %v688
    %v696 = vadd.f32 %v695, %v689
    %v697 = vrot.slane %v696, 4
    %v698 = vadd.f32 %v696, %v697
    %v699 = vrot.slane %v698, 2
    %v700 = vadd.f32 %v698, %v699
    %v701 = vrot.slane %v700, 1
    %v702 = vadd.f32 %v700, %v701
    %v703 = vmul.f32 %v681, 0.015625
    %v704 = vmul.f32 %v702, 0.015625
    %v705 = vmul.f32 %v703, %v703
    %v706 = vsub.f32 %v704, %v705
    %v707 = vmax.f32 %v706, 0.0
    %v708 = vadd.f32 %v703, %v617
    %v709 = vadd.f32 %v707, 1e-05
    %v710 = vrsqrt.pop %v709
    %v711 = vmul.f32 %v655, %v710
    %v712 = vmul.f32 %v708, %v711
    %v713 = vsub.f32 %v656, %v712
    %v715 = vlaneseq
    %v716 = vshrl.u32 %v715, 7
    %v717 = vsub.s32 0, %v716
    %v718 = vrot.slane %v711, %v717
    %v720 = vmul.f32 %v617, %v718
    %v721 = vmul.f32 %v622, %v718
    %v722 = vmul.f32 %v627, %v718
    %v723 = vmul.f32 %v632, %v718
    %v724 = vmul.f32 %v637, %v718
    %v725 = vmul.f32 %v642, %v718
    %v726 = vmul.f32 %v647, %v718
    %v727 = vmul.f32 %v652, %v718
    %v729 = vlaneseq
    %v730 = vshrl.u32 %v729, 7
    %v731 = vsub.s32 0, %v730
    %v732 = vrot.slane %v713, %v731
    %v734 = vadd.f32 %v720, %v732
    %v735 = vadd.f32 %v721, %v732
    %v736 = vadd.f32 %v722, %v732
    %v737 = vadd.f32 %v723, %v732
    %v738 = vadd.f32 %v724, %v732
    %v739 = vadd.f32 %v725, %v732
    %v740 = vadd.f32 %v726, %v732
    %v741 = vadd.f32 %v727, %v732
    %v742 = vadd.f32 %v734, %v310
    %v743 = vadd.f32 %v735, %v311
    %v744 = vadd.f32 %v736, %v312
    %v745 = vadd.f32 %v737, %v313
    %v746 = vadd.f32 %v738, %v314
    %v747 = vadd.f32 %v739, %v315
    %v748 = vadd.f32 %v740, %v316
    %v749 = vadd.f32 %v741, %v317
    %v750 = vmax.f32 %v742, 0.0
    %v751 = vmax.f32 %v743, 0.0
    %v752 = vmax.f32 %v744, 0.0
    %v753 = vmax.f32 %v745, 0.0
    %v754 = vmax.f32 %v746, 0.0
    %v755 = vmax.f32 %v747, 0.0
    %v756 = vmax.f32 %v748, 0.0
    %v757 = vmax.f32 %v749, 0.0
    %s758 = scalar_lea.vmem [#allocation2], 128
    %v759 = vld [vmem:[%s758] sm:$0xff]
    %v760 = vld [vmem:[%s758 + $0x8] sm:$0xff]
    %v761 = vld [vmem:[%s758 + $0x10] sm:$0xff]
    %v762 = vld [vmem:[%s758 + $0x18] sm:$0xff]
    %v763 = vld [vmem:[%s758 + $0x20] sm:$0xff]
    %v764 = vld [vmem:[%s758 + $0x28] sm:$0xff]
    %v765 = vld [vmem:[%s758 + $0x30] sm:$0xff]
    %v766 = vld [vmem:[%s758 + $0x38] sm:$0xff]
    %v767 = vld [vmem:[%s758 + $0x40] sm:$0xff]
    %v768 = vld [vmem:[%s758 + $0x48] sm:$0xff]
    %v769 = vld [vmem:[%s758 + $0x50] sm:$0xff]
    %v770 = vld [vmem:[%s758 + $0x58] sm:$0xff]
    %v771 = vld [vmem:[%s758 + $0x60] sm:$0xff]
    %v772 = vld [vmem:[%s758 + $0x68] sm:$0xff]
    %v773 = vld [vmem:[%s758 + $0x70] sm:$0xff]
    %v774 = vld [vmem:[%s758 + $0x78] sm:$0xff]
    %775 = vmatprep.subr.mxu0 0.0
    %776 = vmatpush1.msra.mxu0 %v774
    %777 = vmatprep.subr.mxu0 0.0
    %778 = vmatpush1.msra.mxu0 %v773
    %779 = vmatprep.subr.mxu0 0.0
    %780 = vmatpush1.msra.mxu0 %v772
    %781 = vmatprep.subr.mxu0 0.0
    %782 = vmatpush1.msra.mxu0 %v771
    %783 = vmatprep.subr.mxu0 0.0
    %784 = vmatpush1.msra.mxu0 %v770
    %785 = vmatprep.subr.mxu0 0.0
    %786 = vmatpush1.msra.mxu0 %v769
    %787 = vmatprep.subr.mxu0 0.0
    %788 = vmatpush1.msra.mxu0 %v768
    %789 = vmatprep.subr.mxu0 0.0
    %790 = vmatpush1.msra.mxu0 %v767
    %791 = vmatprep.subr.mxu0 0.0
    %792 = vmatpush1.msra.mxu0 %v766
    %793 = vmatprep.subr.mxu0 0.0
    %794 = vmatpush1.msra.mxu0 %v765
    %795 = vmatprep.subr.mxu0 0.0
    %796 = vmatpush1.msra.mxu0 %v764
    %797 = vmatprep.subr.mxu0 0.0
    %798 = vmatpush1.msra.mxu0 %v763
    %799 = vmatprep.subr.mxu0 0.0
    %800 = vmatpush1.msra.mxu0 %v762
    %801 = vmatprep.subr.mxu0 0.0
    %802 = vmatpush1.msra.mxu0 %v761
    %803 = vmatprep.subr.mxu0 0.0
    %804 = vmatpush1.msra.mxu0 %v760
    %805 = vmatprep.subr.mxu0 0.0
    %806 = vmatpush1.msra.mxu0 %v759
    %807 = vmatprep.subr.mxu0 0.0
    %808 = vmatpush2.msra.mxu0 0.0
    %809 = vmatprep.subr.mxu0 0.0
    %810 = vmatpush2.msra.mxu0 0.0
    %811 = vmatprep.subr.mxu0 0.0
    %812 = vmatpush2.msra.mxu0 0.0
    %813 = vmatprep.subr.mxu0 0.0
    %814 = vmatpush2.msra.mxu0 0.0
    %815 = vmatprep.subr.mxu0 0.0
    %816 = vmatpush2.msra.mxu0 0.0
    %817 = vmatprep.subr.mxu0 0.0
    %818 = vmatpush2.msra.mxu0 0.0
    %819 = vmatprep.subr.mxu0 0.0
    %820 = vmatpush2.msra.mxu0 0.0
    %821 = vmatprep.subr.mxu0 0.0
    %822 = vmatpush2.msra.mxu0 0.0
    %823 = vmatprep.subr.mxu0 0.0
    %824 = vmatpush2.msra.mxu0 0.0
    %825 = vmatprep.subr.mxu0 0.0
    %826 = vmatpush2.msra.mxu0 0.0
    %827 = vmatprep.subr.mxu0 0.0
    %828 = vmatpush2.msra.mxu0 0.0
    %829 = vmatprep.subr.mxu0 0.0
    %830 = vmatpush2.msra.mxu0 0.0
    %831 = vmatprep.subr.mxu0 0.0
    %832 = vmatpush2.msra.mxu0 0.0
    %833 = vmatprep.subr.mxu0 0.0
    %834 = vmatpush2.msra.mxu0 0.0
    %835 = vmatprep.subr.mxu0 0.0
    %836 = vmatpush2.msra.mxu0 0.0
    %837 = vmatprep.subr.mxu0 0.0
    %838 = vmatpush2.msra.mxu0 0.0
    %839 = vmatprep.mubr.f32.mxu0 0.0
    %840 = vmatmul.mubr.f32.gmra.mxu0 %v750
    %v841 = vpop.f32.mrf.mxu0
    %v842 = vadd.f32 0.0, %v841
    %v843 = vpop.f32.mrf.mxu0
    %844 = vmatprep.mubr.f32.mxu0 0.0
    %845 = vmatmul.mubr.f32.gmra.mxu0 %v751
    %v846 = vpop.f32.mrf.mxu0
    %v847 = vadd.f32 0.0, %v846
    %v848 = vpop.f32.mrf.mxu0
    %849 = vmatprep.mubr.f32.mxu0 0.0
    %850 = vmatmul.mubr.f32.gmra.mxu0 %v752
    %v851 = vpop.f32.mrf.mxu0
    %v852 = vadd.f32 0.0, %v851
    %v853 = vpop.f32.mrf.mxu0
    %854 = vmatprep.mubr.f32.mxu0 0.0
    %855 = vmatmul.mubr.f32.gmra.mxu0 %v753
    %v856 = vpop.f32.mrf.mxu0
    %v857 = vadd.f32 0.0, %v856
    %v858 = vpop.f32.mrf.mxu0
    %859 = vmatprep.mubr.f32.mxu0 0.0
    %860 = vmatmul.mubr.f32.gmra.mxu0 %v754
    %v861 = vpop.f32.mrf.mxu0
    %v862 = vadd.f32 0.0, %v861
    %v863 = vpop.f32.mrf.mxu0
    %864 = vmatprep.mubr.f32.mxu0 0.0
    %865 = vmatmul.mubr.f32.gmra.mxu0 %v755
    %v866 = vpop.f32.mrf.mxu0
    %v867 = vadd.f32 0.0, %v866
    %v868 = vpop.f32.mrf.mxu0
    %869 = vmatprep.mubr.f32.mxu0 0.0
    %870 = vmatmul.mubr.f32.gmra.mxu0 %v756
    %v871 = vpop.f32.mrf.mxu0
    %v872 = vadd.f32 0.0, %v871
    %v873 = vpop.f32.mrf.mxu0
    %874 = vmatprep.mubr.f32.mxu0 0.0
    %875 = vmatmul.mubr.f32.gmra.mxu0 %v757
    %v876 = vpop.f32.mrf.mxu0
    %v877 = vadd.f32 0.0, %v876
    %v878 = vpop.f32.mrf.mxu0
    %879 = vdwg.mxu0
    %s880 = scalar_lea.vmem %s5, 1
    %v881 = vld [vmem:[%s880] sm:$0x1]
    %s882 = scalar_lea.vmem %s6, 1
    %v883 = vld [vmem:[%s882] sm:$0x1]
    %v884 = vlaneseq
    %v885 = vshrl.u32 %v884, 7
    %v886 = vsub.s32 0, %v885
    %v887 = vrot.slane %v842, %v886
    %v888 = vsub.f32 %v842, %v887
    %v889 = vsub.f32 %v847, %v887
    %v890 = vsub.f32 %v852, %v887
    %v891 = vsub.f32 %v857, %v887
    %v892 = vsub.f32 %v862, %v887
    %v893 = vsub.f32 %v867, %v887
    %v894 = vsub.f32 %v872, %v887
    %v895 = vsub.f32 %v877, %v887
    %v896 = vadd.f32 %v888, %v889
    %v897 = vadd.f32 %v896, %v890
    %v898 = vadd.f32 %v897, %v891
    %v899 = vadd.f32 %v898, %v892
    %v900 = vadd.f32 %v899, %v893
    %v901 = vadd.f32 %v900, %v894
    %v902 = vadd.f32 %v901, %v895
    %v903 = vrot.slane %v902, 4
    %v904 = vadd.f32 %v902, %v903
    %v905 = vrot.slane %v904, 2
    %v906 = vadd.f32 %v904, %v905
    %v907 = vrot.slane %v906, 1
    %v908 = vadd.f32 %v906, %v907
    %v909 = vmul.f32 %v888, %v888
    %v910 = vmul.f32 %v889, %v889
    %v911 = vmul.f32 %v890, %v890
    %v912 = vmul.f32 %v891, %v891
    %v913 = vmul.f32 %v892, %v892
    %v914 = vmul.f32 %v893, %v893
    %v915 = vmul.f32 %v894, %v894
    %v916 = vmul.f32 %v895, %v895
    %v917 = vadd.f32 %v909, %v910
    %v918 = vadd.f32 %v917, %v911
    %v919 = vadd.f32 %v918, %v912
    %v920 = vadd.f32 %v919, %v913
    %v921 = vadd.f32 %v920, %v914
    %v922 = vadd.f32 %v921, %v915
    %v923 = vadd.f32 %v922, %v916
    %v924 = vrot.slane %v923, 4
    %v925 = vadd.f32 %v923, %v924
    %v926 = vrot.slane %v925, 2
    %v927 = vadd.f32 %v925, %v926
    %v928 = vrot.slane %v927, 1
    %v929 = vadd.f32 %v927, %v928
    %v930 = vmul.f32 %v908, 0.015625
    %v931 = vmul.f32 %v929, 0.015625
    %v932 = vmul.f32 %v930, %v930
    %v933 = vsub.f32 %v931, %v932
    %v934 = vmax.f32 %v933, 0.0
    %v935 = vadd.f32 %v930, %v842
    %v936 = vadd.f32 %v934, 1e-05
    %v937 = vrsqrt.pop %v936
    %v938 = vmul.f32 %v881, %v937
    %v939 = vmul.f32 %v935, %v938
    %v940 = vsub.f32 %v883, %v939
    %v942 = vlaneseq
    %v943 = vshrl.u32 %v942, 7
    %v944 = vsub.s32 0, %v943
    %v945 = vrot.slane %v938, %v944
    %v947 = vmul.f32 %v842, %v945
    %v948 = vmul.f32 %v847, %v945
    %v949 = vmul.f32 %v852, %v945
    %v950 = vmul.f32 %v857, %v945
    %v951 = vmul.f32 %v862, %v945
    %v952 = vmul.f32 %v867, %v945
    %v953 = vmul.f32 %v872, %v945
    %v954 = vmul.f32 %v877, %v945
    %v956 = vlaneseq
    %v957 = vshrl.u32 %v956, 7
    %v958 = vsub.s32 0, %v957
    %v959 = vrot.slane %v940, %v958
    %v961 = vadd.f32 %v947, %v959
    %v962 = vadd.f32 %v948, %v959
    %v963 = vadd.f32 %v949, %v959
    %v964 = vadd.f32 %v950, %v959
    %v965 = vadd.f32 %v951, %v959
    %v966 = vadd.f32 %v952, %v959
    %v967 = vadd.f32 %v953, %v959
    %v968 = vadd.f32 %v954, %v959
    %v969 = vmax.f32 %v961, 0.0
    %v970 = vmax.f32 %v962, 0.0
    %v971 = vmax.f32 %v963, 0.0
    %v972 = vmax.f32 %v964, 0.0
    %v973 = vmax.f32 %v965, 0.0
    %v974 = vmax.f32 %v966, 0.0
    %v975 = vmax.f32 %v967, 0.0
    %v976 = vmax.f32 %v968, 0.0
    %s977 = scalar_lea.vmem [#allocation5], 128
    %v978 = vld [vmem:[%s977] sm:$0xff]
    %v979 = vld [vmem:[%s977 + $0x8] sm:$0xff]
    %v980 = vld [vmem:[%s977 + $0x10] sm:$0xff]
    %v981 = vld [vmem:[%s977 + $0x18] sm:$0xff]
    %v982 = vld [vmem:[%s977 + $0x20] sm:$0xff]
    %v983 = vld [vmem:[%s977 + $0x28] sm:$0xff]
    %v984 = vld [vmem:[%s977 + $0x30] sm:$0xff]
    %v985 = vld [vmem:[%s977 + $0x38] sm:$0xff]
    %v986 = vld [vmem:[%s977 + $0x40] sm:$0xff]
    %v987 = vld [vmem:[%s977 + $0x48] sm:$0xff]
    %v988 = vld [vmem:[%s977 + $0x50] sm:$0xff]
    %v989 = vld [vmem:[%s977 + $0x58] sm:$0xff]
    %v990 = vld [vmem:[%s977 + $0x60] sm:$0xff]
    %v991 = vld [vmem:[%s977 + $0x68] sm:$0xff]
    %v992 = vld [vmem:[%s977 + $0x70] sm:$0xff]
    %v993 = vld [vmem:[%s977 + $0x78] sm:$0xff]
    %994 = vmatprep.subr.mxu0 0.0
    %995 = vmatpush1.msra.mxu0 %v993
    %996 = vmatprep.subr.mxu0 0.0
    %997 = vmatpush1.msra.mxu0 %v992
    %998 = vmatprep.subr.mxu0 0.0
    %999 = vmatpush1.msra.mxu0 %v991
    %1000 = vmatprep.subr.mxu0 0.0
    %1001 = vmatpush1.msra.mxu0 %v990
    %1002 = vmatprep.subr.mxu0 0.0
    %1003 = vmatpush1.msra.mxu0 %v989
    %1004 = vmatprep.subr.mxu0 0.0
    %1005 = vmatpush1.msra.mxu0 %v988
    %1006 = vmatprep.subr.mxu0 0.0
    %1007 = vmatpush1.msra.mxu0 %v987
    %1008 = vmatprep.subr.mxu0 0.0
    %1009 = vmatpush1.msra.mxu0 %v986
    %1010 = vmatprep.subr.mxu0 0.0
    %1011 = vmatpush1.msra.mxu0 %v985
    %1012 = vmatprep.subr.mxu0 0.0
    %1013 = vmatpush1.msra.mxu0 %v984
    %1014 = vmatprep.subr.mxu0 0.0
    %1015 = vmatpush1.msra.mxu0 %v983
    %1016 = vmatprep.subr.mxu0 0.0
    %1017 = vmatpush1.msra.mxu0 %v982
    %1018 = vmatprep.subr.mxu0 0.0
    %1019 = vmatpush1.msra.mxu0 %v981
    %1020 = vmatprep.subr.mxu0 0.0
    %1021 = vmatpush1.msra.mxu0 %v980
    %1022 = vmatprep.subr.mxu0 0.0
    %1023 = vmatpush1.msra.mxu0 %v979
    %1024 = vmatprep.subr.mxu0 0.0
    %1025 = vmatpush1.msra.mxu0 %v978
    %1026 = vmatprep.subr.mxu0 0.0
    %1027 = vmatpush2.msra.mxu0 0.0
    %1028 = vmatprep.subr.mxu0 0.0
    %1029 = vmatpush2.msra.mxu0 0.0
    %1030 = vmatprep.subr.mxu0 0.0
    %1031 = vmatpush2.msra.mxu0 0.0
    %1032 = vmatprep.subr.mxu0 0.0
    %1033 = vmatpush2.msra.mxu0 0.0
    %1034 = vmatprep.subr.mxu0 0.0
    %1035 = vmatpush2.msra.mxu0 0.0
    %1036 = vmatprep.subr.mxu0 0.0
    %1037 = vmatpush2.msra.mxu0 0.0
    %1038 = vmatprep.subr.mxu0 0.0
    %1039 = vmatpush2.msra.mxu0 0.0
    %1040 = vmatprep.subr.mxu0 0.0
    %1041 = vmatpush2.msra.mxu0 0.0
    %1042 = vmatprep.subr.mxu0 0.0
    %1043 = vmatpush2.msra.mxu0 0.0
    %1044 = vmatprep.subr.mxu0 0.0
    %1045 = vmatpush2.msra.mxu0 0.0
    %1046 = vmatprep.subr.mxu0 0.0
    %1047 = vmatpush2.msra.mxu0 0.0
    %1048 = vmatprep.subr.mxu0 0.0
    %1049 = vmatpush2.msra.mxu0 0.0
    %1050 = vmatprep.subr.mxu0 0.0
    %1051 = vmatpush2.msra.mxu0 0.0
    %1052 = vmatprep.subr.mxu0 0.0
    %1053 = vmatpush2.msra.mxu0 0.0
    %1054 = vmatprep.subr.mxu0 0.0
    %1055 = vmatpush2.msra.mxu0 0.0
    %1056 = vmatprep.subr.mxu0 0.0
    %1057 = vmatpush2.msra.mxu0 0.0
    %1058 = vmatprep.mubr.f32.mxu0 0.0
    %1059 = vmatmul.mubr.f32.gmra.mxu0 %v969
    %v1060 = vpop.f32.mrf.mxu0
    %v1061 = vadd.f32 0.0, %v1060
    %v1062 = vpop.f32.mrf.mxu0
    %1063 = vmatprep.mubr.f32.mxu0 0.0
    %1064 = vmatmul.mubr.f32.gmra.mxu0 %v970
    %v1065 = vpop.f32.mrf.mxu0
    %v1066 = vadd.f32 0.0, %v1065
    %v1067 = vpop.f32.mrf.mxu0
    %1068 = vmatprep.mubr.f32.mxu0 0.0
    %1069 = vmatmul.mubr.f32.gmra.mxu0 %v971
    %v1070 = vpop.f32.mrf.mxu0
    %v1071 = vadd.f32 0.0, %v1070
    %v1072 = vpop.f32.mrf.mxu0
    %1073 = vmatprep.mubr.f32.mxu0 0.0
    %1074 = vmatmul.mubr.f32.gmra.mxu0 %v972
    %v1075 = vpop.f32.mrf.mxu0
    %v1076 = vadd.f32 0.0, %v1075
    %v1077 = vpop.f32.mrf.mxu0
    %1078 = vmatprep.mubr.f32.mxu0 0.0
    %1079 = vmatmul.mubr.f32.gmra.mxu0 %v973
    %v1080 = vpop.f32.mrf.mxu0
    %v1081 = vadd.f32 0.0, %v1080
    %v1082 = vpop.f32.mrf.mxu0
    %1083 = vmatprep.mubr.f32.mxu0 0.0
    %1084 = vmatmul.mubr.f32.gmra.mxu0 %v974
    %v1085 = vpop.f32.mrf.mxu0
    %v1086 = vadd.f32 0.0, %v1085
    %v1087 = vpop.f32.mrf.mxu0
    %1088 = vmatprep.mubr.f32.mxu0 0.0
    %1089 = vmatmul.mubr.f32.gmra.mxu0 %v975
    %v1090 = vpop.f32.mrf.mxu0
    %v1091 = vadd.f32 0.0, %v1090
    %v1092 = vpop.f32.mrf.mxu0
    %1093 = vmatprep.mubr.f32.mxu0 0.0
    %1094 = vmatmul.mubr.f32.gmra.mxu0 %v976
    %v1095 = vpop.f32.mrf.mxu0
    %v1096 = vadd.f32 0.0, %v1095
    %v1097 = vpop.f32.mrf.mxu0
    %1098 = vdwg.mxu0
    %s1099 = scalar_lea.vmem %s8, 1
    %v1100 = vld [vmem:[%s1099] sm:$0x1]
    %s1101 = scalar_lea.vmem %s9, 1
    %v1102 = vld [vmem:[%s1101] sm:$0x1]
    %v1103 = vlaneseq
    %v1104 = vshrl.u32 %v1103, 7
    %v1105 = vsub.s32 0, %v1104
    %v1106 = vrot.slane %v1061, %v1105
    %v1107 = vsub.f32 %v1061, %v1106
    %v1108 = vsub.f32 %v1066, %v1106
    %v1109 = vsub.f32 %v1071, %v1106
    %v1110 = vsub.f32 %v1076, %v1106
    %v1111 = vsub.f32 %v1081, %v1106
    %v1112 = vsub.f32 %v1086, %v1106
    %v1113 = vsub.f32 %v1091, %v1106
    %v1114 = vsub.f32 %v1096, %v1106
    %v1115 = vadd.f32 %v1107, %v1108
    %v1116 = vadd.f32 %v1115, %v1109
    %v1117 = vadd.f32 %v1116, %v1110
    %v1118 = vadd.f32 %v1117, %v1111
    %v1119 = vadd.f32 %v1118, %v1112
    %v1120 = vadd.f32 %v1119, %v1113
    %v1121 = vadd.f32 %v1120, %v1114
    %v1122 = vrot.slane %v1121, 4
    %v1123 = vadd.f32 %v1121, %v1122
    %v1124 = vrot.slane %v1123, 2
    %v1125 = vadd.f32 %v1123, %v1124
    %v1126 = vrot.slane %v1125, 1
    %v1127 = vadd.f32 %v1125, %v1126
    %v1128 = vmul.f32 %v1107, %v1107
    %v1129 = vmul.f32 %v1108, %v1108
    %v1130 = vmul.f32 %v1109, %v1109
    %v1131 = vmul.f32 %v1110, %v1110
    %v1132 = vmul.f32 %v1111, %v1111
    %v1133 = vmul.f32 %v1112, %v1112
    %v1134 = vmul.f32 %v1113, %v1113
    %v1135 = vmul.f32 %v1114, %v1114
    %v1136 = vadd.f32 %v1128, %v1129
    %v1137 = vadd.f32 %v1136, %v1130
    %v1138 = vadd.f32 %v1137, %v1131
    %v1139 = vadd.f32 %v1138, %v1132
    %v1140 = vadd.f32 %v1139, %v1133
    %v1141 = vadd.f32 %v1140, %v1134
    %v1142 = vadd.f32 %v1141, %v1135
    %v1143 = vrot.slane %v1142, 4
    %v1144 = vadd.f32 %v1142, %v1143
    %v1145 = vrot.slane %v1144, 2
    %v1146 = vadd.f32 %v1144, %v1145
    %v1147 = vrot.slane %v1146, 1
    %v1148 = vadd.f32 %v1146, %v1147
    %v1149 = vmul.f32 %v1127, 0.015625
    %v1150 = vmul.f32 %v1148, 0.015625
    %v1151 = vmul.f32 %v1149, %v1149
    %v1152 = vsub.f32 %v1150, %v1151
    %v1153 = vmax.f32 %v1152, 0.0
    %v1154 = vadd.f32 %v1149, %v1061
    %v1155 = vadd.f32 %v1153, 1e-05
    %v1156 = vrsqrt.pop %v1155
    %v1157 = vmul.f32 %v1100, %v1156
    %v1158 = vmul.f32 %v1154, %v1157
    %v1159 = vsub.f32 %v1102, %v1158
    %v1161 = vlaneseq
    %v1162 = vshrl.u32 %v1161, 7
    %v1163 = vsub.s32 0, %v1162
    %v1164 = vrot.slane %v1157, %v1163
    %v1166 = vmul.f32 %v1061, %v1164
    %v1167 = vmul.f32 %v1066, %v1164
    %v1168 = vmul.f32 %v1071, %v1164
    %v1169 = vmul.f32 %v1076, %v1164
    %v1170 = vmul.f32 %v1081, %v1164
    %v1171 = vmul.f32 %v1086, %v1164
    %v1172 = vmul.f32 %v1091, %v1164
    %v1173 = vmul.f32 %v1096, %v1164
    %v1175 = vlaneseq
    %v1176 = vshrl.u32 %v1175, 7
    %v1177 = vsub.s32 0, %v1176
    %v1178 = vrot.slane %v1159, %v1177
    %v1180 = vadd.f32 %v1166, %v1178
    %v1181 = vadd.f32 %v1167, %v1178
    %v1182 = vadd.f32 %v1168, %v1178
    %v1183 = vadd.f32 %v1169, %v1178
    %v1184 = vadd.f32 %v1170, %v1178
    %v1185 = vadd.f32 %v1171, %v1178
    %v1186 = vadd.f32 %v1172, %v1178
    %v1187 = vadd.f32 %v1173, %v1178
    %v1188 = vadd.f32 %v1180, %v750
    %v1189 = vadd.f32 %v1181, %v751
    %v1190 = vadd.f32 %v1182, %v752
    %v1191 = vadd.f32 %v1183, %v753
    %v1192 = vadd.f32 %v1184, %v754
    %v1193 = vadd.f32 %v1185, %v755
    %v1194 = vadd.f32 %v1186, %v756
    %v1195 = vadd.f32 %v1187, %v757
    %v1196 = vmax.f32 %v1188, 0.0
    %v1197 = vmax.f32 %v1189, 0.0
    %v1198 = vmax.f32 %v1190, 0.0
    %v1199 = vmax.f32 %v1191, 0.0
    %v1200 = vmax.f32 %v1192, 0.0
    %v1201 = vmax.f32 %v1193, 0.0
    %v1202 = vmax.f32 %v1194, 0.0
    %v1203 = vmax.f32 %v1195, 0.0
    %s1204 = scalar_lea.vmem [#allocation2], 256
    %v1205 = vld [vmem:[%s1204] sm:$0xff]
    %v1206 = vld [vmem:[%s1204 + $0x8] sm:$0xff]
    %v1207 = vld [vmem:[%s1204 + $0x10] sm:$0xff]
    %v1208 = vld [vmem:[%s1204 + $0x18] sm:$0xff]
    %v1209 = vld [vmem:[%s1204 + $0x20] sm:$0xff]
    %v1210 = vld [vmem:[%s1204 + $0x28] sm:$0xff]
    %v1211 = vld [vmem:[%s1204 + $0x30] sm:$0xff]
    %v1212 = vld [vmem:[%s1204 + $0x38] sm:$0xff]
    %v1213 = vld [vmem:[%s1204 + $0x40] sm:$0xff]
    %v1214 = vld [vmem:[%s1204 + $0x48] sm:$0xff]
    %v1215 = vld [vmem:[%s1204 + $0x50] sm:$0xff]
    %v1216 = vld [vmem:[%s1204 + $0x58] sm:$0xff]
    %v1217 = vld [vmem:[%s1204 + $0x60] sm:$0xff]
    %v1218 = vld [vmem:[%s1204 + $0x68] sm:$0xff]
    %v1219 = vld [vmem:[%s1204 + $0x70] sm:$0xff]
    %v1220 = vld [vmem:[%s1204 + $0x78] sm:$0xff]
    %1221 = vmatprep.subr.mxu0 0.0
    %1222 = vmatpush1.msra.mxu0 %v1220
    %1223 = vmatprep.subr.mxu0 0.0
    %1224 = vmatpush1.msra.mxu0 %v1219
    %1225 = vmatprep.subr.mxu0 0.0
    %1226 = vmatpush1.msra.mxu0 %v1218
    %1227 = vmatprep.subr.mxu0 0.0
    %1228 = vmatpush1.msra.mxu0 %v1217
    %1229 = vmatprep.subr.mxu0 0.0
    %1230 = vmatpush1.msra.mxu0 %v1216
    %1231 = vmatprep.subr.mxu0 0.0
    %1232 = vmatpush1.msra.mxu0 %v1215
    %1233 = vmatprep.subr.mxu0 0.0
    %1234 = vmatpush1.msra.mxu0 %v1214
    %1235 = vmatprep.subr.mxu0 0.0
    %1236 = vmatpush1.msra.mxu0 %v1213
    %1237 = vmatprep.subr.mxu0 0.0
    %1238 = vmatpush1.msra.mxu0 %v1212
    %1239 = vmatprep.subr.mxu0 0.0
    %1240 = vmatpush1.msra.mxu0 %v1211
    %1241 = vmatprep.subr.mxu0 0.0
    %1242 = vmatpush1.msra.mxu0 %v1210
    %1243 = vmatprep.subr.mxu0 0.0
    %1244 = vmatpush1.msra.mxu0 %v1209
    %1245 = vmatprep.subr.mxu0 0.0
    %1246 = vmatpush1.msra.mxu0 %v1208
    %1247 = vmatprep.subr.mxu0 0.0
    %1248 = vmatpush1.msra.mxu0 %v1207
    %1249 = vmatprep.subr.mxu0 0.0
    %1250 = vmatpush1.msra.mxu0 %v1206
    %1251 = vmatprep.subr.mxu0 0.0
    %1252 = vmatpush1.msra.mxu0 %v1205
    %1253 = vmatprep.subr.mxu0 0.0
    %1254 = vmatpush2.msra.mxu0 0.0
    %1255 = vmatprep.subr.mxu0 0.0
    %1256 = vmatpush2.msra.mxu0 0.0
    %1257 = vmatprep.subr.mxu0 0.0
    %1258 = vmatpush2.msra.mxu0 0.0
    %1259 = vmatprep.subr.mxu0 0.0
    %1260 = vmatpush2.msra.mxu0 0.0
    %1261 = vmatprep.subr.mxu0 0.0
    %1262 = vmatpush2.msra.mxu0 0.0
    %1263 = vmatprep.subr.mxu0 0.0
    %1264 = vmatpush2.msra.mxu0 0.0
    %1265 = vmatprep.subr.mxu0 0.0
    %1266 = vmatpush2.msra.mxu0 0.0
    %1267 = vmatprep.subr.mxu0 0.0
    %1268 = vmatpush2.msra.mxu0 0.0
    %1269 = vmatprep.subr.mxu0 0.0
    %1270 = vmatpush2.msra.mxu0 0.0
    %1271 = vmatprep.subr.mxu0 0.0
    %1272 = vmatpush2.msra.mxu0 0.0
    %1273 = vmatprep.subr.mxu0 0.0
    %1274 = vmatpush2.msra.mxu0 0.0
    %1275 = vmatprep.subr.mxu0 0.0
    %1276 = vmatpush2.msra.mxu0 0.0
    %1277 = vmatprep.subr.mxu0 0.0
    %1278 = vmatpush2.msra.mxu0 0.0
    %1279 = vmatprep.subr.mxu0 0.0
    %1280 = vmatpush2.msra.mxu0 0.0
    %1281 = vmatprep.subr.mxu0 0.0
    %1282 = vmatpush2.msra.mxu0 0.0
    %1283 = vmatprep.subr.mxu0 0.0
    %1284 = vmatpush2.msra.mxu0 0.0
    %1285 = vmatprep.mubr.f32.mxu0 0.0
    %1286 = vmatmul.mubr.f32.gmra.mxu0 %v1196
    %v1287 = vpop.f32.mrf.mxu0
    %v1288 = vadd.f32 0.0, %v1287
    %v1289 = vpop.f32.mrf.mxu0
    %1290 = vmatprep.mubr.f32.mxu0 0.0
    %1291 = vmatmul.mubr.f32.gmra.mxu0 %v1197
    %v1292 = vpop.f32.mrf.mxu0
    %v1293 = vadd.f32 0.0, %v1292
    %v1294 = vpop.f32.mrf.mxu0
    %1295 = vmatprep.mubr.f32.mxu0 0.0
    %1296 = vmatmul.mubr.f32.gmra.mxu0 %v1198
    %v1297 = vpop.f32.mrf.mxu0
    %v1298 = vadd.f32 0.0, %v1297
    %v1299 = vpop.f32.mrf.mxu0
    %1300 = vmatprep.mubr.f32.mxu0 0.0
    %1301 = vmatmul.mubr.f32.gmra.mxu0 %v1199
    %v1302 = vpop.f32.mrf.mxu0
    %v1303 = vadd.f32 0.0, %v1302
    %v1304 = vpop.f32.mrf.mxu0
    %1305 = vmatprep.mubr.f32.mxu0 0.0
    %1306 = vmatmul.mubr.f32.gmra.mxu0 %v1200
    %v1307 = vpop.f32.mrf.mxu0
    %v1308 = vadd.f32 0.0, %v1307
    %v1309 = vpop.f32.mrf.mxu0
    %1310 = vmatprep.mubr.f32.mxu0 0.0
    %1311 = vmatmul.mubr.f32.gmra.mxu0 %v1201
    %v1312 = vpop.f32.mrf.mxu0
    %v1313 = vadd.f32 0.0, %v1312
    %v1314 = vpop.f32.mrf.mxu0
    %1315 = vmatprep.mubr.f32.mxu0 0.0
    %1316 = vmatmul.mubr.f32.gmra.mxu0 %v1202
    %v1317 = vpop.f32.mrf.mxu0
    %v1318 = vadd.f32 0.0, %v1317
    %v1319 = vpop.f32.mrf.mxu0
    %1320 = vmatprep.mubr.f32.mxu0 0.0
    %1321 = vmatmul.mubr.f32.gmra.mxu0 %v1203
    %v1322 = vpop.f32.mrf.mxu0
    %v1323 = vadd.f32 0.0, %v1322
    %v1324 = vpop.f32.mrf.mxu0
    %1325 = vdwg.mxu0
    %s1326 = scalar_lea.vmem %s5, 2
    %v1327 = vld [vmem:[%s1326] sm:$0x1]
    %s1328 = scalar_lea.vmem %s6, 2
    %v1329 = vld [vmem:[%s1328] sm:$0x1]
    %v1330 = vlaneseq
    %v1331 = vshrl.u32 %v1330, 7
    %v1332 = vsub.s32 0, %v1331
    %v1333 = vrot.slane %v1288, %v1332
    %v1334 = vsub.f32 %v1288, %v1333
    %v1335 = vsub.f32 %v1293, %v1333
    %v1336 = vsub.f32 %v1298, %v1333
    %v1337 = vsub.f32 %v1303, %v1333
    %v1338 = vsub.f32 %v1308, %v1333
    %v1339 = vsub.f32 %v1313, %v1333
    %v1340 = vsub.f32 %v1318, %v1333
    %v1341 = vsub.f32 %v1323, %v1333
    %v1342 = vadd.f32 %v1334, %v1335
    %v1343 = vadd.f32 %v1342, %v1336
    %v1344 = vadd.f32 %v1343, %v1337
    %v1345 = vadd.f32 %v1344, %v1338
    %v1346 = vadd.f32 %v1345, %v1339
    %v1347 = vadd.f32 %v1346, %v1340
    %v1348 = vadd.f32 %v1347, %v1341
    %v1349 = vrot.slane %v1348, 4
    %v1350 = vadd.f32 %v1348, %v1349
    %v1351 = vrot.slane %v1350, 2
    %v1352 = vadd.f32 %v1350, %v1351
    %v1353 = vrot.slane %v1352, 1
    %v1354 = vadd.f32 %v1352, %v1353
    %v1355 = vmul.f32 %v1334, %v1334
    %v1356 = vmul.f32 %v1335, %v1335
    %v1357 = vmul.f32 %v1336, %v1336
    %v1358 = vmul.f32 %v1337, %v1337
    %v1359 = vmul.f32 %v1338, %v1338
    %v1360 = vmul.f32 %v1339, %v1339
    %v1361 = vmul.f32 %v1340, %v1340
    %v1362 = vmul.f32 %v1341, %v1341
    %v1363 = vadd.f32 %v1355, %v1356
    %v1364 = vadd.f32 %v1363, %v1357
    %v1365 = vadd.f32 %v1364, %v1358
    %v1366 = vadd.f32 %v1365, %v1359
    %v1367 = vadd.f32 %v1366, %v1360
    %v1368 = vadd.f32 %v1367, %v1361
    %v1369 = vadd.f32 %v1368, %v1362
    %v1370 = vrot.slane %v1369, 4
    %v1371 = vadd.f32 %v1369, %v1370
    %v1372 = vrot.slane %v1371, 2
    %v1373 = vadd.f32 %v1371, %v1372
    %v1374 = vrot.slane %v1373, 1
    %v1375 = vadd.f32 %v1373, %v1374
    %v1376 = vmul.f32 %v1354, 0.015625
    %v1377 = vmul.f32 %v1375, 0.015625
    %v1378 = vmul.f32 %v1376, %v1376
    %v1379 = vsub.f32 %v1377, %v1378
    %v1380 = vmax.f32 %v1379, 0.0
    %v1381 = vadd.f32 %v1376, %v1288
    %v1382 = vadd.f32 %v1380, 1e-05
    %v1383 = vrsqrt.pop %v1382
    %v1384 = vmul.f32 %v1327, %v1383
    %v1385 = vmul.f32 %v1381, %v1384
    %v1386 = vsub.f32 %v1329, %v1385
    %v1388 = vlaneseq
    %v1389 = vshrl.u32 %v1388, 7
    %v1390 = vsub.s32 0, %v1389
    %v1391 = vrot.slane %v1384, %v1390
    %v1393 = vmul.f32 %v1288, %v1391
    %v1394 = vmul.f32 %v1293, %v1391
    %v1395 = vmul.f32 %v1298, %v1391
    %v1396 = vmul.f32 %v1303, %v1391
    %v1397 = vmul.f32 %v1308, %v1391
    %v1398 = vmul.f32 %v1313, %v1391
    %v1399 = vmul.f32 %v1318, %v1391
    %v1400 = vmul.f32 %v1323, %v1391
    %v1402 = vlaneseq
    %v1403 = vshrl.u32 %v1402, 7
    %v1404 = vsub.s32 0, %v1403
    %v1405 = vrot.slane %v1386, %v1404
    %v1407 = vadd.f32 %v1393, %v1405
    %v1408 = vadd.f32 %v1394, %v1405
    %v1409 = vadd.f32 %v1395, %v1405
    %v1410 = vadd.f32 %v1396, %v1405
    %v1411 = vadd.f32 %v1397, %v1405
    %v1412 = vadd.f32 %v1398, %v1405
    %v1413 = vadd.f32 %v1399, %v1405
    %v1414 = vadd.f32 %v1400, %v1405
    %v1415 = vmax.f32 %v1407, 0.0
    %v1416 = vmax.f32 %v1408, 0.0
    %v1417 = vmax.f32 %v1409, 0.0
    %v1418 = vmax.f32 %v1410, 0.0
    %v1419 = vmax.f32 %v1411, 0.0
    %v1420 = vmax.f32 %v1412, 0.0
    %v1421 = vmax.f32 %v1413, 0.0
    %v1422 = vmax.f32 %v1414, 0.0
    %s1423 = scalar_lea.vmem [#allocation5], 256
    %v1424 = vld [vmem:[%s1423] sm:$0xff]
    %v1425 = vld [vmem:[%s1423 + $0x8] sm:$0xff]
    %v1426 = vld [vmem:[%s1423 + $0x10] sm:$0xff]
    %v1427 = vld [vmem:[%s1423 + $0x18] sm:$0xff]
    %v1428 = vld [vmem:[%s1423 + $0x20] sm:$0xff]
    %v1429 = vld [vmem:[%s1423 + $0x28] sm:$0xff]
    %v1430 = vld [vmem:[%s1423 + $0x30] sm:$0xff]
    %v1431 = vld [vmem:[%s1423 + $0x38] sm:$0xff]
    %v1432 = vld [vmem:[%s1423 + $0x40] sm:$0xff]
    %v1433 = vld [vmem:[%s1423 + $0x48] sm:$0xff]
    %v1434 = vld [vmem:[%s1423 + $0x50] sm:$0xff]
    %v1435 = vld [vmem:[%s1423 + $0x58] sm:$0xff]
    %v1436 = vld [vmem:[%s1423 + $0x60] sm:$0xff]
    %v1437 = vld [vmem:[%s1423 + $0x68] sm:$0xff]
    %v1438 = vld [vmem:[%s1423 + $0x70] sm:$0xff]
    %v1439 = vld [vmem:[%s1423 + $0x78] sm:$0xff]
    %1440 = vmatprep.subr.mxu0 0.0
    %1441 = vmatpush1.msra.mxu0 %v1439
    %1442 = vmatprep.subr.mxu0 0.0
    %1443 = vmatpush1.msra.mxu0 %v1438
    %1444 = vmatprep.subr.mxu0 0.0
    %1445 = vmatpush1.msra.mxu0 %v1437
    %1446 = vmatprep.subr.mxu0 0.0
    %1447 = vmatpush1.msra.mxu0 %v1436
    %1448 = vmatprep.subr.mxu0 0.0
    %1449 = vmatpush1.msra.mxu0 %v1435
    %1450 = vmatprep.subr.mxu0 0.0
    %1451 = vmatpush1.msra.mxu0 %v1434
    %1452 = vmatprep.subr.mxu0 0.0
    %1453 = vmatpush1.msra.mxu0 %v1433
    %1454 = vmatprep.subr.mxu0 0.0
    %1455 = vmatpush1.msra.mxu0 %v1432
    %1456 = vmatprep.subr.mxu0 0.0
    %1457 = vmatpush1.msra.mxu0 %v1431
    %1458 = vmatprep.subr.mxu0 0.0
    %1459 = vmatpush1.msra.mxu0 %v1430
    %1460 = vmatprep.subr.mxu0 0.0
    %1461 = vmatpush1.msra.mxu0 %v1429
    %1462 = vmatprep.subr.mxu0 0.0
    %1463 = vmatpush1.msra.mxu0 %v1428
    %1464 = vmatprep.subr.mxu0 0.0
    %1465 = vmatpush1.msra.mxu0 %v1427
    %1466 = vmatprep.subr.mxu0 0.0
    %1467 = vmatpush1.msra.mxu0 %v1426
    %1468 = vmatprep.subr.mxu0 0.0
    %1469 = vmatpush1.msra.mxu0 %v1425
    %1470 = vmatprep.subr.mxu0 0.0
    %1471 = vmatpush1.msra.mxu0 %v1424
    %1472 = vmatprep.subr.mxu0 0.0
    %1473 = vmatpush2.msra.mxu0 0.0
    %1474 = vmatprep.subr.mxu0 0.0
    %1475 = vmatpush2.msra.mxu0 0.0
    %1476 = vmatprep.subr.mxu0 0.0
    %1477 = vmatpush2.msra.mxu0 0.0
    %1478 = vmatprep.subr.mxu0 0.0
    %1479 = vmatpush2.msra.mxu0 0.0
    %1480 = vmatprep.subr.mxu0 0.0
    %1481 = vmatpush2.msra.mxu0 0.0
    %1482 = vmatprep.subr.mxu0 0.0
    %1483 = vmatpush2.msra.mxu0 0.0
    %1484 = vmatprep.subr.mxu0 0.0
    %1485 = vmatpush2.msra.mxu0 0.0
    %1486 = vmatprep.subr.mxu0 0.0
    %1487 = vmatpush2.msra.mxu0 0.0
    %1488 = vmatprep.subr.mxu0 0.0
    %1489 = vmatpush2.msra.mxu0 0.0
    %1490 = vmatprep.subr.mxu0 0.0
    %1491 = vmatpush2.msra.mxu0 0.0
    %1492 = vmatprep.subr.mxu0 0.0
    %1493 = vmatpush2.msra.mxu0 0.0
    %1494 = vmatprep.subr.mxu0 0.0
    %1495 = vmatpush2.msra.mxu0 0.0
    %1496 = vmatprep.subr.mxu0 0.0
    %1497 = vmatpush2.msra.mxu0 0.0
    %1498 = vmatprep.subr.mxu0 0.0
    %1499 = vmatpush2.msra.mxu0 0.0
    %1500 = vmatprep.subr.mxu0 0.0
    %1501 = vmatpush2.msra.mxu0 0.0
    %1502 = vmatprep.subr.mxu0 0.0
    %1503 = vmatpush2.msra.mxu0 0.0
    %1504 = vmatprep.mubr.f32.mxu0 0.0
    %1505 = vmatmul.mubr.f32.gmra.mxu0 %v1415
    %v1506 = vpop.f32.mrf.mxu0
    %v1507 = vadd.f32 0.0, %v1506
    %v1508 = vpop.f32.mrf.mxu0
    %1509 = vmatprep.mubr.f32.mxu0 0.0
    %1510 = vmatmul.mubr.f32.gmra.mxu0 %v1416
    %v1511 = vpop.f32.mrf.mxu0
    %v1512 = vadd.f32 0.0, %v1511
    %v1513 = vpop.f32.mrf.mxu0
    %1514 = vmatprep.mubr.f32.mxu0 0.0
    %1515 = vmatmul.mubr.f32.gmra.mxu0 %v1417
    %v1516 = vpop.f32.mrf.mxu0
    %v1517 = vadd.f32 0.0, %v1516
    %v1518 = vpop.f32.mrf.mxu0
    %1519 = vmatprep.mubr.f32.mxu0 0.0
    %1520 = vmatmul.mubr.f32.gmra.mxu0 %v1418
    %v1521 = vpop.f32.mrf.mxu0
    %v1522 = vadd.f32 0.0, %v1521
    %v1523 = vpop.f32.mrf.mxu0
    %1524 = vmatprep.mubr.f32.mxu0 0.0
    %1525 = vmatmul.mubr.f32.gmra.mxu0 %v1419
    %v1526 = vpop.f32.mrf.mxu0
    %v1527 = vadd.f32 0.0, %v1526
    %v1528 = vpop.f32.mrf.mxu0
    %1529 = vmatprep.mubr.f32.mxu0 0.0
    %1530 = vmatmul.mubr.f32.gmra.mxu0 %v1420
    %v1531 = vpop.f32.mrf.mxu0
    %v1532 = vadd.f32 0.0, %v1531
    %v1533 = vpop.f32.mrf.mxu0
    %1534 = vmatprep.mubr.f32.mxu0 0.0
    %1535 = vmatmul.mubr.f32.gmra.mxu0 %v1421
    %v1536 = vpop.f32.mrf.mxu0
    %v1537 = vadd.f32 0.0, %v1536
    %v1538 = vpop.f32.mrf.mxu0
    %1539 = vmatprep.mubr.f32.mxu0 0.0
    %1540 = vmatmul.mubr.f32.gmra.mxu0 %v1422
    %v1541 = vpop.f32.mrf.mxu0
    %v1542 = vadd.f32 0.0, %v1541
    %v1543 = vpop.f32.mrf.mxu0
    %1544 = vdwg.mxu0
    %s1545 = scalar_lea.vmem %s8, 2
    %v1546 = vld [vmem:[%s1545] sm:$0x1]
    %s1547 = scalar_lea.vmem %s9, 2
    %v1548 = vld [vmem:[%s1547] sm:$0x1]
    %v1549 = vlaneseq
    %v1550 = vshrl.u32 %v1549, 7
    %v1551 = vsub.s32 0, %v1550
    %v1552 = vrot.slane %v1507, %v1551
    %v1553 = vsub.f32 %v1507, %v1552
    %v1554 = vsub.f32 %v1512, %v1552
    %v1555 = vsub.f32 %v1517, %v1552
    %v1556 = vsub.f32 %v1522, %v1552
    %v1557 = vsub.f32 %v1527, %v1552
    %v1558 = vsub.f32 %v1532, %v1552
    %v1559 = vsub.f32 %v1537, %v1552
    %v1560 = vsub.f32 %v1542, %v1552
    %v1561 = vadd.f32 %v1553, %v1554
    %v1562 = vadd.f32 %v1561, %v1555
    %v1563 = vadd.f32 %v1562, %v1556
    %v1564 = vadd.f32 %v1563, %v1557
    %v1565 = vadd.f32 %v1564, %v1558
    %v1566 = vadd.f32 %v1565, %v1559
    %v1567 = vadd.f32 %v1566, %v1560
    %v1568 = vrot.slane %v1567, 4
    %v1569 = vadd.f32 %v1567, %v1568
    %v1570 = vrot.slane %v1569, 2
    %v1571 = vadd.f32 %v1569, %v1570
    %v1572 = vrot.slane %v1571, 1
    %v1573 = vadd.f32 %v1571, %v1572
    %v1574 = vmul.f32 %v1553, %v1553
    %v1575 = vmul.f32 %v1554, %v1554
    %v1576 = vmul.f32 %v1555, %v1555
    %v1577 = vmul.f32 %v1556, %v1556
    %v1578 = vmul.f32 %v1557, %v1557
    %v1579 = vmul.f32 %v1558, %v1558
    %v1580 = vmul.f32 %v1559, %v1559
    %v1581 = vmul.f32 %v1560, %v1560
    %v1582 = vadd.f32 %v1574, %v1575
    %v1583 = vadd.f32 %v1582, %v1576
    %v1584 = vadd.f32 %v1583, %v1577
    %v1585 = vadd.f32 %v1584, %v1578
    %v1586 = vadd.f32 %v1585, %v1579
    %v1587 = vadd.f32 %v1586, %v1580
    %v1588 = vadd.f32 %v1587, %v1581
    %v1589 = vrot.slane %v1588, 4
    %v1590 = vadd.f32 %v1588, %v1589
    %v1591 = vrot.slane %v1590, 2
    %v1592 = vadd.f32 %v1590, %v1591
    %v1593 = vrot.slane %v1592, 1
    %v1594 = vadd.f32 %v1592, %v1593
    %v1595 = vmul.f32 %v1573, 0.015625
    %v1596 = vmul.f32 %v1594, 0.015625
    %v1597 = vmul.f32 %v1595, %v1595
    %v1598 = vsub.f32 %v1596, %v1597
    %v1599 = vmax.f32 %v1598, 0.0
    %v1600 = vadd.f32 %v1595, %v1507
    %v1601 = vadd.f32 %v1599, 1e-05
    %v1602 = vrsqrt.pop %v1601
    %v1603 = vmul.f32 %v1546, %v1602
    %v1604 = vmul.f32 %v1600, %v1603
    %v1605 = vsub.f32 %v1548, %v1604
    %v1607 = vlaneseq
    %v1608 = vshrl.u32 %v1607, 7
    %v1609 = vsub.s32 0, %v1608
    %v1610 = vrot.slane %v1603, %v1609
    %v1612 = vmul.f32 %v1507, %v1610
    %v1613 = vmul.f32 %v1512, %v1610
    %v1614 = vmul.f32 %v1517, %v1610
    %v1615 = vmul.f32 %v1522, %v1610
    %v1616 = vmul.f32 %v1527, %v1610
    %v1617 = vmul.f32 %v1532, %v1610
    %v1618 = vmul.f32 %v1537, %v1610
    %v1619 = vmul.f32 %v1542, %v1610
    %v1621 = vlaneseq
    %v1622 = vshrl.u32 %v1621, 7
    %v1623 = vsub.s32 0, %v1622
    %v1624 = vrot.slane %v1605, %v1623
    %v1626 = vadd.f32 %v1612, %v1624
    %v1627 = vadd.f32 %v1613, %v1624
    %v1628 = vadd.f32 %v1614, %v1624
    %v1629 = vadd.f32 %v1615, %v1624
    %v1630 = vadd.f32 %v1616, %v1624
    %v1631 = vadd.f32 %v1617, %v1624
    %v1632 = vadd.f32 %v1618, %v1624
    %v1633 = vadd.f32 %v1619, %v1624
    %v1634 = vadd.f32 %v1626, %v1196
    %v1635 = vadd.f32 %v1627, %v1197
    %v1636 = vadd.f32 %v1628, %v1198
    %v1637 = vadd.f32 %v1629, %v1199
    %v1638 = vadd.f32 %v1630, %v1200
    %v1639 = vadd.f32 %v1631, %v1201
    %v1640 = vadd.f32 %v1632, %v1202
    %v1641 = vadd.f32 %v1633, %v1203
    %v1642 = vmax.f32 %v1634, 0.0
    %v1643 = vmax.f32 %v1635, 0.0
    %v1644 = vmax.f32 %v1636, 0.0
    %v1645 = vmax.f32 %v1637, 0.0
    %v1646 = vmax.f32 %v1638, 0.0
    %v1647 = vmax.f32 %v1639, 0.0
    %v1648 = vmax.f32 %v1640, 0.0
    %v1649 = vmax.f32 %v1641, 0.0
    %s1650 = scalar_lea.vmem [#allocation2], 384
    %v1651 = vld [vmem:[%s1650] sm:$0xff]
    %v1652 = vld [vmem:[%s1650 + $0x8] sm:$0xff]
    %v1653 = vld [vmem:[%s1650 + $0x10] sm:$0xff]
    %v1654 = vld [vmem:[%s1650 + $0x18] sm:$0xff]
    %v1655 = vld [vmem:[%s1650 + $0x20] sm:$0xff]
    %v1656 = vld [vmem:[%s1650 + $0x28] sm:$0xff]
    %v1657 = vld [vmem:[%s1650 + $0x30] sm:$0xff]
    %v1658 = vld [vmem:[%s1650 + $0x38] sm:$0xff]
    %v1659 = vld [vmem:[%s1650 + $0x40] sm:$0xff]
    %v1660 = vld [vmem:[%s1650 + $0x48] sm:$0xff]
    %v1661 = vld [vmem:[%s1650 + $0x50] sm:$0xff]
    %v1662 = vld [vmem:[%s1650 + $0x58] sm:$0xff]
    %v1663 = vld [vmem:[%s1650 + $0x60] sm:$0xff]
    %v1664 = vld [vmem:[%s1650 + $0x68] sm:$0xff]
    %v1665 = vld [vmem:[%s1650 + $0x70] sm:$0xff]
    %v1666 = vld [vmem:[%s1650 + $0x78] sm:$0xff]
    %1667 = vmatprep.subr.mxu0 0.0
    %1668 = vmatpush1.msra.mxu0 %v1666
    %1669 = vmatprep.subr.mxu0 0.0
    %1670 = vmatpush1.msra.mxu0 %v1665
    %1671 = vmatprep.subr.mxu0 0.0
    %1672 = vmatpush1.msra.mxu0 %v1664
    %1673 = vmatprep.subr.mxu0 0.0
    %1674 = vmatpush1.msra.mxu0 %v1663
    %1675 = vmatprep.subr.mxu0 0.0
    %1676 = vmatpush1.msra.mxu0 %v1662
    %1677 = vmatprep.subr.mxu0 0.0
    %1678 = vmatpush1.msra.mxu0 %v1661
    %1679 = vmatprep.subr.mxu0 0.0
    %1680 = vmatpush1.msra.mxu0 %v1660
    %1681 = vmatprep.subr.mxu0 0.0
    %1682 = vmatpush1.msra.mxu0 %v1659
    %1683 = vmatprep.subr.mxu0 0.0
    %1684 = vmatpush1.msra.mxu0 %v1658
    %1685 = vmatprep.subr.mxu0 0.0
    %1686 = vmatpush1.msra.mxu0 %v1657
    %1687 = vmatprep.subr.mxu0 0.0
    %1688 = vmatpush1.msra.mxu0 %v1656
    %1689 = vmatprep.subr.mxu0 0.0
    %1690 = vmatpush1.msra.mxu0 %v1655
    %1691 = vmatprep.subr.mxu0 0.0
    %1692 = vmatpush1.msra.mxu0 %v1654
    %1693 = vmatprep.subr.mxu0 0.0
    %1694 = vmatpush1.msra.mxu0 %v1653
    %1695 = vmatprep.subr.mxu0 0.0
    %1696 = vmatpush1.msra.mxu0 %v1652
    %1697 = vmatprep.subr.mxu0 0.0
    %1698 = vmatpush1.msra.mxu0 %v1651
    %1699 = vmatprep.subr.mxu0 0.0
    %1700 = vmatpush2.msra.mxu0 0.0
    %1701 = vmatprep.subr.mxu0 0.0
    %1702 = vmatpush2.msra.mxu0 0.0
    %1703 = vmatprep.subr.mxu0 0.0
    %1704 = vmatpush2.msra.mxu0 0.0
    %1705 = vmatprep.subr.mxu0 0.0
    %1706 = vmatpush2.msra.mxu0 0.0
    %1707 = vmatprep.subr.mxu0 0.0
    %1708 = vmatpush2.msra.mxu0 0.0
    %1709 = vmatprep.subr.mxu0 0.0
    %1710 = vmatpush2.msra.mxu0 0.0
    %1711 = vmatprep.subr.mxu0 0.0
    %1712 = vmatpush2.msra.mxu0 0.0
    %1713 = vmatprep.subr.mxu0 0.0
    %1714 = vmatpush2.msra.mxu0 0.0
    %1715 = vmatprep.subr.mxu0 0.0
    %1716 = vmatpush2.msra.mxu0 0.0
    %1717 = vmatprep.subr.mxu0 0.0
    %1718 = vmatpush2.msra.mxu0 0.0
    %1719 = vmatprep.subr.mxu0 0.0
    %1720 = vmatpush2.msra.mxu0 0.0
    %1721 = vmatprep.subr.mxu0 0.0
    %1722 = vmatpush2.msra.mxu0 0.0
    %1723 = vmatprep.subr.mxu0 0.0
    %1724 = vmatpush2.msra.mxu0 0.0
    %1725 = vmatprep.subr.mxu0 0.0
    %1726 = vmatpush2.msra.mxu0 0.0
    %1727 = vmatprep.subr.mxu0 0.0
    %1728 = vmatpush2.msra.mxu0 0.0
    %1729 = vmatprep.subr.mxu0 0.0
    %1730 = vmatpush2.msra.mxu0 0.0
    %1731 = vmatprep.mubr.f32.mxu0 0.0
    %1732 = vmatmul.mubr.f32.gmra.mxu0 %v1642
    %v1733 = vpop.f32.mrf.mxu0
    %v1734 = vadd.f32 0.0, %v1733
    %v1735 = vpop.f32.mrf.mxu0
    %1736 = vmatprep.mubr.f32.mxu0 0.0
    %1737 = vmatmul.mubr.f32.gmra.mxu0 %v1643
    %v1738 = vpop.f32.mrf.mxu0
    %v1739 = vadd.f32 0.0, %v1738
    %v1740 = vpop.f32.mrf.mxu0
    %1741 = vmatprep.mubr.f32.mxu0 0.0
    %1742 = vmatmul.mubr.f32.gmra.mxu0 %v1644
    %v1743 = vpop.f32.mrf.mxu0
    %v1744 = vadd.f32 0.0, %v1743
    %v1745 = vpop.f32.mrf.mxu0
    %1746 = vmatprep.mubr.f32.mxu0 0.0
    %1747 = vmatmul.mubr.f32.gmra.mxu0 %v1645
    %v1748 = vpop.f32.mrf.mxu0
    %v1749 = vadd.f32 0.0, %v1748
    %v1750 = vpop.f32.mrf.mxu0
    %1751 = vmatprep.mubr.f32.mxu0 0.0
    %1752 = vmatmul.mubr.f32.gmra.mxu0 %v1646
    %v1753 = vpop.f32.mrf.mxu0
    %v1754 = vadd.f32 0.0, %v1753
    %v1755 = vpop.f32.mrf.mxu0
    %1756 = vmatprep.mubr.f32.mxu0 0.0
    %1757 = vmatmul.mubr.f32.gmra.mxu0 %v1647
    %v1758 = vpop.f32.mrf.mxu0
    %v1759 = vadd.f32 0.0, %v1758
    %v1760 = vpop.f32.mrf.mxu0
    %1761 = vmatprep.mubr.f32.mxu0 0.0
    %1762 = vmatmul.mubr.f32.gmra.mxu0 %v1648
    %v1763 = vpop.f32.mrf.mxu0
    %v1764 = vadd.f32 0.0, %v1763
    %v1765 = vpop.f32.mrf.mxu0
    %1766 = vmatprep.mubr.f32.mxu0 0.0
    %1767 = vmatmul.mubr.f32.gmra.mxu0 %v1649
    %v1768 = vpop.f32.mrf.mxu0
    %v1769 = vadd.f32 0.0, %v1768
    %v1770 = vpop.f32.mrf.mxu0
    %1771 = vdwg.mxu0
    %s1772 = scalar_lea.vmem %s5, 3
    %v1773 = vld [vmem:[%s1772] sm:$0x1]
    %s1774 = scalar_lea.vmem %s6, 3
    %v1775 = vld [vmem:[%s1774] sm:$0x1]
    %v1776 = vlaneseq
    %v1777 = vshrl.u32 %v1776, 7
    %v1778 = vsub.s32 0, %v1777
    %v1779 = vrot.slane %v1734, %v1778
    %v1780 = vsub.f32 %v1734, %v1779
    %v1781 = vsub.f32 %v1739, %v1779
    %v1782 = vsub.f32 %v1744, %v1779
    %v1783 = vsub.f32 %v1749, %v1779
    %v1784 = vsub.f32 %v1754, %v1779
    %v1785 = vsub.f32 %v1759, %v1779
    %v1786 = vsub.f32 %v1764, %v1779
    %v1787 = vsub.f32 %v1769, %v1779
    %v1788 = vadd.f32 %v1780, %v1781
    %v1789 = vadd.f32 %v1788, %v1782
    %v1790 = vadd.f32 %v1789, %v1783
    %v1791 = vadd.f32 %v1790, %v1784
    %v1792 = vadd.f32 %v1791, %v1785
    %v1793 = vadd.f32 %v1792, %v1786
    %v1794 = vadd.f32 %v1793, %v1787
    %v1795 = vrot.slane %v1794, 4
    %v1796 = vadd.f32 %v1794, %v1795
    %v1797 = vrot.slane %v1796, 2
    %v1798 = vadd.f32 %v1796, %v1797
    %v1799 = vrot.slane %v1798, 1
    %v1800 = vadd.f32 %v1798, %v1799
    %v1801 = vmul.f32 %v1780, %v1780
    %v1802 = vmul.f32 %v1781, %v1781
    %v1803 = vmul.f32 %v1782, %v1782
    %v1804 = vmul.f32 %v1783, %v1783
    %v1805 = vmul.f32 %v1784, %v1784
    %v1806 = vmul.f32 %v1785, %v1785
    %v1807 = vmul.f32 %v1786, %v1786
    %v1808 = vmul.f32 %v1787, %v1787
    %v1809 = vadd.f32 %v1801, %v1802
    %v1810 = vadd.f32 %v1809, %v1803
    %v1811 = vadd.f32 %v1810, %v1804
    %v1812 = vadd.f32 %v1811, %v1805
    %v1813 = vadd.f32 %v1812, %v1806
    %v1814 = vadd.f32 %v1813, %v1807
    %v1815 = vadd.f32 %v1814, %v1808
    %v1816 = vrot.slane %v1815, 4
    %v1817 = vadd.f32 %v1815, %v1816
    %v1818 = vrot.slane %v1817, 2
    %v1819 = vadd.f32 %v1817, %v1818
    %v1820 = vrot.slane %v1819, 1
    %v1821 = vadd.f32 %v1819, %v1820
    %v1822 = vmul.f32 %v1800, 0.015625
    %v1823 = vmul.f32 %v1821, 0.015625
    %v1824 = vmul.f32 %v1822, %v1822
    %v1825 = vsub.f32 %v1823, %v1824
    %v1826 = vmax.f32 %v1825, 0.0
    %v1827 = vadd.f32 %v1822, %v1734
    %v1828 = vadd.f32 %v1826, 1e-05
    %v1829 = vrsqrt.pop %v1828
    %v1830 = vmul.f32 %v1773, %v1829
    %v1831 = vmul.f32 %v1827, %v1830
    %v1832 = vsub.f32 %v1775, %v1831
    %v1834 = vlaneseq
    %v1835 = vshrl.u32 %v1834, 7
    %v1836 = vsub.s32 0, %v1835
    %v1837 = vrot.slane %v1830, %v1836
    %v1839 = vmul.f32 %v1734, %v1837
    %v1840 = vmul.f32 %v1739, %v1837
    %v1841 = vmul.f32 %v1744, %v1837
    %v1842 = vmul.f32 %v1749, %v1837
    %v1843 = vmul.f32 %v1754, %v1837
    %v1844 = vmul.f32 %v1759, %v1837
    %v1845 = vmul.f32 %v1764, %v1837
    %v1846 = vmul.f32 %v1769, %v1837
    %v1848 = vlaneseq
    %v1849 = vshrl.u32 %v1848, 7
    %v1850 = vsub.s32 0, %v1849
    %v1851 = vrot.slane %v1832, %v1850
    %v1853 = vadd.f32 %v1839, %v1851
    %v1854 = vadd.f32 %v1840, %v1851
    %v1855 = vadd.f32 %v1841, %v1851
    %v1856 = vadd.f32 %v1842, %v1851
    %v1857 = vadd.f32 %v1843, %v1851
    %v1858 = vadd.f32 %v1844, %v1851
    %v1859 = vadd.f32 %v1845, %v1851
    %v1860 = vadd.f32 %v1846, %v1851
    %v1861 = vmax.f32 %v1853, 0.0
    %v1862 = vmax.f32 %v1854, 0.0
    %v1863 = vmax.f32 %v1855, 0.0
    %v1864 = vmax.f32 %v1856, 0.0
    %v1865 = vmax.f32 %v1857, 0.0
    %v1866 = vmax.f32 %v1858, 0.0
    %v1867 = vmax.f32 %v1859, 0.0
    %v1868 = vmax.f32 %v1860, 0.0
    %s1869 = scalar_lea.vmem [#allocation5], 384
    %v1870 = vld [vmem:[%s1869] sm:$0xff]
    %v1871 = vld [vmem:[%s1869 + $0x8] sm:$0xff]
    %v1872 = vld [vmem:[%s1869 + $0x10] sm:$0xff]
    %v1873 = vld [vmem:[%s1869 + $0x18] sm:$0xff]
    %v1874 = vld [vmem:[%s1869 + $0x20] sm:$0xff]
    %v1875 = vld [vmem:[%s1869 + $0x28] sm:$0xff]
    %v1876 = vld [vmem:[%s1869 + $0x30] sm:$0xff]
    %v1877 = vld [vmem:[%s1869 + $0x38] sm:$0xff]
    %v1878 = vld [vmem:[%s1869 + $0x40] sm:$0xff]
    %v1879 = vld [vmem:[%s1869 + $0x48] sm:$0xff]
    %v1880 = vld [vmem:[%s1869 + $0x50] sm:$0xff]
    %v1881 = vld [vmem:[%s1869 + $0x58] sm:$0xff]
    %v1882 = vld [vmem:[%s1869 + $0x60] sm:$0xff]
    %v1883 = vld [vmem:[%s1869 + $0x68] sm:$0xff]
    %v1884 = vld [vmem:[%s1869 + $0x70] sm:$0xff]
    %v1885 = vld [vmem:[%s1869 + $0x78] sm:$0xff]
    %1886 = vmatprep.subr.mxu0 0.0
    %1887 = vmatpush1.msra.mxu0 %v1885
    %1888 = vmatprep.subr.mxu0 0.0
    %1889 = vmatpush1.msra.mxu0 %v1884
    %1890 = vmatprep.subr.mxu0 0.0
    %1891 = vmatpush1.msra.mxu0 %v1883
    %1892 = vmatprep.subr.mxu0 0.0
    %1893 = vmatpush1.msra.mxu0 %v1882
    %1894 = vmatprep.subr.mxu0 0.0
    %1895 = vmatpush1.msra.mxu0 %v1881
    %1896 = vmatprep.subr.mxu0 0.0
    %1897 = vmatpush1.msra.mxu0 %v1880
    %1898 = vmatprep.subr.mxu0 0.0
    %1899 = vmatpush1.msra.mxu0 %v1879
    %1900 = vmatprep.subr.mxu0 0.0
    %1901 = vmatpush1.msra.mxu0 %v1878
    %1902 = vmatprep.subr.mxu0 0.0
    %1903 = vmatpush1.msra.mxu0 %v1877
    %1904 = vmatprep.subr.mxu0 0.0
    %1905 = vmatpush1.msra.mxu0 %v1876
    %1906 = vmatprep.subr.mxu0 0.0
    %1907 = vmatpush1.msra.mxu0 %v1875
    %1908 = vmatprep.subr.mxu0 0.0
    %1909 = vmatpush1.msra.mxu0 %v1874
    %1910 = vmatprep.subr.mxu0 0.0
    %1911 = vmatpush1.msra.mxu0 %v1873
    %1912 = vmatprep.subr.mxu0 0.0
    %1913 = vmatpush1.msra.mxu0 %v1872
    %1914 = vmatprep.subr.mxu0 0.0
    %1915 = vmatpush1.msra.mxu0 %v1871
    %1916 = vmatprep.subr.mxu0 0.0
    %1917 = vmatpush1.msra.mxu0 %v1870
    %1918 = vmatprep.subr.mxu0 0.0
    %1919 = vmatpush2.msra.mxu0 0.0
    %1920 = vmatprep.subr.mxu0 0.0
    %1921 = vmatpush2.msra.mxu0 0.0
    %1922 = vmatprep.subr.mxu0 0.0
    %1923 = vmatpush2.msra.mxu0 0.0
    %1924 = vmatprep.subr.mxu0 0.0
    %1925 = vmatpush2.msra.mxu0 0.0
    %1926 = vmatprep.subr.mxu0 0.0
    %1927 = vmatpush2.msra.mxu0 0.0
    %1928 = vmatprep.subr.mxu0 0.0
    %1929 = vmatpush2.msra.mxu0 0.0
    %1930 = vmatprep.subr.mxu0 0.0
    %1931 = vmatpush2.msra.mxu0 0.0
    %1932 = vmatprep.subr.mxu0 0.0
    %1933 = vmatpush2.msra.mxu0 0.0
    %1934 = vmatprep.subr.mxu0 0.0
    %1935 = vmatpush2.msra.mxu0 0.0
    %1936 = vmatprep.subr.mxu0 0.0
    %1937 = vmatpush2.msra.mxu0 0.0
    %1938 = vmatprep.subr.mxu0 0.0
    %1939 = vmatpush2.msra.mxu0 0.0
    %1940 = vmatprep.subr.mxu0 0.0
    %1941 = vmatpush2.msra.mxu0 0.0
    %1942 = vmatprep.subr.mxu0 0.0
    %1943 = vmatpush2.msra.mxu0 0.0
    %1944 = vmatprep.subr.mxu0 0.0
    %1945 = vmatpush2.msra.mxu0 0.0
    %1946 = vmatprep.subr.mxu0 0.0
    %1947 = vmatpush2.msra.mxu0 0.0
    %1948 = vmatprep.subr.mxu0 0.0
    %1949 = vmatpush2.msra.mxu0 0.0
    %1950 = vmatprep.mubr.f32.mxu0 0.0
    %1951 = vmatmul.mubr.f32.gmra.mxu0 %v1861
    %v1952 = vpop.f32.mrf.mxu0
    %v1953 = vadd.f32 0.0, %v1952
    %v1954 = vpop.f32.mrf.mxu0
    %1955 = vmatprep.mubr.f32.mxu0 0.0
    %1956 = vmatmul.mubr.f32.gmra.mxu0 %v1862
    %v1957 = vpop.f32.mrf.mxu0
    %v1958 = vadd.f32 0.0, %v1957
    %v1959 = vpop.f32.mrf.mxu0
    %1960 = vmatprep.mubr.f32.mxu0 0.0
    %1961 = vmatmul.mubr.f32.gmra.mxu0 %v1863
    %v1962 = vpop.f32.mrf.mxu0
    %v1963 = vadd.f32 0.0, %v1962
    %v1964 = vpop.f32.mrf.mxu0
    %1965 = vmatprep.mubr.f32.mxu0 0.0
    %1966 = vmatmul.mubr.f32.gmra.mxu0 %v1864
    %v1967 = vpop.f32.mrf.mxu0
    %v1968 = vadd.f32 0.0, %v1967
    %v1969 = vpop.f32.mrf.mxu0
    %1970 = vmatprep.mubr.f32.mxu0 0.0
    %1971 = vmatmul.mubr.f32.gmra.mxu0 %v1865
    %v1972 = vpop.f32.mrf.mxu0
    %v1973 = vadd.f32 0.0, %v1972
    %v1974 = vpop.f32.mrf.mxu0
    %1975 = vmatprep.mubr.f32.mxu0 0.0
    %1976 = vmatmul.mubr.f32.gmra.mxu0 %v1866
    %v1977 = vpop.f32.mrf.mxu0
    %v1978 = vadd.f32 0.0, %v1977
    %v1979 = vpop.f32.mrf.mxu0
    %1980 = vmatprep.mubr.f32.mxu0 0.0
    %1981 = vmatmul.mubr.f32.gmra.mxu0 %v1867
    %v1982 = vpop.f32.mrf.mxu0
    %v1983 = vadd.f32 0.0, %v1982
    %v1984 = vpop.f32.mrf.mxu0
    %1985 = vmatprep.mubr.f32.mxu0 0.0
    %1986 = vmatmul.mubr.f32.gmra.mxu0 %v1868
    %v1987 = vpop.f32.mrf.mxu0
    %v1988 = vadd.f32 0.0, %v1987
    %v1989 = vpop.f32.mrf.mxu0
    %1990 = vdwg.mxu0
    %s1991 = scalar_lea.vmem %s8, 3
    %v1992 = vld [vmem:[%s1991] sm:$0x1]
    %s1993 = scalar_lea.vmem %s9, 3
    %v1994 = vld [vmem:[%s1993] sm:$0x1]
    %v1995 = vlaneseq
    %v1996 = vshrl.u32 %v1995, 7
    %v1997 = vsub.s32 0, %v1996
    %v1998 = vrot.slane %v1953, %v1997
    %v1999 = vsub.f32 %v1953, %v1998
    %v2000 = vsub.f32 %v1958, %v1998
    %v2001 = vsub.f32 %v1963, %v1998
    %v2002 = vsub.f32 %v1968, %v1998
    %v2003 = vsub.f32 %v1973, %v1998
    %v2004 = vsub.f32 %v1978, %v1998
    %v2005 = vsub.f32 %v1983, %v1998
    %v2006 = vsub.f32 %v1988, %v1998
    %v2007 = vadd.f32 %v1999, %v2000
    %v2008 = vadd.f32 %v2007, %v2001
    %v2009 = vadd.f32 %v2008, %v2002
    %v2010 = vadd.f32 %v2009, %v2003
    %v2011 = vadd.f32 %v2010, %v2004
    %v2012 = vadd.f32 %v2011, %v2005
    %v2013 = vadd.f32 %v2012, %v2006
    %v2014 = vrot.slane %v2013, 4
    %v2015 = vadd.f32 %v2013, %v2014
    %v2016 = vrot.slane %v2015, 2
    %v2017 = vadd.f32 %v2015, %v2016
    %v2018 = vrot.slane %v2017, 1
    %v2019 = vadd.f32 %v2017, %v2018
    %v2020 = vmul.f32 %v1999, %v1999
    %v2021 = vmul.f32 %v2000, %v2000
    %v2022 = vmul.f32 %v2001, %v2001
    %v2023 = vmul.f32 %v2002, %v2002
    %v2024 = vmul.f32 %v2003, %v2003
    %v2025 = vmul.f32 %v2004, %v2004
    %v2026 = vmul.f32 %v2005, %v2005
    %v2027 = vmul.f32 %v2006, %v2006
    %v2028 = vadd.f32 %v2020, %v2021
    %v2029 = vadd.f32 %v2028, %v2022
    %v2030 = vadd.f32 %v2029, %v2023
    %v2031 = vadd.f32 %v2030, %v2024
    %v2032 = vadd.f32 %v2031, %v2025
    %v2033 = vadd.f32 %v2032, %v2026
    %v2034 = vadd.f32 %v2033, %v2027
    %v2035 = vrot.slane %v2034, 4
    %v2036 = vadd.f32 %v2034, %v2035
    %v2037 = vrot.slane %v2036, 2
    %v2038 = vadd.f32 %v2036, %v2037
    %v2039 = vrot.slane %v2038, 1
    %v2040 = vadd.f32 %v2038, %v2039
    %v2041 = vmul.f32 %v2019, 0.015625
    %v2042 = vmul.f32 %v2040, 0.015625
    %v2043 = vmul.f32 %v2041, %v2041
    %v2044 = vsub.f32 %v2042, %v2043
    %v2045 = vmax.f32 %v2044, 0.0
    %v2046 = vadd.f32 %v2041, %v1953
    %v2047 = vadd.f32 %v2045, 1e-05
    %v2048 = vrsqrt.pop %v2047
    %v2049 = vmul.f32 %v1992, %v2048
    %v2050 = vmul.f32 %v2046, %v2049
    %v2051 = vsub.f32 %v1994, %v2050
    %v2053 = vlaneseq
    %v2054 = vshrl.u32 %v2053, 7
    %v2055 = vsub.s32 0, %v2054
    %v2056 = vrot.slane %v2049, %v2055
    %v2058 = vmul.f32 %v1953, %v2056
    %v2059 = vmul.f32 %v1958, %v2056
    %v2060 = vmul.f32 %v1963, %v2056
    %v2061 = vmul.f32 %v1968, %v2056
    %v2062 = vmul.f32 %v1973, %v2056
    %v2063 = vmul.f32 %v1978, %v2056
    %v2064 = vmul.f32 %v1983, %v2056
    %v2065 = vmul.f32 %v1988, %v2056
    %v2067 = vlaneseq
    %v2068 = vshrl.u32 %v2067, 7
    %v2069 = vsub.s32 0, %v2068
    %v2070 = vrot.slane %v2051, %v2069
    %v2072 = vadd.f32 %v2058, %v2070
    %v2073 = vadd.f32 %v2059, %v2070
    %v2074 = vadd.f32 %v2060, %v2070
    %v2075 = vadd.f32 %v2061, %v2070
    %v2076 = vadd.f32 %v2062, %v2070
    %v2077 = vadd.f32 %v2063, %v2070
    %v2078 = vadd.f32 %v2064, %v2070
    %v2079 = vadd.f32 %v2065, %v2070
    %v2080 = vadd.f32 %v2072, %v1642
    %v2081 = vadd.f32 %v2073, %v1643
    %v2082 = vadd.f32 %v2074, %v1644
    %v2083 = vadd.f32 %v2075, %v1645
    %v2084 = vadd.f32 %v2076, %v1646
    %v2085 = vadd.f32 %v2077, %v1647
    %v2086 = vadd.f32 %v2078, %v1648
    %v2087 = vadd.f32 %v2079, %v1649
    %v2088 = vmax.f32 %v2080, 0.0
    %v2089 = vmax.f32 %v2081, 0.0
    %v2090 = vmax.f32 %v2082, 0.0
    %v2091 = vmax.f32 %v2083, 0.0
    %v2092 = vmax.f32 %v2084, 0.0
    %v2093 = vmax.f32 %v2085, 0.0
    %v2094 = vmax.f32 %v2086, 0.0
    %v2095 = vmax.f32 %v2087, 0.0
    %s2096 = scalar_lea.vmem [#allocation2], 512
    %v2097 = vld [vmem:[%s2096] sm:$0xff]
    %v2098 = vld [vmem:[%s2096 + $0x8] sm:$0xff]
    %v2099 = vld [vmem:[%s2096 + $0x10] sm:$0xff]
    %v2100 = vld [vmem:[%s2096 + $0x18] sm:$0xff]
    %v2101 = vld [vmem:[%s2096 + $0x20] sm:$0xff]
    %v2102 = vld [vmem:[%s2096 + $0x28] sm:$0xff]
    %v2103 = vld [vmem:[%s2096 + $0x30] sm:$0xff]
    %v2104 = vld [vmem:[%s2096 + $0x38] sm:$0xff]
    %v2105 = vld [vmem:[%s2096 + $0x40] sm:$0xff]
    %v2106 = vld [vmem:[%s2096 + $0x48] sm:$0xff]
    %v2107 = vld [vmem:[%s2096 + $0x50] sm:$0xff]
    %v2108 = vld [vmem:[%s2096 + $0x58] sm:$0xff]
    %v2109 = vld [vmem:[%s2096 + $0x60] sm:$0xff]
    %v2110 = vld [vmem:[%s2096 + $0x68] sm:$0xff]
    %v2111 = vld [vmem:[%s2096 + $0x70] sm:$0xff]
    %v2112 = vld [vmem:[%s2096 + $0x78] sm:$0xff]
    %2113 = vmatprep.subr.mxu0 0.0
    %2114 = vmatpush1.msra.mxu0 %v2112
    %2115 = vmatprep.subr.mxu0 0.0
    %2116 = vmatpush1.msra.mxu0 %v2111
    %2117 = vmatprep.subr.mxu0 0.0
    %2118 = vmatpush1.msra.mxu0 %v2110
    %2119 = vmatprep.subr.mxu0 0.0
    %2120 = vmatpush1.msra.mxu0 %v2109
    %2121 = vmatprep.subr.mxu0 0.0
    %2122 = vmatpush1.msra.mxu0 %v2108
    %2123 = vmatprep.subr.mxu0 0.0
    %2124 = vmatpush1.msra.mxu0 %v2107
    %2125 = vmatprep.subr.mxu0 0.0
    %2126 = vmatpush1.msra.mxu0 %v2106
    %2127 = vmatprep.subr.mxu0 0.0
    %2128 = vmatpush1.msra.mxu0 %v2105
    %2129 = vmatprep.subr.mxu0 0.0
    %2130 = vmatpush1.msra.mxu0 %v2104
    %2131 = vmatprep.subr.mxu0 0.0
    %2132 = vmatpush1.msra.mxu0 %v2103
    %2133 = vmatprep.subr.mxu0 0.0
    %2134 = vmatpush1.msra.mxu0 %v2102
    %2135 = vmatprep.subr.mxu0 0.0
    %2136 = vmatpush1.msra.mxu0 %v2101
    %2137 = vmatprep.subr.mxu0 0.0
    %2138 = vmatpush1.msra.mxu0 %v2100
    %2139 = vmatprep.subr.mxu0 0.0
    %2140 = vmatpush1.msra.mxu0 %v2099
    %2141 = vmatprep.subr.mxu0 0.0
    %2142 = vmatpush1.msra.mxu0 %v2098
    %2143 = vmatprep.subr.mxu0 0.0
    %2144 = vmatpush1.msra.mxu0 %v2097
    %2145 = vmatprep.subr.mxu0 0.0
    %2146 = vmatpush2.msra.mxu0 0.0
    %2147 = vmatprep.subr.mxu0 0.0
    %2148 = vmatpush2.msra.mxu0 0.0
    %2149 = vmatprep.subr.mxu0 0.0
    %2150 = vmatpush2.msra.mxu0 0.0
    %2151 = vmatprep.subr.mxu0 0.0
    %2152 = vmatpush2.msra.mxu0 0.0
    %2153 = vmatprep.subr.mxu0 0.0
    %2154 = vmatpush2.msra.mxu0 0.0
    %2155 = vmatprep.subr.mxu0 0.0
    %2156 = vmatpush2.msra.mxu0 0.0
    %2157 = vmatprep.subr.mxu0 0.0
    %2158 = vmatpush2.msra.mxu0 0.0
    %2159 = vmatprep.subr.mxu0 0.0
    %2160 = vmatpush2.msra.mxu0 0.0
    %2161 = vmatprep.subr.mxu0 0.0
    %2162 = vmatpush2.msra.mxu0 0.0
    %2163 = vmatprep.subr.mxu0 0.0
    %2164 = vmatpush2.msra.mxu0 0.0
    %2165 = vmatprep.subr.mxu0 0.0
    %2166 = vmatpush2.msra.mxu0 0.0
    %2167 = vmatprep.subr.mxu0 0.0
    %2168 = vmatpush2.msra.mxu0 0.0
    %2169 = vmatprep.subr.mxu0 0.0
    %2170 = vmatpush2.msra.mxu0 0.0
    %2171 = vmatprep.subr.mxu0 0.0
    %2172 = vmatpush2.msra.mxu0 0.0
    %2173 = vmatprep.subr.mxu0 0.0
    %2174 = vmatpush2.msra.mxu0 0.0
    %2175 = vmatprep.subr.mxu0 0.0
    %2176 = vmatpush2.msra.mxu0 0.0
    %2177 = vmatprep.mubr.f32.mxu0 0.0
    %2178 = vmatmul.mubr.f32.gmra.mxu0 %v2088
    %v2179 = vpop.f32.mrf.mxu0
    %v2180 = vadd.f32 0.0, %v2179
    %v2181 = vpop.f32.mrf.mxu0
    %2182 = vmatprep.mubr.f32.mxu0 0.0
    %2183 = vmatmul.mubr.f32.gmra.mxu0 %v2089
    %v2184 = vpop.f32.mrf.mxu0
    %v2185 = vadd.f32 0.0, %v2184
    %v2186 = vpop.f32.mrf.mxu0
    %2187 = vmatprep.mubr.f32.mxu0 0.0
    %2188 = vmatmul.mubr.f32.gmra.mxu0 %v2090
    %v2189 = vpop.f32.mrf.mxu0
    %v2190 = vadd.f32 0.0, %v2189
    %v2191 = vpop.f32.mrf.mxu0
    %2192 = vmatprep.mubr.f32.mxu0 0.0
    %2193 = vmatmul.mubr.f32.gmra.mxu0 %v2091
    %v2194 = vpop.f32.mrf.mxu0
    %v2195 = vadd.f32 0.0, %v2194
    %v2196 = vpop.f32.mrf.mxu0
    %2197 = vmatprep.mubr.f32.mxu0 0.0
    %2198 = vmatmul.mubr.f32.gmra.mxu0 %v2092
    %v2199 = vpop.f32.mrf.mxu0
    %v2200 = vadd.f32 0.0, %v2199
    %v2201 = vpop.f32.mrf.mxu0
    %2202 = vmatprep.mubr.f32.mxu0 0.0
    %2203 = vmatmul.mubr.f32.gmra.mxu0 %v2093
    %v2204 = vpop.f32.mrf.mxu0
    %v2205 = vadd.f32 0.0, %v2204
    %v2206 = vpop.f32.mrf.mxu0
    %2207 = vmatprep.mubr.f32.mxu0 0.0
    %2208 = vmatmul.mubr.f32.gmra.mxu0 %v2094
    %v2209 = vpop.f32.mrf.mxu0
    %v2210 = vadd.f32 0.0, %v2209
    %v2211 = vpop.f32.mrf.mxu0
    %2212 = vmatprep.mubr.f32.mxu0 0.0
    %2213 = vmatmul.mubr.f32.gmra.mxu0 %v2095
    %v2214 = vpop.f32.mrf.mxu0
    %v2215 = vadd.f32 0.0, %v2214
    %v2216 = vpop.f32.mrf.mxu0
    %2217 = vdwg.mxu0
    %s2218 = scalar_lea.vmem %s5, 4
    %v2219 = vld [vmem:[%s2218] sm:$0x1]
    %s2220 = scalar_lea.vmem %s6, 4
    %v2221 = vld [vmem:[%s2220] sm:$0x1]
    %v2222 = vlaneseq
    %v2223 = vshrl.u32 %v2222, 7
    %v2224 = vsub.s32 0, %v2223
    %v2225 = vrot.slane %v2180, %v2224
    %v2226 = vsub.f32 %v2180, %v2225
    %v2227 = vsub.f32 %v2185, %v2225
    %v2228 = vsub.f32 %v2190, %v2225
    %v2229 = vsub.f32 %v2195, %v2225
    %v2230 = vsub.f32 %v2200, %v2225
    %v2231 = vsub.f32 %v2205, %v2225
    %v2232 = vsub.f32 %v2210, %v2225
    %v2233 = vsub.f32 %v2215, %v2225
    %v2234 = vadd.f32 %v2226, %v2227
    %v2235 = vadd.f32 %v2234, %v2228
    %v2236 = vadd.f32 %v2235, %v2229
    %v2237 = vadd.f32 %v2236, %v2230
    %v2238 = vadd.f32 %v2237, %v2231
    %v2239 = vadd.f32 %v2238, %v2232
    %v2240 = vadd.f32 %v2239, %v2233
    %v2241 = vrot.slane %v2240, 4
    %v2242 = vadd.f32 %v2240, %v2241
    %v2243 = vrot.slane %v2242, 2
    %v2244 = vadd.f32 %v2242, %v2243
    %v2245 = vrot.slane %v2244, 1
    %v2246 = vadd.f32 %v2244, %v2245
    %v2247 = vmul.f32 %v2226, %v2226
    %v2248 = vmul.f32 %v2227, %v2227
    %v2249 = vmul.f32 %v2228, %v2228
    %v2250 = vmul.f32 %v2229, %v2229
    %v2251 = vmul.f32 %v2230, %v2230
    %v2252 = vmul.f32 %v2231, %v2231
    %v2253 = vmul.f32 %v2232, %v2232
    %v2254 = vmul.f32 %v2233, %v2233
    %v2255 = vadd.f32 %v2247, %v2248
    %v2256 = vadd.f32 %v2255, %v2249
    %v2257 = vadd.f32 %v2256, %v2250
    %v2258 = vadd.f32 %v2257, %v2251
    %v2259 = vadd.f32 %v2258, %v2252
    %v2260 = vadd.f32 %v2259, %v2253
    %v2261 = vadd.f32 %v2260, %v2254
    %v2262 = vrot.slane %v2261, 4
    %v2263 = vadd.f32 %v2261, %v2262
    %v2264 = vrot.slane %v2263, 2
    %v2265 = vadd.f32 %v2263, %v2264
    %v2266 = vrot.slane %v2265, 1
    %v2267 = vadd.f32 %v2265, %v2266
    %v2268 = vmul.f32 %v2246, 0.015625
    %v2269 = vmul.f32 %v2267, 0.015625
    %v2270 = vmul.f32 %v2268, %v2268
    %v2271 = vsub.f32 %v2269, %v2270
    %v2272 = vmax.f32 %v2271, 0.0
    %v2273 = vadd.f32 %v2268, %v2180
    %v2274 = vadd.f32 %v2272, 1e-05
    %v2275 = vrsqrt.pop %v2274
    %v2276 = vmul.f32 %v2219, %v2275
    %v2277 = vmul.f32 %v2273, %v2276
    %v2278 = vsub.f32 %v2221, %v2277
    %v2280 = vlaneseq
    %v2281 = vshrl.u32 %v2280, 7
    %v2282 = vsub.s32 0, %v2281
    %v2283 = vrot.slane %v2276, %v2282
    %v2285 = vmul.f32 %v2180, %v2283
    %v2286 = vmul.f32 %v2185, %v2283
    %v2287 = vmul.f32 %v2190, %v2283
    %v2288 = vmul.f32 %v2195, %v2283
    %v2289 = vmul.f32 %v2200, %v2283
    %v2290 = vmul.f32 %v2205, %v2283
    %v2291 = vmul.f32 %v2210, %v2283
    %v2292 = vmul.f32 %v2215, %v2283
    %v2294 = vlaneseq
    %v2295 = vshrl.u32 %v2294, 7
    %v2296 = vsub.s32 0, %v2295
    %v2297 = vrot.slane %v2278, %v2296
    %v2299 = vadd.f32 %v2285, %v2297
    %v2300 = vadd.f32 %v2286, %v2297
    %v2301 = vadd.f32 %v2287, %v2297
    %v2302 = vadd.f32 %v2288, %v2297
    %v2303 = vadd.f32 %v2289, %v2297
    %v2304 = vadd.f32 %v2290, %v2297
    %v2305 = vadd.f32 %v2291, %v2297
    %v2306 = vadd.f32 %v2292, %v2297
    %v2307 = vmax.f32 %v2299, 0.0
    %v2308 = vmax.f32 %v2300, 0.0
    %v2309 = vmax.f32 %v2301, 0.0
    %v2310 = vmax.f32 %v2302, 0.0
    %v2311 = vmax.f32 %v2303, 0.0
    %v2312 = vmax.f32 %v2304, 0.0
    %v2313 = vmax.f32 %v2305, 0.0
    %v2314 = vmax.f32 %v2306, 0.0
    %s2315 = scalar_lea.vmem [#allocation5], 512
    %v2316 = vld [vmem:[%s2315] sm:$0xff]
    %v2317 = vld [vmem:[%s2315 + $0x8] sm:$0xff]
    %v2318 = vld [vmem:[%s2315 + $0x10] sm:$0xff]
    %v2319 = vld [vmem:[%s2315 + $0x18] sm:$0xff]
    %v2320 = vld [vmem:[%s2315 + $0x20] sm:$0xff]
    %v2321 = vld [vmem:[%s2315 + $0x28] sm:$0xff]
    %v2322 = vld [vmem:[%s2315 + $0x30] sm:$0xff]
    %v2323 = vld [vmem:[%s2315 + $0x38] sm:$0xff]
    %v2324 = vld [vmem:[%s2315 + $0x40] sm:$0xff]
    %v2325 = vld [vmem:[%s2315 + $0x48] sm:$0xff]
    %v2326 = vld [vmem:[%s2315 + $0x50] sm:$0xff]
    %v2327 = vld [vmem:[%s2315 + $0x58] sm:$0xff]
    %v2328 = vld [vmem:[%s2315 + $0x60] sm:$0xff]
    %v2329 = vld [vmem:[%s2315 + $0x68] sm:$0xff]
    %v2330 = vld [vmem:[%s2315 + $0x70] sm:$0xff]
    %v2331 = vld [vmem:[%s2315 + $0x78] sm:$0xff]
    %2332 = vmatprep.subr.mxu0 0.0
    %2333 = vmatpush1.msra.mxu0 %v2331
    %2334 = vmatprep.subr.mxu0 0.0
    %2335 = vmatpush1.msra.mxu0 %v2330
    %2336 = vmatprep.subr.mxu0 0.0
    %2337 = vmatpush1.msra.mxu0 %v2329
    %2338 = vmatprep.subr.mxu0 0.0
    %2339 = vmatpush1.msra.mxu0 %v2328
    %2340 = vmatprep.subr.mxu0 0.0
    %2341 = vmatpush1.msra.mxu0 %v2327
    %2342 = vmatprep.subr.mxu0 0.0
    %2343 = vmatpush1.msra.mxu0 %v2326
    %2344 = vmatprep.subr.mxu0 0.0
    %2345 = vmatpush1.msra.mxu0 %v2325
    %2346 = vmatprep.subr.mxu0 0.0
    %2347 = vmatpush1.msra.mxu0 %v2324
    %2348 = vmatprep.subr.mxu0 0.0
    %2349 = vmatpush1.msra.mxu0 %v2323
    %2350 = vmatprep.subr.mxu0 0.0
    %2351 = vmatpush1.msra.mxu0 %v2322
    %2352 = vmatprep.subr.mxu0 0.0
    %2353 = vmatpush1.msra.mxu0 %v2321
    %2354 = vmatprep.subr.mxu0 0.0
    %2355 = vmatpush1.msra.mxu0 %v2320
    %2356 = vmatprep.subr.mxu0 0.0
    %2357 = vmatpush1.msra.mxu0 %v2319
    %2358 = vmatprep.subr.mxu0 0.0
    %2359 = vmatpush1.msra.mxu0 %v2318
    %2360 = vmatprep.subr.mxu0 0.0
    %2361 = vmatpush1.msra.mxu0 %v2317
    %2362 = vmatprep.subr.mxu0 0.0
    %2363 = vmatpush1.msra.mxu0 %v2316
    %2364 = vmatprep.subr.mxu0 0.0
    %2365 = vmatpush2.msra.mxu0 0.0
    %2366 = vmatprep.subr.mxu0 0.0
    %2367 = vmatpush2.msra.mxu0 0.0
    %2368 = vmatprep.subr.mxu0 0.0
    %2369 = vmatpush2.msra.mxu0 0.0
    %2370 = vmatprep.subr.mxu0 0.0
    %2371 = vmatpush2.msra.mxu0 0.0
    %2372 = vmatprep.subr.mxu0 0.0
    %2373 = vmatpush2.msra.mxu0 0.0
    %2374 = vmatprep.subr.mxu0 0.0
    %2375 = vmatpush2.msra.mxu0 0.0
    %2376 = vmatprep.subr.mxu0 0.0
    %2377 = vmatpush2.msra.mxu0 0.0
    %2378 = vmatprep.subr.mxu0 0.0
    %2379 = vmatpush2.msra.mxu0 0.0
    %2380 = vmatprep.subr.mxu0 0.0
    %2381 = vmatpush2.msra.mxu0 0.0
    %2382 = vmatprep.subr.mxu0 0.0
    %2383 = vmatpush2.msra.mxu0 0.0
    %2384 = vmatprep.subr.mxu0 0.0
    %2385 = vmatpush2.msra.mxu0 0.0
    %2386 = vmatprep.subr.mxu0 0.0
    %2387 = vmatpush2.msra.mxu0 0.0
    %2388 = vmatprep.subr.mxu0 0.0
    %2389 = vmatpush2.msra.mxu0 0.0
    %2390 = vmatprep.subr.mxu0 0.0
    %2391 = vmatpush2.msra.mxu0 0.0
    %2392 = vmatprep.subr.mxu0 0.0
    %2393 = vmatpush2.msra.mxu0 0.0
    %2394 = vmatprep.subr.mxu0 0.0
    %2395 = vmatpush2.msra.mxu0 0.0
    %2396 = vmatprep.mubr.f32.mxu0 0.0
    %2397 = vmatmul.mubr.f32.gmra.mxu0 %v2307
    %v2398 = vpop.f32.mrf.mxu0
    %v2399 = vadd.f32 0.0, %v2398
    %v2400 = vpop.f32.mrf.mxu0
    %2401 = vmatprep.mubr.f32.mxu0 0.0
    %2402 = vmatmul.mubr.f32.gmra.mxu0 %v2308
    %v2403 = vpop.f32.mrf.mxu0
    %v2404 = vadd.f32 0.0, %v2403
    %v2405 = vpop.f32.mrf.mxu0
    %2406 = vmatprep.mubr.f32.mxu0 0.0
    %2407 = vmatmul.mubr.f32.gmra.mxu0 %v2309
    %v2408 = vpop.f32.mrf.mxu0
    %v2409 = vadd.f32 0.0, %v2408
    %v2410 = vpop.f32.mrf.mxu0
    %2411 = vmatprep.mubr.f32.mxu0 0.0
    %2412 = vmatmul.mubr.f32.gmra.mxu0 %v2310
    %v2413 = vpop.f32.mrf.mxu0
    %v2414 = vadd.f32 0.0, %v2413
    %v2415 = vpop.f32.mrf.mxu0
    %2416 = vmatprep.mubr.f32.mxu0 0.0
    %2417 = vmatmul.mubr.f32.gmra.mxu0 %v2311
    %v2418 = vpop.f32.mrf.mxu0
    %v2419 = vadd.f32 0.0, %v2418
    %v2420 = vpop.f32.mrf.mxu0
    %2421 = vmatprep.mubr.f32.mxu0 0.0
    %2422 = vmatmul.mubr.f32.gmra.mxu0 %v2312
    %v2423 = vpop.f32.mrf.mxu0
    %v2424 = vadd.f32 0.0, %v2423
    %v2425 = vpop.f32.mrf.mxu0
    %2426 = vmatprep.mubr.f32.mxu0 0.0
    %2427 = vmatmul.mubr.f32.gmra.mxu0 %v2313
    %v2428 = vpop.f32.mrf.mxu0
    %v2429 = vadd.f32 0.0, %v2428
    %v2430 = vpop.f32.mrf.mxu0
    %2431 = vmatprep.mubr.f32.mxu0 0.0
    %2432 = vmatmul.mubr.f32.gmra.mxu0 %v2314
    %v2433 = vpop.f32.mrf.mxu0
    %v2434 = vadd.f32 0.0, %v2433
    %v2435 = vpop.f32.mrf.mxu0
    %2436 = vdwg.mxu0
    %s2437 = scalar_lea.vmem %s8, 4
    %v2438 = vld [vmem:[%s2437] sm:$0x1]
    %s2439 = scalar_lea.vmem %s9, 4
    %v2440 = vld [vmem:[%s2439] sm:$0x1]
    %v2441 = vlaneseq
    %v2442 = vshrl.u32 %v2441, 7
    %v2443 = vsub.s32 0, %v2442
    %v2444 = vrot.slane %v2399, %v2443
    %v2445 = vsub.f32 %v2399, %v2444
    %v2446 = vsub.f32 %v2404, %v2444
    %v2447 = vsub.f32 %v2409, %v2444
    %v2448 = vsub.f32 %v2414, %v2444
    %v2449 = vsub.f32 %v2419, %v2444
    %v2450 = vsub.f32 %v2424, %v2444
    %v2451 = vsub.f32 %v2429, %v2444
    %v2452 = vsub.f32 %v2434, %v2444
    %v2453 = vadd.f32 %v2445, %v2446
    %v2454 = vadd.f32 %v2453, %v2447
    %v2455 = vadd.f32 %v2454, %v2448
    %v2456 = vadd.f32 %v2455, %v2449
    %v2457 = vadd.f32 %v2456, %v2450
    %v2458 = vadd.f32 %v2457, %v2451
    %v2459 = vadd.f32 %v2458, %v2452
    %v2460 = vrot.slane %v2459, 4
    %v2461 = vadd.f32 %v2459, %v2460
    %v2462 = vrot.slane %v2461, 2
    %v2463 = vadd.f32 %v2461, %v2462
    %v2464 = vrot.slane %v2463, 1
    %v2465 = vadd.f32 %v2463, %v2464
    %v2466 = vmul.f32 %v2445, %v2445
    %v2467 = vmul.f32 %v2446, %v2446
    %v2468 = vmul.f32 %v2447, %v2447
    %v2469 = vmul.f32 %v2448, %v2448
    %v2470 = vmul.f32 %v2449, %v2449
    %v2471 = vmul.f32 %v2450, %v2450
    %v2472 = vmul.f32 %v2451, %v2451
    %v2473 = vmul.f32 %v2452, %v2452
    %v2474 = vadd.f32 %v2466, %v2467
    %v2475 = vadd.f32 %v2474, %v2468
    %v2476 = vadd.f32 %v2475, %v2469
    %v2477 = vadd.f32 %v2476, %v2470
    %v2478 = vadd.f32 %v2477, %v2471
    %v2479 = vadd.f32 %v2478, %v2472
    %v2480 = vadd.f32 %v2479, %v2473
    %v2481 = vrot.slane %v2480, 4
    %v2482 = vadd.f32 %v2480, %v2481
    %v2483 = vrot.slane %v2482, 2
    %v2484 = vadd.f32 %v2482, %v2483
    %v2485 = vrot.slane %v2484, 1
    %v2486 = vadd.f32 %v2484, %v2485
    %v2487 = vmul.f32 %v2465, 0.015625
    %v2488 = vmul.f32 %v2486, 0.015625
    %v2489 = vmul.f32 %v2487, %v2487
    %v2490 = vsub.f32 %v2488, %v2489
    %v2491 = vmax.f32 %v2490, 0.0
    %v2492 = vadd.f32 %v2487, %v2399
    %v2493 = vadd.f32 %v2491, 1e-05
    %v2494 = vrsqrt.pop %v2493
    %v2495 = vmul.f32 %v2438, %v2494
    %v2496 = vmul.f32 %v2492, %v2495
    %v2497 = vsub.f32 %v2440, %v2496
    %v2499 = vlaneseq
    %v2500 = vshrl.u32 %v2499, 7
    %v2501 = vsub.s32 0, %v2500
    %v2502 = vrot.slane %v2495, %v2501
    %v2504 = vmul.f32 %v2399, %v2502
    %v2505 = vmul.f32 %v2404, %v2502
    %v2506 = vmul.f32 %v2409, %v2502
    %v2507 = vmul.f32 %v2414, %v2502
    %v2508 = vmul.f32 %v2419, %v2502
    %v2509 = vmul.f32 %v2424, %v2502
    %v2510 = vmul.f32 %v2429, %v2502
    %v2511 = vmul.f32 %v2434, %v2502
    %v2513 = vlaneseq
    %v2514 = vshrl.u32 %v2513, 7
    %v2515 = vsub.s32 0, %v2514
    %v2516 = vrot.slane %v2497, %v2515
    %v2518 = vadd.f32 %v2504, %v2516
    %v2519 = vadd.f32 %v2505, %v2516
    %v2520 = vadd.f32 %v2506, %v2516
    %v2521 = vadd.f32 %v2507, %v2516
    %v2522 = vadd.f32 %v2508, %v2516
    %v2523 = vadd.f32 %v2509, %v2516
    %v2524 = vadd.f32 %v2510, %v2516
    %v2525 = vadd.f32 %v2511, %v2516
    %v2526 = vadd.f32 %v2518, %v2088
    %v2527 = vadd.f32 %v2519, %v2089
    %v2528 = vadd.f32 %v2520, %v2090
    %v2529 = vadd.f32 %v2521, %v2091
    %v2530 = vadd.f32 %v2522, %v2092
    %v2531 = vadd.f32 %v2523, %v2093
    %v2532 = vadd.f32 %v2524, %v2094
    %v2533 = vadd.f32 %v2525, %v2095
    %v2534 = vmax.f32 %v2526, 0.0
    %v2535 = vmax.f32 %v2527, 0.0
    %v2536 = vmax.f32 %v2528, 0.0
    %v2537 = vmax.f32 %v2529, 0.0
    %v2538 = vmax.f32 %v2530, 0.0
    %v2539 = vmax.f32 %v2531, 0.0
    %v2540 = vmax.f32 %v2532, 0.0
    %v2541 = vmax.f32 %v2533, 0.0
    %v2542 = vld [vmem:[#allocation7] sm:$0xff]
    %v2543 = vld [vmem:[#allocation7 + $0x8] sm:$0xff]
    %v2544 = vld [vmem:[#allocation7 + $0x10] sm:$0xff]
    %v2545 = vld [vmem:[#allocation7 + $0x18] sm:$0xff]
    %v2546 = vld [vmem:[#allocation7 + $0x20] sm:$0xff]
    %v2547 = vld [vmem:[#allocation7 + $0x28] sm:$0xff]
    %v2548 = vld [vmem:[#allocation7 + $0x30] sm:$0xff]
    %v2549 = vld [vmem:[#allocation7 + $0x38] sm:$0xff]
    %v2550 = vld [vmem:[#allocation7 + $0x40] sm:$0xff]
    %v2551 = vld [vmem:[#allocation7 + $0x48] sm:$0xff]
    %v2552 = vld [vmem:[#allocation7 + $0x50] sm:$0xff]
    %v2553 = vld [vmem:[#allocation7 + $0x58] sm:$0xff]
    %v2554 = vld [vmem:[#allocation7 + $0x60] sm:$0xff]
    %v2555 = vld [vmem:[#allocation7 + $0x68] sm:$0xff]
    %v2556 = vld [vmem:[#allocation7 + $0x70] sm:$0xff]
    %v2557 = vld [vmem:[#allocation7 + $0x78] sm:$0xff]
    %v2558 = vld [vmem:[%s11] sm:$0x1]
    %v2560 = vlaneseq
    %v2561 = vshrl.u32 %v2560, 7
    %v2562 = vsub.s32 0, %v2561
    %v2563 = vrot.slane %v2558, %v2562
    %2565 = vmatprep.subr.mxu0 0.0
    %2566 = vmatpush1.msra.mxu0 %v2557
    %2567 = vmatprep.subr.mxu0 0.0
    %2568 = vmatpush1.msra.mxu0 %v2556
    %2569 = vmatprep.subr.mxu0 0.0
    %2570 = vmatpush1.msra.mxu0 %v2555
    %2571 = vmatprep.subr.mxu0 0.0
    %2572 = vmatpush1.msra.mxu0 %v2554
    %2573 = vmatprep.subr.mxu0 0.0
    %2574 = vmatpush1.msra.mxu0 %v2553
    %2575 = vmatprep.subr.mxu0 0.0
    %2576 = vmatpush1.msra.mxu0 %v2552
    %2577 = vmatprep.subr.mxu0 0.0
    %2578 = vmatpush1.msra.mxu0 %v2551
    %2579 = vmatprep.subr.mxu0 0.0
    %2580 = vmatpush1.msra.mxu0 %v2550
    %2581 = vmatprep.subr.mxu0 0.0
    %2582 = vmatpush1.msra.mxu0 %v2549
    %2583 = vmatprep.subr.mxu0 0.0
    %2584 = vmatpush1.msra.mxu0 %v2548
    %2585 = vmatprep.subr.mxu0 0.0
    %2586 = vmatpush1.msra.mxu0 %v2547
    %2587 = vmatprep.subr.mxu0 0.0
    %2588 = vmatpush1.msra.mxu0 %v2546
    %2589 = vmatprep.subr.mxu0 0.0
    %2590 = vmatpush1.msra.mxu0 %v2545
    %2591 = vmatprep.subr.mxu0 0.0
    %2592 = vmatpush1.msra.mxu0 %v2544
    %2593 = vmatprep.subr.mxu0 0.0
    %2594 = vmatpush1.msra.mxu0 %v2543
    %2595 = vmatprep.subr.mxu0 0.0
    %2596 = vmatpush1.msra.mxu0 %v2542
    %2597 = vmatprep.subr.mxu0 0.0
    %2598 = vmatpush2.msra.mxu0 0.0
    %2599 = vmatprep.subr.mxu0 0.0
    %2600 = vmatpush2.msra.mxu0 0.0
    %2601 = vmatprep.subr.mxu0 0.0
    %2602 = vmatpush2.msra.mxu0 0.0
    %2603 = vmatprep.subr.mxu0 0.0
    %2604 = vmatpush2.msra.mxu0 0.0
    %2605 = vmatprep.subr.mxu0 0.0
    %2606 = vmatpush2.msra.mxu0 0.0
    %2607 = vmatprep.subr.mxu0 0.0
    %2608 = vmatpush2.msra.mxu0 0.0
    %2609 = vmatprep.subr.mxu0 0.0
    %2610 = vmatpush2.msra.mxu0 0.0
    %2611 = vmatprep.subr.mxu0 0.0
    %2612 = vmatpush2.msra.mxu0 0.0
    %2613 = vmatprep.subr.mxu0 0.0
    %2614 = vmatpush2.msra.mxu0 0.0
    %2615 = vmatprep.subr.mxu0 0.0
    %2616 = vmatpush2.msra.mxu0 0.0
    %2617 = vmatprep.subr.mxu0 0.0
    %2618 = vmatpush2.msra.mxu0 0.0
    %2619 = vmatprep.subr.mxu0 0.0
    %2620 = vmatpush2.msra.mxu0 0.0
    %2621 = vmatprep.subr.mxu0 0.0
    %2622 = vmatpush2.msra.mxu0 0.0
    %2623 = vmatprep.subr.mxu0 0.0
    %2624 = vmatpush2.msra.mxu0 0.0
    %2625 = vmatprep.subr.mxu0 0.0
    %2626 = vmatpush2.msra.mxu0 0.0
    %2627 = vmatprep.subr.mxu0 0.0
    %2628 = vmatpush2.msra.mxu0 0.0
    %2629 = vmatprep.mubr.f32.mxu0 0.0
    %2630 = vmatmul.mubr.f32.gmra.mxu0 %v2534
    %v2631 = vpop.f32.mrf.mxu0
    %v2632 = vadd.f32 %v2563, %v2631
    %v2633 = vpop.f32.mrf.mxu0
    %2634 = vmatprep.mubr.f32.mxu0 0.0
    %2635 = vmatmul.mubr.f32.gmra.mxu0 %v2535
    %v2636 = vpop.f32.mrf.mxu0
    %v2637 = vadd.f32 %v2563, %v2636
    %v2638 = vpop.f32.mrf.mxu0
    %2639 = vmatprep.mubr.f32.mxu0 0.0
    %2640 = vmatmul.mubr.f32.gmra.mxu0 %v2536
    %v2641 = vpop.f32.mrf.mxu0
    %v2642 = vadd.f32 %v2563, %v2641
    %v2643 = vpop.f32.mrf.mxu0
    %2644 = vmatprep.mubr.f32.mxu0 0.0
    %2645 = vmatmul.mubr.f32.gmra.mxu0 %v2537
    %v2646 = vpop.f32.mrf.mxu0
    %v2647 = vadd.f32 %v2563, %v2646
    %v2648 = vpop.f32.mrf.mxu0
    %2649 = vmatprep.mubr.f32.mxu0 0.0
    %2650 = vmatmul.mubr.f32.gmra.mxu0 %v2538
    %v2651 = vpop.f32.mrf.mxu0
    %v2652 = vadd.f32 %v2563, %v2651
    %v2653 = vpop.f32.mrf.mxu0
    %2654 = vmatprep.mubr.f32.mxu0 0.0
    %2655 = vmatmul.mubr.f32.gmra.mxu0 %v2539
    %v2656 = vpop.f32.mrf.mxu0
    %v2657 = vadd.f32 %v2563, %v2656
    %v2658 = vpop.f32.mrf.mxu0
    %2659 = vmatprep.mubr.f32.mxu0 0.0
    %2660 = vmatmul.mubr.f32.gmra.mxu0 %v2540
    %v2661 = vpop.f32.mrf.mxu0
    %v2662 = vadd.f32 %v2563, %v2661
    %v2663 = vpop.f32.mrf.mxu0
    %2664 = vmatprep.mubr.f32.mxu0 0.0
    %2665 = vmatmul.mubr.f32.gmra.mxu0 %v2541
    %v2666 = vpop.f32.mrf.mxu0
    %v2667 = vadd.f32 %v2563, %v2666
    %v2668 = vpop.f32.mrf.mxu0
    %2669 = vdwg.mxu0
    %v2670 = vtanh.pop %v2632
    %v2671 = vtanh.pop %v2637
    %v2672 = vtanh.pop %v2642
    %v2673 = vtanh.pop %v2647
    %v2674 = vtanh.pop %v2652
    %v2675 = vtanh.pop %v2657
    %v2676 = vtanh.pop %v2662
    %v2677 = vtanh.pop %v2667
    %2678 = vst [vmem:[#allocation8] sm:$0xff] %v2670
    %2679 = vst [vmem:[#allocation8 + $0x8] sm:$0xff] %v2671
    %2680 = vst [vmem:[#allocation8 + $0x10] sm:$0xff] %v2672
    %2681 = vst [vmem:[#allocation8 + $0x18] sm:$0xff] %v2673
    %2682 = vst [vmem:[#allocation8 + $0x20] sm:$0xff] %v2674
    %2683 = vst [vmem:[#allocation8 + $0x28] sm:$0xff] %v2675
    %2684 = vst [vmem:[#allocation8 + $0x30] sm:$0xff] %v2676
    %2685 = vst [vmem:[#allocation8 + $0x38] sm:$0xff] %v2677
    // Predicated region
    $region62: #{tpu_custom_call.1} parent=1 // pred_check
      _
    $region63: #{tpu_custom_call.1} parent=1 // pred_check_branch
      %2687 = sbr.rel (0) target = $region65
    $region64: #{tpu_custom_call.1} parent=1 // pred_region
      %s2689 = ssub.s32 1024, 1024
      %2690 = vsyncadd [#allocation4], %s2689
      %s2691 = sshll.u32 [#allocation8], 4
      %s2692 = int_to_ptr.vmem [resolvable:$true] %s2691
      %2697 = dma.vmem_to_hbm [thread:$0]  %s2692, 1024, %s12, [#allocation4], 128, 128, 8
    $region65: #{tpu_custom_call.1} parent=1 // pred_fallthru
      _
    // Predicated region
    $region66: #{tpu_custom_call.1} parent=1 // pred_check
      _
    $region67: #{tpu_custom_call.1} parent=1 // pred_check_branch
      %2699 = sbr.rel (0) target = $region69
    $region68: #{tpu_custom_call.1} parent=1 // pred_region
      %2700 = dma.done [#allocation4], 1024
    $region69: #{tpu_custom_call.1} parent=1 // pred_fallthru
      _
    %2701 = vsyncpa [#allocation3], 1
    %2702 = vsyncpa [#allocation6], 1
    %2703 = vsyncpa [#allocation4], 1

</llo_original>
